<compile_context>
chip_gen: v6e
topology: v6e:2x2x1
jax: 0.10.0
libtpu: 0.0.40
codegen_flags: <defaults>
</compile_context>

<pallas_src>
import functools

import jax
import jax.numpy as jnp
import numpy as np
from jax.experimental import pallas as pl
from jax.experimental.pallas import tpu as pltpu

HIDDEN = 28
HIDDEN_PAD = 32          # hidden padded to a sublane multiple; 4 * 32 = 128 gate rows
INPUT_SIZE = 4
SEQ_LEN = 8
NUM_CLASSES = 1
GATE_ROWS = 4 * HIDDEN_PAD   # 128


def _leaky_relu(x, slope=0.2):
    return jnp.where(x >= 0, x, slope * x)


def _sigmoid(x):
    # One EUP transcendental (tanh) instead of exp + reciprocal; the 0.5 mul/add ride
    # the otherwise-idle VPU slots.  Mathematically identical to logistic sigmoid.
    return 0.5 * jnp.tanh(0.5 * x) + 0.5


def _round_up(n, m):
    return ((n + m - 1) // m) * m


def lm_kernel(x_ref, w_big_ref, bias_ref, w_hh_ref, w1_ref, b1_ref, w2_ref, b2_ref,
              out_ref, gx_ref):
    """One batch tile: full LSTM recurrence + MLP head, batch on the lane axis.

    Shapes (per grid step):
      x_ref    : (T*I, TB)   = (32, TB)      w_big_ref : (T*4*HP, T*I) = (1024, 32)
      bias_ref : (T*4*HP, 1) = (1024, 1)     w_hh_ref  : (4*HP, HP)    = (128, 32)
      w1_ref   : (HP, HP)    b1_ref : (HP,1) w2_ref : (1, HP)   b2_ref : (1, 1)
      out_ref  : (1, TB)     gx_ref (VMEM scratch) : (T*4*HP, TB)
    """
    TB = x_ref.shape[1]
    HP = w_hh_ref.shape[1]
    G = 4 * HP
    T = SEQ_LEN

    # Single packed input projection for ALL timesteps, bias folded in, staged in VMEM.
    # This is the only place x / W_ih / bias touch compute; it is off the h-chain.
    gx_ref[...] = (
        jnp.dot(w_big_ref[...], x_ref[...], preferred_element_type=jnp.float32)
        + bias_ref[...])

    w_hh = w_hh_ref[...]
    h = jnp.zeros((HP, TB), jnp.float32)
    c = jnp.zeros((HP, TB), jnp.float32)

    # T=8 is static -> unrolled Python loop (the recurrence is inherently sequential).
    for t in range(T):
        # gx slice is a 128-aligned static sublane slice of the VMEM scratch.
        gates = gx_ref[t * G:(t + 1) * G, :] + jnp.dot(
            w_hh, h, preferred_element_type=jnp.float32)
        # PyTorch gate ordering: i, f, g, o -- each gate is an aligned sublane slice.
        i_g = _sigmoid(gates[0 * HP:1 * HP])
        f_g = _sigmoid(gates[1 * HP:2 * HP])
        g_g = jnp.tanh(gates[2 * HP:3 * HP])
        o_g = _sigmoid(gates[3 * HP:4 * HP])
        c = f_g * c + i_g * g_g
        h = o_g * jnp.tanh(c)
        # Padded gate rows are 0 (zero weights + zero bias) -> g_g = tanh(0) = 0 and
        # c_pad = 0.5*c_pad stays 0, h_pad = 0.5*tanh(0) = 0: padded rows remain zero.

    # MLP head: Linear(H,H) -> LeakyReLU(0.2) -> Linear(H,1) -> LeakyReLU(0.2)
    z = jnp.dot(w1_ref[...], h, preferred_element_type=jnp.float32) + b1_ref[...]
    z = _leaky_relu(z)
    z = jnp.dot(w2_ref[...], z, preferred_element_type=jnp.float32) + b2_ref[...]
    out_ref[...] = _leaky_relu(z)          # (1, TB) -- lane-dense store


def _prep_params(p):
    """Pad / reshape raw PyTorch-shaped params to the kernel's lane-aligned layout."""
    H, I, HP, T = HIDDEN, INPUT_SIZE, HIDDEN_PAD, SEQ_LEN
    G = 4 * HP

    def pad_gate_rows(w):                       # (4H, K) -> (4*HP, K), per-gate zero pad
        k = w.shape[1]
        w = w.reshape(4, H, k)
        w = jnp.pad(w, ((0, 0), (0, HP - H), (0, 0)))
        return w.reshape(G, k)

    w_ih = pad_gate_rows(p["w_ih"].astype(jnp.float32))                 # (128, 4)
    # Block-diagonal packed input-projection weight for all T timesteps: (1024, 32).
    w_big = jnp.kron(jnp.eye(T, dtype=jnp.float32), w_ih)               # (T*128, T*4)
    w_hh = jnp.pad(pad_gate_rows(p["w_hh"]), ((0, 0), (0, HP - H)))     # (128, 32)
    bias = (p["b_ih"] + p["b_hh"]).reshape(4, H)
    bias = jnp.pad(bias, ((0, 0), (0, HP - H))).reshape(G, 1)           # (128, 1)
    bias_big = jnp.tile(bias, (T, 1))                                   # (1024, 1)
    w1 = jnp.pad(p["w1"], ((0, HP - H), (0, HP - H)))                   # (32, 32)
    b1 = jnp.pad(p["b1"].reshape(H, 1), ((0, HP - H), (0, 0)))          # (32, 1)
    w2 = jnp.pad(p["w2"], ((0, 0), (0, HP - H)))                        # (1, 32)
    b2 = p["b2"].reshape(NUM_CLASSES, 1)                                # (1, 1)
    return w_big, bias_big, w_hh, w1, b1, w2, b2


@functools.partial(jax.jit, static_argnames=("block_b",))
def lm_forward(x, params, block_b=1024):
    B = x.shape[0]
    T, I = SEQ_LEN, INPUT_SIZE
    G = GATE_ROWS

    # Batch tiling: multiple of 128 lanes, capped by block_b, and split into >= 2 grid
    # steps whenever the batch allows so both v7x TensorCores get work.
    Bp = _round_up(B, 128)
    if Bp >= 256:
        TB = min(block_b, _round_up((Bp + 1) // 2, 128))
    else:
        TB = Bp
    TB = max(128, _round_up(TB, 128))
    B_pad = _round_up(B, TB)

    # (B, T, I) -> (T*I, B_pad): timestep-major rows, batch on the lane axis, zero-padded.
    # TODO(synk): for very large B on v5e, emit x in this layout at the producer to skip
    #             this extra HBM transpose pass.
    xt = jnp.transpose(x.astype(jnp.float32), (1, 2, 0)).reshape(T * I, B)
    xt = jnp.pad(xt, ((0, 0), (0, B_pad - B)))

    w_big, bias_big, w_hh, w1, b1, w2, b2 = _prep_params(params)

    full = lambda a: pl.BlockSpec(a.shape, lambda i: (0,) * a.ndim)

    out = pl.pallas_call(
        lm_kernel,
        out_shape=jax.ShapeDtypeStruct((1, B_pad), jnp.float32),
        grid=(B_pad // TB,),
        in_specs=[
            pl.BlockSpec((T * I, TB), lambda i: (0, i)),
            full(w_big), full(bias_big), full(w_hh),
            full(w1), full(b1), full(w2), full(b2),
        ],
        out_specs=pl.BlockSpec((1, TB), lambda i: (0, i)),
        scratch_shapes=[pltpu.VMEM((T * G, TB), jnp.float32)],
        compiler_params=pltpu.CompilerParams(
            dimension_semantics=("parallel",)),
    )(xt, w_big, bias_big, w_hh, w1, b1, w2, b2)

    return out[0, :B].reshape(B, NUM_CLASSES)


def init_params(key):
    """Deterministic synthetic init matching PyTorch default shapes (U(-1/sqrt(H), 1/sqrt(H)))."""
    H, I = HIDDEN, INPUT_SIZE
    k = 1.0 / np.sqrt(H)
    ks = jax.random.split(key, 8)
    u = lambda kk, shape: jax.random.uniform(kk, shape, jnp.float32, -k, k)
    return dict(
        w_ih=u(ks[0], (4 * H, I)),
        w_hh=u(ks[1], (4 * H, H)),
        b_ih=u(ks[2], (4 * H,)),
        b_hh=u(ks[3], (4 * H,)),
        w1=u(ks[4], (H, H)),
        b1=u(ks[5], (H,)),
        w2=u(ks[6], (NUM_CLASSES, H)),
        b2=u(ks[7], (NUM_CLASSES,)),
    )


def lm_reference(x, p):
    """Pure-JAX reference (same math, PyTorch layout) to validate the kernel."""
    B = x.shape[0]
    H = HIDDEN
    h = jnp.zeros((B, H), jnp.float32)
    c = jnp.zeros((B, H), jnp.float32)
    bias = p["b_ih"] + p["b_hh"]
    for t in range(x.shape[1]):
        gates = x[:, t, :] @ p["w_ih"].T + h @ p["w_hh"].T + bias
        i_g = jax.nn.sigmoid(gates[:, 0 * H:1 * H])
        f_g = jax.nn.sigmoid(gates[:, 1 * H:2 * H])
        g_g = jnp.tanh(gates[:, 2 * H:3 * H])
        o_g = jax.nn.sigmoid(gates[:, 3 * H:4 * H])
        c = f_g * c + i_g * g_g
        h = o_g * jnp.tanh(c)
    z = _leaky_relu(h @ p["w1"].T + p["b1"])
    z = _leaky_relu(z @ p["w2"].T + p["b2"])
    return z


if __name__ == "__main__":
    key = jax.random.PRNGKey(0)
    kx, kx2, kp = jax.random.split(key, 3)
    params = init_params(kp)

    # Small-batch check (single tile).
    B = 2
    x = jax.random.normal(kx, (B, SEQ_LEN, INPUT_SIZE), jnp.float32)
    out = jax.block_until_ready(lm_forward(x, params))
    ref = lm_reference(x, params)
    np.testing.assert_allclose(np.asarray(out), np.asarray(ref), rtol=1e-5, atol=1e-5)
    assert out.shape == (B, NUM_CLASSES)

    # Multi-tile check (exercises grid > 1, batch padding, parallel semantics).
    B2 = 300
    x2 = jax.random.normal(kx2, (B2, SEQ_LEN, INPUT_SIZE), jnp.float32)
    out2 = jax.block_until_ready(lm_forward(x2, params))
    ref2 = lm_reference(x2, params)
    np.testing.assert_allclose(np.asarray(out2), np.asarray(ref2), rtol=1e-5, atol=1e-5)
    assert out2.shape == (B2, NUM_CLASSES)

    print("KERNEL_OK")
</pallas_src>

<mosaic_0001>
module attributes {stable_mosaic.version = 11 : i64} {
  func.func @lm_kernel(%arg0: i32, %arg1: memref<32x128xf32, #tpu.memory_space<vmem>>, %arg2: memref<1024x32xf32, #tpu.memory_space<vmem>>, %arg3: memref<1024x1xf32, #tpu.memory_space<vmem>>, %arg4: memref<128x32xf32, #tpu.memory_space<vmem>>, %arg5: memref<32x32xf32, #tpu.memory_space<vmem>>, %arg6: memref<32x1xf32, #tpu.memory_space<vmem>>, %arg7: memref<1x32xf32, #tpu.memory_space<vmem>>, %arg8: memref<1x1xf32, #tpu.memory_space<vmem>>, %arg9: memref<1x128xf32, #tpu.memory_space<vmem>>, %arg10: memref<1024x128xf32, #tpu.memory_space<vmem>>) attributes {dimension_semantics = [#tpu.dimension_semantics<parallel>], iteration_bounds = array<i64: 1>, scalar_prefetch = 0 : i64, scratch_operands = 1 : i64, tpu.core_type = #tpu.core_type<tc>, window_params = [{transform_indices = @transform_0, window_bounds = array<i64: 32, 128>}, {pipeline_mode = #tpu.pipeline_mode<synchronous>, transform_indices = @transform_1, window_bounds = array<i64: 1024, 32>}, {pipeline_mode = #tpu.pipeline_mode<synchronous>, transform_indices = @transform_2, window_bounds = array<i64: 1024, 1>}, {pipeline_mode = #tpu.pipeline_mode<synchronous>, transform_indices = @transform_3, window_bounds = array<i64: 128, 32>}, {pipeline_mode = #tpu.pipeline_mode<synchronous>, transform_indices = @transform_4, window_bounds = array<i64: 32, 32>}, {pipeline_mode = #tpu.pipeline_mode<synchronous>, transform_indices = @transform_5, window_bounds = array<i64: 32, 1>}, {pipeline_mode = #tpu.pipeline_mode<synchronous>, transform_indices = @transform_6, window_bounds = array<i64: 1, 32>}, {pipeline_mode = #tpu.pipeline_mode<synchronous>, transform_indices = @transform_7, window_bounds = array<i64: 1, 1>}, {transform_indices = @transform_8, window_bounds = array<i64: 1, 128>}]} {
    %c0 = arith.constant 0 : index
    %c0_0 = arith.constant 0 : index
    %0 = vector.load %arg2[%c0, %c0_0] : memref<1024x32xf32, #tpu.memory_space<vmem>>, vector<1024x32xf32>
    %c0_1 = arith.constant 0 : index
    %c0_2 = arith.constant 0 : index
    %1 = vector.load %arg1[%c0_1, %c0_2] : memref<32x128xf32, #tpu.memory_space<vmem>>, vector<32x128xf32>
    %cst = arith.constant dense<0.000000e+00> : vector<1024x128xf32>
    %2 = tpu.matmul %0, %1, %cst {dimension_numbers = #tpu.dot_dimension_numbers<[1], [0], [0], [1], [0, 0, 1, 1], [], []>} : vector<1024x32xf32>, vector<32x128xf32>, vector<1024x128xf32> -> vector<1024x128xf32>
    %c0_3 = arith.constant 0 : index
    %c0_4 = arith.constant 0 : index
    %3 = vector.load %arg3[%c0_3, %c0_4] : memref<1024x1xf32, #tpu.memory_space<vmem>>, vector<1024x1xf32>
    %4 = vector.broadcast %3 : vector<1024x1xf32> to vector<1024x128xf32>
    %5 = arith.addf %2, %4 : vector<1024x128xf32>
    %c0_5 = arith.constant 0 : index
    %c0_6 = arith.constant 0 : index
    %6 = vector.load %arg10[%c0_5, %c0_6] : memref<1024x128xf32, #tpu.memory_space<vmem>>, vector<1024x128xf32>
    tpu.vector_store %arg10[%c0_5, %c0_6], %5 {strides = array<i32>} : memref<1024x128xf32, #tpu.memory_space<vmem>>, vector<1024x128xf32>,
    %c0_7 = arith.constant 0 : index
    %c0_8 = arith.constant 0 : index
    %7 = vector.load %arg4[%c0_7, %c0_8] : memref<128x32xf32, #tpu.memory_space<vmem>>, vector<128x32xf32>
    %cst_9 = arith.constant 0.000000e+00 : f32
    %8 = vector.broadcast %cst_9 : f32 to vector<32x128xf32>
    %cst_10 = arith.constant 0.000000e+00 : f32
    %9 = vector.broadcast %cst_10 : f32 to vector<32x128xf32>
    %c0_11 = arith.constant 0 : index
    %c0_12 = arith.constant 0 : index
    %10 = vector.load %arg10[%c0_11, %c0_12] : memref<1024x128xf32, #tpu.memory_space<vmem>>, vector<128x128xf32>
    %cst_13 = arith.constant dense<0.000000e+00> : vector<128x128xf32>
    %11 = tpu.matmul %7, %8, %cst_13 {dimension_numbers = #tpu.dot_dimension_numbers<[1], [0], [0], [1], [0, 0, 1, 1], [], []>} : vector<128x32xf32>, vector<32x128xf32>, vector<128x128xf32> -> vector<128x128xf32>
    %12 = arith.addf %10, %11 : vector<128x128xf32>
    %13 = vector.extract_strided_slice %12 {offsets = [0, 0], sizes = [32, 128], strides = [1, 1]} : vector<128x128xf32> to vector<32x128xf32>
    %cst_14 = arith.constant 5.000000e-01 : f32
    %14 = vector.broadcast %cst_14 : f32 to vector<32x128xf32>
    %15 = arith.mulf %14, %13 : vector<32x128xf32>
    %16 = math.tanh %15 : vector<32x128xf32>
    %cst_15 = arith.constant 5.000000e-01 : f32
    %17 = vector.broadcast %cst_15 : f32 to vector<32x128xf32>
    %18 = arith.mulf %17, %16 : vector<32x128xf32>
    %cst_16 = arith.constant 5.000000e-01 : f32
    %19 = vector.broadcast %cst_16 : f32 to vector<32x128xf32>
    %20 = arith.addf %18, %19 : vector<32x128xf32>
    %21 = vector.extract_strided_slice %12 {offsets = [32, 0], sizes = [32, 128], strides = [1, 1]} : vector<128x128xf32> to vector<32x128xf32>
    %cst_17 = arith.constant 5.000000e-01 : f32
    %22 = vector.broadcast %cst_17 : f32 to vector<32x128xf32>
    %23 = arith.mulf %22, %21 : vector<32x128xf32>
    %24 = math.tanh %23 : vector<32x128xf32>
    %cst_18 = arith.constant 5.000000e-01 : f32
    %25 = vector.broadcast %cst_18 : f32 to vector<32x128xf32>
    %26 = arith.mulf %25, %24 : vector<32x128xf32>
    %cst_19 = arith.constant 5.000000e-01 : f32
    %27 = vector.broadcast %cst_19 : f32 to vector<32x128xf32>
    %28 = arith.addf %26, %27 : vector<32x128xf32>
    %29 = vector.extract_strided_slice %12 {offsets = [64, 0], sizes = [32, 128], strides = [1, 1]} : vector<128x128xf32> to vector<32x128xf32>
    %30 = math.tanh %29 : vector<32x128xf32>
    %31 = vector.extract_strided_slice %12 {offsets = [96, 0], sizes = [32, 128], strides = [1, 1]} : vector<128x128xf32> to vector<32x128xf32>
    %cst_20 = arith.constant 5.000000e-01 : f32
    %32 = vector.broadcast %cst_20 : f32 to vector<32x128xf32>
    %33 = arith.mulf %32, %31 : vector<32x128xf32>
    %34 = math.tanh %33 : vector<32x128xf32>
    %cst_21 = arith.constant 5.000000e-01 : f32
    %35 = vector.broadcast %cst_21 : f32 to vector<32x128xf32>
    %36 = arith.mulf %35, %34 : vector<32x128xf32>
    %cst_22 = arith.constant 5.000000e-01 : f32
    %37 = vector.broadcast %cst_22 : f32 to vector<32x128xf32>
    %38 = arith.addf %36, %37 : vector<32x128xf32>
    %39 = arith.mulf %28, %9 : vector<32x128xf32>
    %40 = arith.mulf %20, %30 : vector<32x128xf32>
    %41 = arith.addf %39, %40 : vector<32x128xf32>
    %42 = math.tanh %41 : vector<32x128xf32>
    %43 = arith.mulf %38, %42 : vector<32x128xf32>
    %c128 = arith.constant 128 : index
    %c0_23 = arith.constant 0 : index
    %44 = vector.load %arg10[%c128, %c0_23] : memref<1024x128xf32, #tpu.memory_space<vmem>>, vector<128x128xf32>
    %cst_24 = arith.constant dense<0.000000e+00> : vector<128x128xf32>
    %45 = tpu.matmul %7, %43, %cst_24 {dimension_numbers = #tpu.dot_dimension_numbers<[1], [0], [0], [1], [0, 0, 1, 1], [], []>} : vector<128x32xf32>, vector<32x128xf32>, vector<128x128xf32> -> vector<128x128xf32>
    %46 = arith.addf %44, %45 : vector<128x128xf32>
    %47 = vector.extract_strided_slice %46 {offsets = [0, 0], sizes = [32, 128], strides = [1, 1]} : vector<128x128xf32> to vector<32x128xf32>
    %cst_25 = arith.constant 5.000000e-01 : f32
    %48 = vector.broadcast %cst_25 : f32 to vector<32x128xf32>
    %49 = arith.mulf %48, %47 : vector<32x128xf32>
    %50 = math.tanh %49 : vector<32x128xf32>
    %cst_26 = arith.constant 5.000000e-01 : f32
    %51 = vector.broadcast %cst_26 : f32 to vector<32x128xf32>
    %52 = arith.mulf %51, %50 : vector<32x128xf32>
    %cst_27 = arith.constant 5.000000e-01 : f32
    %53 = vector.broadcast %cst_27 : f32 to vector<32x128xf32>
    %54 = arith.addf %52, %53 : vector<32x128xf32>
    %55 = vector.extract_strided_slice %46 {offsets = [32, 0], sizes = [32, 128], strides = [1, 1]} : vector<128x128xf32> to vector<32x128xf32>
    %cst_28 = arith.constant 5.000000e-01 : f32
    %56 = vector.broadcast %cst_28 : f32 to vector<32x128xf32>
    %57 = arith.mulf %56, %55 : vector<32x128xf32>
    %58 = math.tanh %57 : vector<32x128xf32>
    %cst_29 = arith.constant 5.000000e-01 : f32
    %59 = vector.broadcast %cst_29 : f32 to vector<32x128xf32>
    %60 = arith.mulf %59, %58 : vector<32x128xf32>
    %cst_30 = arith.constant 5.000000e-01 : f32
    %61 = vector.broadcast %cst_30 : f32 to vector<32x128xf32>
    %62 = arith.addf %60, %61 : vector<32x128xf32>
    %63 = vector.extract_strided_slice %46 {offsets = [64, 0], sizes = [32, 128], strides = [1, 1]} : vector<128x128xf32> to vector<32x128xf32>
    %64 = math.tanh %63 : vector<32x128xf32>
    %65 = vector.extract_strided_slice %46 {offsets = [96, 0], sizes = [32, 128], strides = [1, 1]} : vector<128x128xf32> to vector<32x128xf32>
    %cst_31 = arith.constant 5.000000e-01 : f32
    %66 = vector.broadcast %cst_31 : f32 to vector<32x128xf32>
    %67 = arith.mulf %66, %65 : vector<32x128xf32>
    %68 = math.tanh %67 : vector<32x128xf32>
    %cst_32 = arith.constant 5.000000e-01 : f32
    %69 = vector.broadcast %cst_32 : f32 to vector<32x128xf32>
    %70 = arith.mulf %69, %68 : vector<32x128xf32>
    %cst_33 = arith.constant 5.000000e-01 : f32
    %71 = vector.broadcast %cst_33 : f32 to vector<32x128xf32>
    %72 = arith.addf %70, %71 : vector<32x128xf32>
    %73 = arith.mulf %62, %41 : vector<32x128xf32>
    %74 = arith.mulf %54, %64 : vector<32x128xf32>
    %75 = arith.addf %73, %74 : vector<32x128xf32>
    %76 = math.tanh %75 : vector<32x128xf32>
    %77 = arith.mulf %72, %76 : vector<32x128xf32>
    %c256 = arith.constant 256 : index
    %c0_34 = arith.constant 0 : index
    %78 = vector.load %arg10[%c256, %c0_34] : memref<1024x128xf32, #tpu.memory_space<vmem>>, vector<128x128xf32>
    %cst_35 = arith.constant dense<0.000000e+00> : vector<128x128xf32>
    %79 = tpu.matmul %7, %77, %cst_35 {dimension_numbers = #tpu.dot_dimension_numbers<[1], [0], [0], [1], [0, 0, 1, 1], [], []>} : vector<128x32xf32>, vector<32x128xf32>, vector<128x128xf32> -> vector<128x128xf32>
    %80 = arith.addf %78, %79 : vector<128x128xf32>
    %81 = vector.extract_strided_slice %80 {offsets = [0, 0], sizes = [32, 128], strides = [1, 1]} : vector<128x128xf32> to vector<32x128xf32>
    %cst_36 = arith.constant 5.000000e-01 : f32
    %82 = vector.broadcast %cst_36 : f32 to vector<32x128xf32>
    %83 = arith.mulf %82, %81 : vector<32x128xf32>
    %84 = math.tanh %83 : vector<32x128xf32>
    %cst_37 = arith.constant 5.000000e-01 : f32
    %85 = vector.broadcast %cst_37 : f32 to vector<32x128xf32>
    %86 = arith.mulf %85, %84 : vector<32x128xf32>
    %cst_38 = arith.constant 5.000000e-01 : f32
    %87 = vector.broadcast %cst_38 : f32 to vector<32x128xf32>
    %88 = arith.addf %86, %87 : vector<32x128xf32>
    %89 = vector.extract_strided_slice %80 {offsets = [32, 0], sizes = [32, 128], strides = [1, 1]} : vector<128x128xf32> to vector<32x128xf32>
    %cst_39 = arith.constant 5.000000e-01 : f32
    %90 = vector.broadcast %cst_39 : f32 to vector<32x128xf32>
    %91 = arith.mulf %90, %89 : vector<32x128xf32>
    %92 = math.tanh %91 : vector<32x128xf32>
    %cst_40 = arith.constant 5.000000e-01 : f32
    %93 = vector.broadcast %cst_40 : f32 to vector<32x128xf32>
    %94 = arith.mulf %93, %92 : vector<32x128xf32>
    %cst_41 = arith.constant 5.000000e-01 : f32
    %95 = vector.broadcast %cst_41 : f32 to vector<32x128xf32>
    %96 = arith.addf %94, %95 : vector<32x128xf32>
    %97 = vector.extract_strided_slice %80 {offsets = [64, 0], sizes = [32, 128], strides = [1, 1]} : vector<128x128xf32> to vector<32x128xf32>
    %98 = math.tanh %97 : vector<32x128xf32>
    %99 = vector.extract_strided_slice %80 {offsets = [96, 0], sizes = [32, 128], strides = [1, 1]} : vector<128x128xf32> to vector<32x128xf32>
    %cst_42 = arith.constant 5.000000e-01 : f32
    %100 = vector.broadcast %cst_42 : f32 to vector<32x128xf32>
    %101 = arith.mulf %100, %99 : vector<32x128xf32>
    %102 = math.tanh %101 : vector<32x128xf32>
    %cst_43 = arith.constant 5.000000e-01 : f32
    %103 = vector.broadcast %cst_43 : f32 to vector<32x128xf32>
    %104 = arith.mulf %103, %102 : vector<32x128xf32>
    %cst_44 = arith.constant 5.000000e-01 : f32
    %105 = vector.broadcast %cst_44 : f32 to vector<32x128xf32>
    %106 = arith.addf %104, %105 : vector<32x128xf32>
    %107 = arith.mulf %96, %75 : vector<32x128xf32>
    %108 = arith.mulf %88, %98 : vector<32x128xf32>
    %109 = arith.addf %107, %108 : vector<32x128xf32>
    %110 = math.tanh %109 : vector<32x128xf32>
    %111 = arith.mulf %106, %110 : vector<32x128xf32>
    %c384 = arith.constant 384 : index
    %c0_45 = arith.constant 0 : index
    %112 = vector.load %arg10[%c384, %c0_45] : memref<1024x128xf32, #tpu.memory_space<vmem>>, vector<128x128xf32>
    %cst_46 = arith.constant dense<0.000000e+00> : vector<128x128xf32>
    %113 = tpu.matmul %7, %111, %cst_46 {dimension_numbers = #tpu.dot_dimension_numbers<[1], [0], [0], [1], [0, 0, 1, 1], [], []>} : vector<128x32xf32>, vector<32x128xf32>, vector<128x128xf32> -> vector<128x128xf32>
    %114 = arith.addf %112, %113 : vector<128x128xf32>
    %115 = vector.extract_strided_slice %114 {offsets = [0, 0], sizes = [32, 128], strides = [1, 1]} : vector<128x128xf32> to vector<32x128xf32>
    %cst_47 = arith.constant 5.000000e-01 : f32
    %116 = vector.broadcast %cst_47 : f32 to vector<32x128xf32>
    %117 = arith.mulf %116, %115 : vector<32x128xf32>
    %118 = math.tanh %117 : vector<32x128xf32>
    %cst_48 = arith.constant 5.000000e-01 : f32
    %119 = vector.broadcast %cst_48 : f32 to vector<32x128xf32>
    %120 = arith.mulf %119, %118 : vector<32x128xf32>
    %cst_49 = arith.constant 5.000000e-01 : f32
    %121 = vector.broadcast %cst_49 : f32 to vector<32x128xf32>
    %122 = arith.addf %120, %121 : vector<32x128xf32>
    %123 = vector.extract_strided_slice %114 {offsets = [32, 0], sizes = [32, 128], strides = [1, 1]} : vector<128x128xf32> to vector<32x128xf32>
    %cst_50 = arith.constant 5.000000e-01 : f32
    %124 = vector.broadcast %cst_50 : f32 to vector<32x128xf32>
    %125 = arith.mulf %124, %123 : vector<32x128xf32>
    %126 = math.tanh %125 : vector<32x128xf32>
    %cst_51 = arith.constant 5.000000e-01 : f32
    %127 = vector.broadcast %cst_51 : f32 to vector<32x128xf32>
    %128 = arith.mulf %127, %126 : vector<32x128xf32>
    %cst_52 = arith.constant 5.000000e-01 : f32
    %129 = vector.broadcast %cst_52 : f32 to vector<32x128xf32>
    %130 = arith.addf %128, %129 : vector<32x128xf32>
    %131 = vector.extract_strided_slice %114 {offsets = [64, 0], sizes = [32, 128], strides = [1, 1]} : vector<128x128xf32> to vector<32x128xf32>
    %132 = math.tanh %131 : vector<32x128xf32>
    %133 = vector.extract_strided_slice %114 {offsets = [96, 0], sizes = [32, 128], strides = [1, 1]} : vector<128x128xf32> to vector<32x128xf32>
    %cst_53 = arith.constant 5.000000e-01 : f32
    %134 = vector.broadcast %cst_53 : f32 to vector<32x128xf32>
    %135 = arith.mulf %134, %133 : vector<32x128xf32>
    %136 = math.tanh %135 : vector<32x128xf32>
    %cst_54 = arith.constant 5.000000e-01 : f32
    %137 = vector.broadcast %cst_54 : f32 to vector<32x128xf32>
    %138 = arith.mulf %137, %136 : vector<32x128xf32>
    %cst_55 = arith.constant 5.000000e-01 : f32
    %139 = vector.broadcast %cst_55 : f32 to vector<32x128xf32>
    %140 = arith.addf %138, %139 : vector<32x128xf32>
    %141 = arith.mulf %130, %109 : vector<32x128xf32>
    %142 = arith.mulf %122, %132 : vector<32x128xf32>
    %143 = arith.addf %141, %142 : vector<32x128xf32>
    %144 = math.tanh %143 : vector<32x128xf32>
    %145 = arith.mulf %140, %144 : vector<32x128xf32>
    %c512 = arith.constant 512 : index
    %c0_56 = arith.constant 0 : index
    %146 = vector.load %arg10[%c512, %c0_56] : memref<1024x128xf32, #tpu.memory_space<vmem>>, vector<128x128xf32>
    %cst_57 = arith.constant dense<0.000000e+00> : vector<128x128xf32>
    %147 = tpu.matmul %7, %145, %cst_57 {dimension_numbers = #tpu.dot_dimension_numbers<[1], [0], [0], [1], [0, 0, 1, 1], [], []>} : vector<128x32xf32>, vector<32x128xf32>, vector<128x128xf32> -> vector<128x128xf32>
    %148 = arith.addf %146, %147 : vector<128x128xf32>
    %149 = vector.extract_strided_slice %148 {offsets = [0, 0], sizes = [32, 128], strides = [1, 1]} : vector<128x128xf32> to vector<32x128xf32>
    %cst_58 = arith.constant 5.000000e-01 : f32
    %150 = vector.broadcast %cst_58 : f32 to vector<32x128xf32>
    %151 = arith.mulf %150, %149 : vector<32x128xf32>
    %152 = math.tanh %151 : vector<32x128xf32>
    %cst_59 = arith.constant 5.000000e-01 : f32
    %153 = vector.broadcast %cst_59 : f32 to vector<32x128xf32>
    %154 = arith.mulf %153, %152 : vector<32x128xf32>
    %cst_60 = arith.constant 5.000000e-01 : f32
    %155 = vector.broadcast %cst_60 : f32 to vector<32x128xf32>
    %156 = arith.addf %154, %155 : vector<32x128xf32>
    %157 = vector.extract_strided_slice %148 {offsets = [32, 0], sizes = [32, 128], strides = [1, 1]} : vector<128x128xf32> to vector<32x128xf32>
    %cst_61 = arith.constant 5.000000e-01 : f32
    %158 = vector.broadcast %cst_61 : f32 to vector<32x128xf32>
    %159 = arith.mulf %158, %157 : vector<32x128xf32>
    %160 = math.tanh %159 : vector<32x128xf32>
    %cst_62 = arith.constant 5.000000e-01 : f32
    %161 = vector.broadcast %cst_62 : f32 to vector<32x128xf32>
    %162 = arith.mulf %161, %160 : vector<32x128xf32>
    %cst_63 = arith.constant 5.000000e-01 : f32
    %163 = vector.broadcast %cst_63 : f32 to vector<32x128xf32>
    %164 = arith.addf %162, %163 : vector<32x128xf32>
    %165 = vector.extract_strided_slice %148 {offsets = [64, 0], sizes = [32, 128], strides = [1, 1]} : vector<128x128xf32> to vector<32x128xf32>
    %166 = math.tanh %165 : vector<32x128xf32>
    %167 = vector.extract_strided_slice %148 {offsets = [96, 0], sizes = [32, 128], strides = [1, 1]} : vector<128x128xf32> to vector<32x128xf32>
    %cst_64 = arith.constant 5.000000e-01 : f32
    %168 = vector.broadcast %cst_64 : f32 to vector<32x128xf32>
    %169 = arith.mulf %168, %167 : vector<32x128xf32>
    %170 = math.tanh %169 : vector<32x128xf32>
    %cst_65 = arith.constant 5.000000e-01 : f32
    %171 = vector.broadcast %cst_65 : f32 to vector<32x128xf32>
    %172 = arith.mulf %171, %170 : vector<32x128xf32>
    %cst_66 = arith.constant 5.000000e-01 : f32
    %173 = vector.broadcast %cst_66 : f32 to vector<32x128xf32>
    %174 = arith.addf %172, %173 : vector<32x128xf32>
    %175 = arith.mulf %164, %143 : vector<32x128xf32>
    %176 = arith.mulf %156, %166 : vector<32x128xf32>
    %177 = arith.addf %175, %176 : vector<32x128xf32>
    %178 = math.tanh %177 : vector<32x128xf32>
    %179 = arith.mulf %174, %178 : vector<32x128xf32>
    %c640 = arith.constant 640 : index
    %c0_67 = arith.constant 0 : index
    %180 = vector.load %arg10[%c640, %c0_67] : memref<1024x128xf32, #tpu.memory_space<vmem>>, vector<128x128xf32>
    %cst_68 = arith.constant dense<0.000000e+00> : vector<128x128xf32>
    %181 = tpu.matmul %7, %179, %cst_68 {dimension_numbers = #tpu.dot_dimension_numbers<[1], [0], [0], [1], [0, 0, 1, 1], [], []>} : vector<128x32xf32>, vector<32x128xf32>, vector<128x128xf32> -> vector<128x128xf32>
    %182 = arith.addf %180, %181 : vector<128x128xf32>
    %183 = vector.extract_strided_slice %182 {offsets = [0, 0], sizes = [32, 128], strides = [1, 1]} : vector<128x128xf32> to vector<32x128xf32>
    %cst_69 = arith.constant 5.000000e-01 : f32
    %184 = vector.broadcast %cst_69 : f32 to vector<32x128xf32>
    %185 = arith.mulf %184, %183 : vector<32x128xf32>
    %186 = math.tanh %185 : vector<32x128xf32>
    %cst_70 = arith.constant 5.000000e-01 : f32
    %187 = vector.broadcast %cst_70 : f32 to vector<32x128xf32>
    %188 = arith.mulf %187, %186 : vector<32x128xf32>
    %cst_71 = arith.constant 5.000000e-01 : f32
    %189 = vector.broadcast %cst_71 : f32 to vector<32x128xf32>
    %190 = arith.addf %188, %189 : vector<32x128xf32>
    %191 = vector.extract_strided_slice %182 {offsets = [32, 0], sizes = [32, 128], strides = [1, 1]} : vector<128x128xf32> to vector<32x128xf32>
    %cst_72 = arith.constant 5.000000e-01 : f32
    %192 = vector.broadcast %cst_72 : f32 to vector<32x128xf32>
    %193 = arith.mulf %192, %191 : vector<32x128xf32>
    %194 = math.tanh %193 : vector<32x128xf32>
    %cst_73 = arith.constant 5.000000e-01 : f32
    %195 = vector.broadcast %cst_73 : f32 to vector<32x128xf32>
    %196 = arith.mulf %195, %194 : vector<32x128xf32>
    %cst_74 = arith.constant 5.000000e-01 : f32
    %197 = vector.broadcast %cst_74 : f32 to vector<32x128xf32>
    %198 = arith.addf %196, %197 : vector<32x128xf32>
    %199 = vector.extract_strided_slice %182 {offsets = [64, 0], sizes = [32, 128], strides = [1, 1]} : vector<128x128xf32> to vector<32x128xf32>
    %200 = math.tanh %199 : vector<32x128xf32>
    %201 = vector.extract_strided_slice %182 {offsets = [96, 0], sizes = [32, 128], strides = [1, 1]} : vector<128x128xf32> to vector<32x128xf32>
    %cst_75 = arith.constant 5.000000e-01 : f32
    %202 = vector.broadcast %cst_75 : f32 to vector<32x128xf32>
    %203 = arith.mulf %202, %201 : vector<32x128xf32>
    %204 = math.tanh %203 : vector<32x128xf32>
    %cst_76 = arith.constant 5.000000e-01 : f32
    %205 = vector.broadcast %cst_76 : f32 to vector<32x128xf32>
    %206 = arith.mulf %205, %204 : vector<32x128xf32>
    %cst_77 = arith.constant 5.000000e-01 : f32
    %207 = vector.broadcast %cst_77 : f32 to vector<32x128xf32>
    %208 = arith.addf %206, %207 : vector<32x128xf32>
    %209 = arith.mulf %198, %177 : vector<32x128xf32>
    %210 = arith.mulf %190, %200 : vector<32x128xf32>
    %211 = arith.addf %209, %210 : vector<32x128xf32>
    %212 = math.tanh %211 : vector<32x128xf32>
    %213 = arith.mulf %208, %212 : vector<32x128xf32>
    %c768 = arith.constant 768 : index
    %c0_78 = arith.constant 0 : index
    %214 = vector.load %arg10[%c768, %c0_78] : memref<1024x128xf32, #tpu.memory_space<vmem>>, vector<128x128xf32>
    %cst_79 = arith.constant dense<0.000000e+00> : vector<128x128xf32>
    %215 = tpu.matmul %7, %213, %cst_79 {dimension_numbers = #tpu.dot_dimension_numbers<[1], [0], [0], [1], [0, 0, 1, 1], [], []>} : vector<128x32xf32>, vector<32x128xf32>, vector<128x128xf32> -> vector<128x128xf32>
    %216 = arith.addf %214, %215 : vector<128x128xf32>
    %217 = vector.extract_strided_slice %216 {offsets = [0, 0], sizes = [32, 128], strides = [1, 1]} : vector<128x128xf32> to vector<32x128xf32>
    %cst_80 = arith.constant 5.000000e-01 : f32
    %218 = vector.broadcast %cst_80 : f32 to vector<32x128xf32>
    %219 = arith.mulf %218, %217 : vector<32x128xf32>
    %220 = math.tanh %219 : vector<32x128xf32>
    %cst_81 = arith.constant 5.000000e-01 : f32
    %221 = vector.broadcast %cst_81 : f32 to vector<32x128xf32>
    %222 = arith.mulf %221, %220 : vector<32x128xf32>
    %cst_82 = arith.constant 5.000000e-01 : f32
    %223 = vector.broadcast %cst_82 : f32 to vector<32x128xf32>
    %224 = arith.addf %222, %223 : vector<32x128xf32>
    %225 = vector.extract_strided_slice %216 {offsets = [32, 0], sizes = [32, 128], strides = [1, 1]} : vector<128x128xf32> to vector<32x128xf32>
    %cst_83 = arith.constant 5.000000e-01 : f32
    %226 = vector.broadcast %cst_83 : f32 to vector<32x128xf32>
    %227 = arith.mulf %226, %225 : vector<32x128xf32>
    %228 = math.tanh %227 : vector<32x128xf32>
    %cst_84 = arith.constant 5.000000e-01 : f32
    %229 = vector.broadcast %cst_84 : f32 to vector<32x128xf32>
    %230 = arith.mulf %229, %228 : vector<32x128xf32>
    %cst_85 = arith.constant 5.000000e-01 : f32
    %231 = vector.broadcast %cst_85 : f32 to vector<32x128xf32>
    %232 = arith.addf %230, %231 : vector<32x128xf32>
    %233 = vector.extract_strided_slice %216 {offsets = [64, 0], sizes = [32, 128], strides = [1, 1]} : vector<128x128xf32> to vector<32x128xf32>
    %234 = math.tanh %233 : vector<32x128xf32>
    %235 = vector.extract_strided_slice %216 {offsets = [96, 0], sizes = [32, 128], strides = [1, 1]} : vector<128x128xf32> to vector<32x128xf32>
    %cst_86 = arith.constant 5.000000e-01 : f32
    %236 = vector.broadcast %cst_86 : f32 to vector<32x128xf32>
    %237 = arith.mulf %236, %235 : vector<32x128xf32>
    %238 = math.tanh %237 : vector<32x128xf32>
    %cst_87 = arith.constant 5.000000e-01 : f32
    %239 = vector.broadcast %cst_87 : f32 to vector<32x128xf32>
    %240 = arith.mulf %239, %238 : vector<32x128xf32>
    %cst_88 = arith.constant 5.000000e-01 : f32
    %241 = vector.broadcast %cst_88 : f32 to vector<32x128xf32>
    %242 = arith.addf %240, %241 : vector<32x128xf32>
    %243 = arith.mulf %232, %211 : vector<32x128xf32>
    %244 = arith.mulf %224, %234 : vector<32x128xf32>
    %245 = arith.addf %243, %244 : vector<32x128xf32>
    %246 = math.tanh %245 : vector<32x128xf32>
    %247 = arith.mulf %242, %246 : vector<32x128xf32>
    %c896 = arith.constant 896 : index
    %c0_89 = arith.constant 0 : index
    %248 = vector.load %arg10[%c896, %c0_89] : memref<1024x128xf32, #tpu.memory_space<vmem>>, vector<128x128xf32>
    %cst_90 = arith.constant dense<0.000000e+00> : vector<128x128xf32>
    %249 = tpu.matmul %7, %247, %cst_90 {dimension_numbers = #tpu.dot_dimension_numbers<[1], [0], [0], [1], [0, 0, 1, 1], [], []>} : vector<128x32xf32>, vector<32x128xf32>, vector<128x128xf32> -> vector<128x128xf32>
    %250 = arith.addf %248, %249 : vector<128x128xf32>
    %251 = vector.extract_strided_slice %250 {offsets = [0, 0], sizes = [32, 128], strides = [1, 1]} : vector<128x128xf32> to vector<32x128xf32>
    %cst_91 = arith.constant 5.000000e-01 : f32
    %252 = vector.broadcast %cst_91 : f32 to vector<32x128xf32>
    %253 = arith.mulf %252, %251 : vector<32x128xf32>
    %254 = math.tanh %253 : vector<32x128xf32>
    %cst_92 = arith.constant 5.000000e-01 : f32
    %255 = vector.broadcast %cst_92 : f32 to vector<32x128xf32>
    %256 = arith.mulf %255, %254 : vector<32x128xf32>
    %cst_93 = arith.constant 5.000000e-01 : f32
    %257 = vector.broadcast %cst_93 : f32 to vector<32x128xf32>
    %258 = arith.addf %256, %257 : vector<32x128xf32>
    %259 = vector.extract_strided_slice %250 {offsets = [32, 0], sizes = [32, 128], strides = [1, 1]} : vector<128x128xf32> to vector<32x128xf32>
    %cst_94 = arith.constant 5.000000e-01 : f32
    %260 = vector.broadcast %cst_94 : f32 to vector<32x128xf32>
    %261 = arith.mulf %260, %259 : vector<32x128xf32>
    %262 = math.tanh %261 : vector<32x128xf32>
    %cst_95 = arith.constant 5.000000e-01 : f32
    %263 = vector.broadcast %cst_95 : f32 to vector<32x128xf32>
    %264 = arith.mulf %263, %262 : vector<32x128xf32>
    %cst_96 = arith.constant 5.000000e-01 : f32
    %265 = vector.broadcast %cst_96 : f32 to vector<32x128xf32>
    %266 = arith.addf %264, %265 : vector<32x128xf32>
    %267 = vector.extract_strided_slice %250 {offsets = [64, 0], sizes = [32, 128], strides = [1, 1]} : vector<128x128xf32> to vector<32x128xf32>
    %268 = math.tanh %267 : vector<32x128xf32>
    %269 = vector.extract_strided_slice %250 {offsets = [96, 0], sizes = [32, 128], strides = [1, 1]} : vector<128x128xf32> to vector<32x128xf32>
    %cst_97 = arith.constant 5.000000e-01 : f32
    %270 = vector.broadcast %cst_97 : f32 to vector<32x128xf32>
    %271 = arith.mulf %270, %269 : vector<32x128xf32>
    %272 = math.tanh %271 : vector<32x128xf32>
    %cst_98 = arith.constant 5.000000e-01 : f32
    %273 = vector.broadcast %cst_98 : f32 to vector<32x128xf32>
    %274 = arith.mulf %273, %272 : vector<32x128xf32>
    %cst_99 = arith.constant 5.000000e-01 : f32
    %275 = vector.broadcast %cst_99 : f32 to vector<32x128xf32>
    %276 = arith.addf %274, %275 : vector<32x128xf32>
    %277 = arith.mulf %266, %245 : vector<32x128xf32>
    %278 = arith.mulf %258, %268 : vector<32x128xf32>
    %279 = arith.addf %277, %278 : vector<32x128xf32>
    %280 = math.tanh %279 : vector<32x128xf32>
    %281 = arith.mulf %276, %280 : vector<32x128xf32>
    %c0_100 = arith.constant 0 : index
    %c0_101 = arith.constant 0 : index
    %282 = vector.load %arg5[%c0_100, %c0_101] : memref<32x32xf32, #tpu.memory_space<vmem>>, vector<32x32xf32>
    %cst_102 = arith.constant dense<0.000000e+00> : vector<32x128xf32>
    %283 = tpu.matmul %282, %281, %cst_102 {dimension_numbers = #tpu.dot_dimension_numbers<[1], [0], [0], [1], [0, 0, 1, 1], [], []>} : vector<32x32xf32>, vector<32x128xf32>, vector<32x128xf32> -> vector<32x128xf32>
    %c0_103 = arith.constant 0 : index
    %c0_104 = arith.constant 0 : index
    %284 = vector.load %arg6[%c0_103, %c0_104] : memref<32x1xf32, #tpu.memory_space<vmem>>, vector<32x1xf32>
    %285 = vector.broadcast %284 : vector<32x1xf32> to vector<32x128xf32>
    %286 = arith.addf %283, %285 : vector<32x128xf32>
    %cst_105 = arith.constant 0.000000e+00 : f32
    %287 = vector.broadcast %cst_105 : f32 to vector<32x128xf32>
    %288 = arith.cmpf oge, %286, %287 : vector<32x128xf32>
    %cst_106 = arith.constant 2.000000e-01 : f32
    %289 = vector.broadcast %cst_106 : f32 to vector<32x128xf32>
    %290 = arith.mulf %289, %286 : vector<32x128xf32>
    %291 = arith.select %288, %286, %290 : vector<32x128xi1>, vector<32x128xf32>
    %c0_107 = arith.constant 0 : index
    %c0_108 = arith.constant 0 : index
    %292 = vector.load %arg7[%c0_107, %c0_108] : memref<1x32xf32, #tpu.memory_space<vmem>>, vector<1x32xf32>
    %cst_109 = arith.constant dense<0.000000e+00> : vector<1x128xf32>
    %293 = tpu.matmul %292, %291, %cst_109 {dimension_numbers = #tpu.dot_dimension_numbers<[1], [0], [0], [1], [0, 0, 1, 1], [], []>} : vector<1x32xf32>, vector<32x128xf32>, vector<1x128xf32> -> vector<1x128xf32>
    %c0_110 = arith.constant 0 : index
    %c0_111 = arith.constant 0 : index
    %294 = vector.load %arg8[%c0_110, %c0_111] : memref<1x1xf32, #tpu.memory_space<vmem>>, vector<1x1xf32>
    %295 = vector.broadcast %294 : vector<1x1xf32> to vector<1x128xf32>
    %296 = arith.addf %293, %295 : vector<1x128xf32>
    %cst_112 = arith.constant 0.000000e+00 : f32
    %297 = vector.broadcast %cst_112 : f32 to vector<1x128xf32>
    %298 = arith.cmpf oge, %296, %297 : vector<1x128xf32>
    %cst_113 = arith.constant 2.000000e-01 : f32
    %299 = vector.broadcast %cst_113 : f32 to vector<1x128xf32>
    %300 = arith.mulf %299, %296 : vector<1x128xf32>
    %301 = arith.select %298, %296, %300 : vector<1x128xi1>, vector<1x128xf32>
    %c0_114 = arith.constant 0 : index
    %c0_115 = arith.constant 0 : index
    %302 = vector.load %arg9[%c0_114, %c0_115] : memref<1x128xf32, #tpu.memory_space<vmem>>, vector<1x128xf32>
    tpu.vector_store %arg9[%c0_114, %c0_115], %301 {strides = array<i32>} : memref<1x128xf32, #tpu.memory_space<vmem>>, vector<1x128xf32>,
    return
  }
  func.func @transform_0(%arg0: i32) -> (i32, i32) {
    %c0_i32 = arith.constant 0 : i32
    %c0_i32_0 = arith.constant 0 : i32
    return %c0_i32, %arg0 : i32, i32
  }
  func.func @transform_1(%arg0: i32) -> (i32, i32) {
    %c0_i32 = arith.constant 0 : i32
    %c0_i32_0 = arith.constant 0 : i32
    %c0_i32_1 = arith.constant 0 : i32
    return %c0_i32, %c0_i32_0 : i32, i32
  }
  func.func @transform_2(%arg0: i32) -> (i32, i32) {
    %c0_i32 = arith.constant 0 : i32
    %c0_i32_0 = arith.constant 0 : i32
    %c0_i32_1 = arith.constant 0 : i32
    return %c0_i32, %c0_i32_0 : i32, i32
  }
  func.func @transform_3(%arg0: i32) -> (i32, i32) {
    %c0_i32 = arith.constant 0 : i32
    %c0_i32_0 = arith.constant 0 : i32
    %c0_i32_1 = arith.constant 0 : i32
    return %c0_i32, %c0_i32_0 : i32, i32
  }
  func.func @transform_4(%arg0: i32) -> (i32, i32) {
    %c0_i32 = arith.constant 0 : i32
    %c0_i32_0 = arith.constant 0 : i32
    %c0_i32_1 = arith.constant 0 : i32
    return %c0_i32, %c0_i32_0 : i32, i32
  }
  func.func @transform_5(%arg0: i32) -> (i32, i32) {
    %c0_i32 = arith.constant 0 : i32
    %c0_i32_0 = arith.constant 0 : i32
    %c0_i32_1 = arith.constant 0 : i32
    return %c0_i32, %c0_i32_0 : i32, i32
  }
  func.func @transform_6(%arg0: i32) -> (i32, i32) {
    %c0_i32 = arith.constant 0 : i32
    %c0_i32_0 = arith.constant 0 : i32
    %c0_i32_1 = arith.constant 0 : i32
    return %c0_i32, %c0_i32_0 : i32, i32
  }
  func.func @transform_7(%arg0: i32) -> (i32, i32) {
    %c0_i32 = arith.constant 0 : i32
    %c0_i32_0 = arith.constant 0 : i32
    %c0_i32_1 = arith.constant 0 : i32
    return %c0_i32, %c0_i32_0 : i32, i32
  }
  func.func @transform_8(%arg0: i32) -> (i32, i32) {
    %c0_i32 = arith.constant 0 : i32
    %c0_i32_0 = arith.constant 0 : i32
    return %c0_i32, %arg0 : i32, i32
  }
}

</mosaic_0001>

<llo_original>
// kernel: mul.4
$region0: #{mul.4}
  %s0 = inlined_call_operand.vmem [shape: f32[4,32,4], index: 0, kind: input, shape index: {}]
  %s1 = inlined_call_operand.vmem [shape: f32[128,4], index: 1, kind: output, shape index: {}]
  $region1: #{mul.4} parent=0
    #allocation0 [shape = 'u8[4096]{0}', space=vmem, size = 0x1000, scoped, tag = 'scoped mem for output reshape']
    #allocation1 [shape = 'u8[16384]{0}', space=vmem, size = 0x4000, scoped, tag = 'scoped mem for input reshape']
    %s3 = sshll.u32 1, 4
    %s4 = ssub.s32 %s3, 1
    %s5 = smul.addr 4, 3
    %s6 = scalar_lea.vmem %s0, %s5
    %v7 = vld [vmem:[%s6] sm:%s4]
    %s8 = scalar_lea.vmem [#allocation1], 24
    %9 = vst [vmem:[%s8] sm:%s4] %v7
    %s10 = smul.addr 4, 2
    %s11 = scalar_lea.vmem %s0, %s10
    %v12 = vld [vmem:[%s11] sm:%s4]
    %s13 = scalar_lea.vmem [#allocation1], 16
    %14 = vst [vmem:[%s13] sm:%s4] %v12
    %s15 = scalar_lea.vmem %s0, 4
    %v16 = vld [vmem:[%s15] sm:%s4]
    %s17 = scalar_lea.vmem [#allocation1], 8
    %18 = vst [vmem:[%s17] sm:%s4] %v16
    %v19 = vld [vmem:[%s0] sm:%s4]
    %20 = vst [vmem:[#allocation1] sm:%s4] %v19
    %v21 = vld [vmem:[#allocation1] ss:$8 sm:$0xf]
    %vm22 = vcmask 261120
    %23 = vst.msk [vmem:[#allocation0] sm:$0xf] %vm22, %v21
    %s24 = scalar_lea.vmem [#allocation1], 3
    %v25 = vld [vmem:[%s24] ss:$8 sm:$0xf]
    %26 = vrot.lane.b32.xlu0 %v25, 96
    %v27 = vpop.permute.xlu0 %26
    %vm28 = vcmask 1048320
    %29 = vst.msk [vmem:[#allocation0] sm:$0xf] %vm28, %v27
    %s30 = scalar_lea.vmem [#allocation1], 2
    %v31 = vld [vmem:[%s30] ss:$8 sm:$0xf]
    %32 = vrot.lane.b32.xlu0 %v31, 64
    %v33 = vpop.permute.xlu0 %32
    %vm34 = vcmask 785920
    %35 = vst.msk [vmem:[#allocation0] sm:$0xf] %vm34, %v33
    %s36 = scalar_lea.vmem [#allocation1], 1
    %v37 = vld [vmem:[%s36] ss:$8 sm:$0xf]
    %38 = vrot.lane.b32.xlu0 %v37, 32
    %v39 = vpop.permute.xlu0 %38
    %vm40 = vcmask 523520
    %41 = vst.msk [vmem:[#allocation0] sm:$0xf] %vm40, %v39
    %s43 = sshll.u32 1, 4
    %s44 = ssub.s32 %s43, 1
    %v46 = vld [vmem:[#allocation0] sm:%s44]
    %s47 = sshll.u32 1, 4
    %s48 = ssub.s32 %s47, 1
    %49 = vst [vmem:[%s1] sm:%s48] %v46

// kernel: lm_forward.1
$region0: #{lm_forward.1}
  #allocation0 [shape = 'u32[]', space=smem, size = 0x4, offset = 0x4, fixed_abs, tag = 'smem constant byte address 0x4 - core index']
  #allocation1 [shape = 'u32[144,128]{1,0:T(1,128)}', space=vmem, size = 0x12000, scoped, tag = 'internal scratch']
  #allocation2 [shape = 'f32[1024,128]{1,0:T(8,128)}', space=vmem, size = 0x80000, scoped, tag = 'scratch operand']
  #allocation3 [shape = 'f32[1,1]{1,0:T(1,128)S(1)}', space=vmem, size = 0x200, scoped, tag = 'scoped memory for lm_forward.1']
  %s0 = inlined_call_operand.vmem [shape: f32[32,128], index: 0, kind: input, shape index: {}]
  %s1 = inlined_call_operand.vmem [shape: f32[1024,32], index: 1, kind: input, shape index: {}]
  %s2 = inlined_call_operand.vmem [shape: f32[1024,1], index: 2, kind: input, shape index: {}]
  %s3 = inlined_call_operand.vmem [shape: f32[128,32], index: 3, kind: input, shape index: {}]
  %s4 = inlined_call_operand.vmem [shape: f32[32,32], index: 4, kind: input, shape index: {}]
  %s5 = inlined_call_operand.vmem [shape: f32[32,1], index: 5, kind: input, shape index: {}]
  %s6 = inlined_call_operand.vmem [shape: f32[1,32], index: 6, kind: input, shape index: {}]
  %s7 = inlined_call_operand.<no memory space> [shape: f32[1,1], index: 7, kind: input, shape index: {}]
  %s8 = inlined_call_operand.vmem [shape: f32[1,128], index: 8, kind: output, shape index: {}]
  %s9 = sld [smem:[#allocation0]]
  $region42: #{lm_forward.1} parent=0
    _
  %s11 = ssub.s32 1, %s9
  %s12 = scalar_select 0, %s11, %s9
  %v13 = vstv %s7
  %14 = vst [vmem:[#allocation3] sm:$0x1] %v13
  // Predicated region
  $region2: #{lm_forward.1} parent=0 // pred_check
    _
  $region3: #{lm_forward.1} parent=0 // pred_check_branch
    %16 = sbr.rel (0) target = $region5
  $region4: #{lm_forward.1} parent=0 // pred_region
    _
  $region5: #{lm_forward.1} parent=0 // pred_fallthru
    _
  // Predicated region
  $region6: #{lm_forward.1} parent=0 // pred_check
    _
  $region7: #{lm_forward.1} parent=0 // pred_check_branch
    %18 = sbr.rel (0) target = $region9
  $region8: #{lm_forward.1} parent=0 // pred_region
    _
  $region9: #{lm_forward.1} parent=0 // pred_fallthru
    _
  // Predicated region
  $region10: #{lm_forward.1} parent=0 // pred_check
    _
  $region11: #{lm_forward.1} parent=0 // pred_check_branch
    %20 = sbr.rel (0) target = $region13
  $region12: #{lm_forward.1} parent=0 // pred_region
    _
  $region13: #{lm_forward.1} parent=0 // pred_fallthru
    _
  // Predicated region
  $region14: #{lm_forward.1} parent=0 // pred_check
    _
  $region15: #{lm_forward.1} parent=0 // pred_check_branch
    %22 = sbr.rel (0) target = $region17
  $region16: #{lm_forward.1} parent=0 // pred_region
    _
  $region17: #{lm_forward.1} parent=0 // pred_fallthru
    _
  // Predicated region
  $region18: #{lm_forward.1} parent=0 // pred_check
    _
  $region19: #{lm_forward.1} parent=0 // pred_check_branch
    %24 = sbr.rel (0) target = $region21
  $region20: #{lm_forward.1} parent=0 // pred_region
    _
  $region21: #{lm_forward.1} parent=0 // pred_fallthru
    _
  // Predicated region
  $region22: #{lm_forward.1} parent=0 // pred_check
    _
  $region23: #{lm_forward.1} parent=0 // pred_check_branch
    %26 = sbr.rel (0) target = $region25
  $region24: #{lm_forward.1} parent=0 // pred_region
    _
  $region25: #{lm_forward.1} parent=0 // pred_fallthru
    _
  // Predicated region
  $region26: #{lm_forward.1} parent=0 // pred_check
    _
  $region27: #{lm_forward.1} parent=0 // pred_check_branch
    %28 = sbr.rel (0) target = $region29
  $region28: #{lm_forward.1} parent=0 // pred_region
    _
  $region29: #{lm_forward.1} parent=0 // pred_fallthru
    _
  // Predicated region
  $region30: #{lm_forward.1} parent=0 // pred_check
    _
  $region31: #{lm_forward.1} parent=0 // pred_check_branch
    %30 = sbr.rel (0) target = $region33
  $region32: #{lm_forward.1} parent=0 // pred_region
    _
  $region33: #{lm_forward.1} parent=0 // pred_fallthru
    _
  %v31 = vld [vmem:[%s1] sm:$0xff]
  %v32 = vld [vmem:[%s1 + $0x8] sm:$0xff]
  %v33 = vld [vmem:[%s1 + $0x10] sm:$0xff]
  %v34 = vld [vmem:[%s1 + $0x18] sm:$0xff]
  %v35 = vld [vmem:[%s1 + $0x20] sm:$0xff]
  %v36 = vld [vmem:[%s1 + $0x28] sm:$0xff]
  %v37 = vld [vmem:[%s1 + $0x30] sm:$0xff]
  %v38 = vld [vmem:[%s1 + $0x38] sm:$0xff]
  %v39 = vld [vmem:[%s1 + $0x40] sm:$0xff]
  %v40 = vld [vmem:[%s1 + $0x48] sm:$0xff]
  %v41 = vld [vmem:[%s1 + $0x50] sm:$0xff]
  %v42 = vld [vmem:[%s1 + $0x58] sm:$0xff]
  %v43 = vld [vmem:[%s1 + $0x60] sm:$0xff]
  %v44 = vld [vmem:[%s1 + $0x68] sm:$0xff]
  %v45 = vld [vmem:[%s1 + $0x70] sm:$0xff]
  %v46 = vld [vmem:[%s1 + $0x78] sm:$0xff]
  %v47 = vld [vmem:[%s1 + $0x80] sm:$0xff]
  %v48 = vld [vmem:[%s1 + $0x88] sm:$0xff]
  %v49 = vld [vmem:[%s1 + $0x90] sm:$0xff]
  %v50 = vld [vmem:[%s1 + $0x98] sm:$0xff]
  %v51 = vld [vmem:[%s1 + $0xa0] sm:$0xff]
  %v52 = vld [vmem:[%s1 + $0xa8] sm:$0xff]
  %v53 = vld [vmem:[%s1 + $0xb0] sm:$0xff]
  %v54 = vld [vmem:[%s1 + $0xb8] sm:$0xff]
  %v55 = vld [vmem:[%s1 + $0xc0] sm:$0xff]
  %v56 = vld [vmem:[%s1 + $0xc8] sm:$0xff]
  %v57 = vld [vmem:[%s1 + $0xd0] sm:$0xff]
  %v58 = vld [vmem:[%s1 + $0xd8] sm:$0xff]
  %v59 = vld [vmem:[%s1 + $0xe0] sm:$0xff]
  %v60 = vld [vmem:[%s1 + $0xe8] sm:$0xff]
  %v61 = vld [vmem:[%s1 + $0xf0] sm:$0xff]
  %v62 = vld [vmem:[%s1 + $0xf8] sm:$0xff]
  %v63 = vld [vmem:[%s1 + $0x100] sm:$0xff]
  %v64 = vld [vmem:[%s1 + $0x108] sm:$0xff]
  %v65 = vld [vmem:[%s1 + $0x110] sm:$0xff]
  %v66 = vld [vmem:[%s1 + $0x118] sm:$0xff]
  %v67 = vld [vmem:[%s1 + $0x120] sm:$0xff]
  %v68 = vld [vmem:[%s1 + $0x128] sm:$0xff]
  %v69 = vld [vmem:[%s1 + $0x130] sm:$0xff]
  %v70 = vld [vmem:[%s1 + $0x138] sm:$0xff]
  %v71 = vld [vmem:[%s1 + $0x140] sm:$0xff]
  %v72 = vld [vmem:[%s1 + $0x148] sm:$0xff]
  %v73 = vld [vmem:[%s1 + $0x150] sm:$0xff]
  %v74 = vld [vmem:[%s1 + $0x158] sm:$0xff]
  %v75 = vld [vmem:[%s1 + $0x160] sm:$0xff]
  %v76 = vld [vmem:[%s1 + $0x168] sm:$0xff]
  %v77 = vld [vmem:[%s1 + $0x170] sm:$0xff]
  %v78 = vld [vmem:[%s1 + $0x178] sm:$0xff]
  %v79 = vld [vmem:[%s1 + $0x180] sm:$0xff]
  %v80 = vld [vmem:[%s1 + $0x188] sm:$0xff]
  %v81 = vld [vmem:[%s1 + $0x190] sm:$0xff]
  %v82 = vld [vmem:[%s1 + $0x198] sm:$0xff]
  %v83 = vld [vmem:[%s1 + $0x1a0] sm:$0xff]
  %v84 = vld [vmem:[%s1 + $0x1a8] sm:$0xff]
  %v85 = vld [vmem:[%s1 + $0x1b0] sm:$0xff]
  %v86 = vld [vmem:[%s1 + $0x1b8] sm:$0xff]
  %v87 = vld [vmem:[%s1 + $0x1c0] sm:$0xff]
  %v88 = vld [vmem:[%s1 + $0x1c8] sm:$0xff]
  %v89 = vld [vmem:[%s1 + $0x1d0] sm:$0xff]
  %v90 = vld [vmem:[%s1 + $0x1d8] sm:$0xff]
  %v91 = vld [vmem:[%s1 + $0x1e0] sm:$0xff]
  %v92 = vld [vmem:[%s1 + $0x1e8] sm:$0xff]
  %v93 = vld [vmem:[%s1 + $0x1f0] sm:$0xff]
  %v94 = vld [vmem:[%s1 + $0x1f8] sm:$0xff]
  %v95 = vld [vmem:[%s1 + $0x200] sm:$0xff]
  %v96 = vld [vmem:[%s1 + $0x208] sm:$0xff]
  %v97 = vld [vmem:[%s1 + $0x210] sm:$0xff]
  %v98 = vld [vmem:[%s1 + $0x218] sm:$0xff]
  %v99 = vld [vmem:[%s1 + $0x220] sm:$0xff]
  %v100 = vld [vmem:[%s1 + $0x228] sm:$0xff]
  %v101 = vld [vmem:[%s1 + $0x230] sm:$0xff]
  %v102 = vld [vmem:[%s1 + $0x238] sm:$0xff]
  %v103 = vld [vmem:[%s1 + $0x240] sm:$0xff]
  %v104 = vld [vmem:[%s1 + $0x248] sm:$0xff]
  %v105 = vld [vmem:[%s1 + $0x250] sm:$0xff]
  %v106 = vld [vmem:[%s1 + $0x258] sm:$0xff]
  %v107 = vld [vmem:[%s1 + $0x260] sm:$0xff]
  %v108 = vld [vmem:[%s1 + $0x268] sm:$0xff]
  %v109 = vld [vmem:[%s1 + $0x270] sm:$0xff]
  %v110 = vld [vmem:[%s1 + $0x278] sm:$0xff]
  %v111 = vld [vmem:[%s1 + $0x280] sm:$0xff]
  %v112 = vld [vmem:[%s1 + $0x288] sm:$0xff]
  %v113 = vld [vmem:[%s1 + $0x290] sm:$0xff]
  %v114 = vld [vmem:[%s1 + $0x298] sm:$0xff]
  %v115 = vld [vmem:[%s1 + $0x2a0] sm:$0xff]
  %v116 = vld [vmem:[%s1 + $0x2a8] sm:$0xff]
  %v117 = vld [vmem:[%s1 + $0x2b0] sm:$0xff]
  %v118 = vld [vmem:[%s1 + $0x2b8] sm:$0xff]
  %v119 = vld [vmem:[%s1 + $0x2c0] sm:$0xff]
  %v120 = vld [vmem:[%s1 + $0x2c8] sm:$0xff]
  %v121 = vld [vmem:[%s1 + $0x2d0] sm:$0xff]
  %v122 = vld [vmem:[%s1 + $0x2d8] sm:$0xff]
  %v123 = vld [vmem:[%s1 + $0x2e0] sm:$0xff]
  %v124 = vld [vmem:[%s1 + $0x2e8] sm:$0xff]
  %v125 = vld [vmem:[%s1 + $0x2f0] sm:$0xff]
  %v126 = vld [vmem:[%s1 + $0x2f8] sm:$0xff]
  %v127 = vld [vmem:[%s1 + $0x300] sm:$0xff]
  %v128 = vld [vmem:[%s1 + $0x308] sm:$0xff]
  %v129 = vld [vmem:[%s1 + $0x310] sm:$0xff]
  %v130 = vld [vmem:[%s1 + $0x318] sm:$0xff]
  %v131 = vld [vmem:[%s1 + $0x320] sm:$0xff]
  %v132 = vld [vmem:[%s1 + $0x328] sm:$0xff]
  %v133 = vld [vmem:[%s1 + $0x330] sm:$0xff]
  %v134 = vld [vmem:[%s1 + $0x338] sm:$0xff]
  %v135 = vld [vmem:[%s1 + $0x340] sm:$0xff]
  %v136 = vld [vmem:[%s1 + $0x348] sm:$0xff]
  %v137 = vld [vmem:[%s1 + $0x350] sm:$0xff]
  %v138 = vld [vmem:[%s1 + $0x358] sm:$0xff]
  %v139 = vld [vmem:[%s1 + $0x360] sm:$0xff]
  %v140 = vld [vmem:[%s1 + $0x368] sm:$0xff]
  %v141 = vld [vmem:[%s1 + $0x370] sm:$0xff]
  %v142 = vld [vmem:[%s1 + $0x378] sm:$0xff]
  %v143 = vld [vmem:[%s1 + $0x380] sm:$0xff]
  %v144 = vld [vmem:[%s1 + $0x388] sm:$0xff]
  %v145 = vld [vmem:[%s1 + $0x390] sm:$0xff]
  %v146 = vld [vmem:[%s1 + $0x398] sm:$0xff]
  %v147 = vld [vmem:[%s1 + $0x3a0] sm:$0xff]
  %v148 = vld [vmem:[%s1 + $0x3a8] sm:$0xff]
  %v149 = vld [vmem:[%s1 + $0x3b0] sm:$0xff]
  %v150 = vld [vmem:[%s1 + $0x3b8] sm:$0xff]
  %v151 = vld [vmem:[%s1 + $0x3c0] sm:$0xff]
  %v152 = vld [vmem:[%s1 + $0x3c8] sm:$0xff]
  %v153 = vld [vmem:[%s1 + $0x3d0] sm:$0xff]
  %v154 = vld [vmem:[%s1 + $0x3d8] sm:$0xff]
  %v155 = vld [vmem:[%s1 + $0x3e0] sm:$0xff]
  %v156 = vld [vmem:[%s1 + $0x3e8] sm:$0xff]
  %v157 = vld [vmem:[%s1 + $0x3f0] sm:$0xff]
  %v158 = vld [vmem:[%s1 + $0x3f8] sm:$0xff]
  %v159 = vld [vmem:[%s0] sm:$0xff]
  %v160 = vld [vmem:[%s0 + $0x8] sm:$0xff]
  %v161 = vld [vmem:[%s0 + $0x10] sm:$0xff]
  %v162 = vld [vmem:[%s0 + $0x18] sm:$0xff]
  %v163 = vld [vmem:[%s2] sm:$0xff]
  %v164 = vld [vmem:[%s2 + $0x8] sm:$0xff]
  %v165 = vld [vmem:[%s2 + $0x10] sm:$0xff]
  %v166 = vld [vmem:[%s2 + $0x18] sm:$0xff]
  %v167 = vld [vmem:[%s2 + $0x20] sm:$0xff]
  %v168 = vld [vmem:[%s2 + $0x28] sm:$0xff]
  %v169 = vld [vmem:[%s2 + $0x30] sm:$0xff]
  %v170 = vld [vmem:[%s2 + $0x38] sm:$0xff]
  %v171 = vld [vmem:[%s2 + $0x40] sm:$0xff]
  %v172 = vld [vmem:[%s2 + $0x48] sm:$0xff]
  %v173 = vld [vmem:[%s2 + $0x50] sm:$0xff]
  %v174 = vld [vmem:[%s2 + $0x58] sm:$0xff]
  %v175 = vld [vmem:[%s2 + $0x60] sm:$0xff]
  %v176 = vld [vmem:[%s2 + $0x68] sm:$0xff]
  %v177 = vld [vmem:[%s2 + $0x70] sm:$0xff]
  %v178 = vld [vmem:[%s2 + $0x78] sm:$0xff]
  %v179 = vld [vmem:[%s2 + $0x80] sm:$0xff]
  %v180 = vld [vmem:[%s2 + $0x88] sm:$0xff]
  %v181 = vld [vmem:[%s2 + $0x90] sm:$0xff]
  %v182 = vld [vmem:[%s2 + $0x98] sm:$0xff]
  %v183 = vld [vmem:[%s2 + $0xa0] sm:$0xff]
  %v184 = vld [vmem:[%s2 + $0xa8] sm:$0xff]
  %v185 = vld [vmem:[%s2 + $0xb0] sm:$0xff]
  %v186 = vld [vmem:[%s2 + $0xb8] sm:$0xff]
  %v187 = vld [vmem:[%s2 + $0xc0] sm:$0xff]
  %v188 = vld [vmem:[%s2 + $0xc8] sm:$0xff]
  %v189 = vld [vmem:[%s2 + $0xd0] sm:$0xff]
  %v190 = vld [vmem:[%s2 + $0xd8] sm:$0xff]
  %v191 = vld [vmem:[%s2 + $0xe0] sm:$0xff]
  %v192 = vld [vmem:[%s2 + $0xe8] sm:$0xff]
  %v193 = vld [vmem:[%s2 + $0xf0] sm:$0xff]
  %v194 = vld [vmem:[%s2 + $0xf8] sm:$0xff]
  %v195 = vld [vmem:[%s2 + $0x100] sm:$0xff]
  %v196 = vld [vmem:[%s2 + $0x108] sm:$0xff]
  %v197 = vld [vmem:[%s2 + $0x110] sm:$0xff]
  %v198 = vld [vmem:[%s2 + $0x118] sm:$0xff]
  %v199 = vld [vmem:[%s2 + $0x120] sm:$0xff]
  %v200 = vld [vmem:[%s2 + $0x128] sm:$0xff]
  %v201 = vld [vmem:[%s2 + $0x130] sm:$0xff]
  %v202 = vld [vmem:[%s2 + $0x138] sm:$0xff]
  %v203 = vld [vmem:[%s2 + $0x140] sm:$0xff]
  %v204 = vld [vmem:[%s2 + $0x148] sm:$0xff]
  %v205 = vld [vmem:[%s2 + $0x150] sm:$0xff]
  %v206 = vld [vmem:[%s2 + $0x158] sm:$0xff]
  %v207 = vld [vmem:[%s2 + $0x160] sm:$0xff]
  %v208 = vld [vmem:[%s2 + $0x168] sm:$0xff]
  %v209 = vld [vmem:[%s2 + $0x170] sm:$0xff]
  %v210 = vld [vmem:[%s2 + $0x178] sm:$0xff]
  %v211 = vld [vmem:[%s2 + $0x180] sm:$0xff]
  %v212 = vld [vmem:[%s2 + $0x188] sm:$0xff]
  %v213 = vld [vmem:[%s2 + $0x190] sm:$0xff]
  %v214 = vld [vmem:[%s2 + $0x198] sm:$0xff]
  %v215 = vld [vmem:[%s2 + $0x1a0] sm:$0xff]
  %v216 = vld [vmem:[%s2 + $0x1a8] sm:$0xff]
  %v217 = vld [vmem:[%s2 + $0x1b0] sm:$0xff]
  %v218 = vld [vmem:[%s2 + $0x1b8] sm:$0xff]
  %v219 = vld [vmem:[%s2 + $0x1c0] sm:$0xff]
  %v220 = vld [vmem:[%s2 + $0x1c8] sm:$0xff]
  %v221 = vld [vmem:[%s2 + $0x1d0] sm:$0xff]
  %v222 = vld [vmem:[%s2 + $0x1d8] sm:$0xff]
  %v223 = vld [vmem:[%s2 + $0x1e0] sm:$0xff]
  %v224 = vld [vmem:[%s2 + $0x1e8] sm:$0xff]
  %v225 = vld [vmem:[%s2 + $0x1f0] sm:$0xff]
  %v226 = vld [vmem:[%s2 + $0x1f8] sm:$0xff]
  %v227 = vld [vmem:[%s2 + $0x200] sm:$0xff]
  %v228 = vld [vmem:[%s2 + $0x208] sm:$0xff]
  %v229 = vld [vmem:[%s2 + $0x210] sm:$0xff]
  %v230 = vld [vmem:[%s2 + $0x218] sm:$0xff]
  %v231 = vld [vmem:[%s2 + $0x220] sm:$0xff]
  %v232 = vld [vmem:[%s2 + $0x228] sm:$0xff]
  %v233 = vld [vmem:[%s2 + $0x230] sm:$0xff]
  %v234 = vld [vmem:[%s2 + $0x238] sm:$0xff]
  %v235 = vld [vmem:[%s2 + $0x240] sm:$0xff]
  %v236 = vld [vmem:[%s2 + $0x248] sm:$0xff]
  %v237 = vld [vmem:[%s2 + $0x250] sm:$0xff]
  %v238 = vld [vmem:[%s2 + $0x258] sm:$0xff]
  %v239 = vld [vmem:[%s2 + $0x260] sm:$0xff]
  %v240 = vld [vmem:[%s2 + $0x268] sm:$0xff]
  %v241 = vld [vmem:[%s2 + $0x270] sm:$0xff]
  %v242 = vld [vmem:[%s2 + $0x278] sm:$0xff]
  %v243 = vld [vmem:[%s2 + $0x280] sm:$0xff]
  %v244 = vld [vmem:[%s2 + $0x288] sm:$0xff]
  %v245 = vld [vmem:[%s2 + $0x290] sm:$0xff]
  %v246 = vld [vmem:[%s2 + $0x298] sm:$0xff]
  %v247 = vld [vmem:[%s2 + $0x2a0] sm:$0xff]
  %v248 = vld [vmem:[%s2 + $0x2a8] sm:$0xff]
  %v249 = vld [vmem:[%s2 + $0x2b0] sm:$0xff]
  %v250 = vld [vmem:[%s2 + $0x2b8] sm:$0xff]
  %v251 = vld [vmem:[%s2 + $0x2c0] sm:$0xff]
  %v252 = vld [vmem:[%s2 + $0x2c8] sm:$0xff]
  %v253 = vld [vmem:[%s2 + $0x2d0] sm:$0xff]
  %v254 = vld [vmem:[%s2 + $0x2d8] sm:$0xff]
  %v255 = vld [vmem:[%s2 + $0x2e0] sm:$0xff]
  %v256 = vld [vmem:[%s2 + $0x2e8] sm:$0xff]
  %v257 = vld [vmem:[%s2 + $0x2f0] sm:$0xff]
  %v258 = vld [vmem:[%s2 + $0x2f8] sm:$0xff]
  %v259 = vld [vmem:[%s2 + $0x300] sm:$0xff]
  %v260 = vld [vmem:[%s2 + $0x308] sm:$0xff]
  %v261 = vld [vmem:[%s2 + $0x310] sm:$0xff]
  %v262 = vld [vmem:[%s2 + $0x318] sm:$0xff]
  %v263 = vld [vmem:[%s2 + $0x320] sm:$0xff]
  %v264 = vld [vmem:[%s2 + $0x328] sm:$0xff]
  %v265 = vld [vmem:[%s2 + $0x330] sm:$0xff]
  %v266 = vld [vmem:[%s2 + $0x338] sm:$0xff]
  %v267 = vld [vmem:[%s2 + $0x340] sm:$0xff]
  %v268 = vld [vmem:[%s2 + $0x348] sm:$0xff]
  %v269 = vld [vmem:[%s2 + $0x350] sm:$0xff]
  %v270 = vld [vmem:[%s2 + $0x358] sm:$0xff]
  %v271 = vld [vmem:[%s2 + $0x360] sm:$0xff]
  %v272 = vld [vmem:[%s2 + $0x368] sm:$0xff]
  %v273 = vld [vmem:[%s2 + $0x370] sm:$0xff]
  %v274 = vld [vmem:[%s2 + $0x378] sm:$0xff]
  %v275 = vld [vmem:[%s2 + $0x380] sm:$0xff]
  %v276 = vld [vmem:[%s2 + $0x388] sm:$0xff]
  %v277 = vld [vmem:[%s2 + $0x390] sm:$0xff]
  %v278 = vld [vmem:[%s2 + $0x398] sm:$0xff]
  %v279 = vld [vmem:[%s2 + $0x3a0] sm:$0xff]
  %v280 = vld [vmem:[%s2 + $0x3a8] sm:$0xff]
  %v281 = vld [vmem:[%s2 + $0x3b0] sm:$0xff]
  %v282 = vld [vmem:[%s2 + $0x3b8] sm:$0xff]
  %v283 = vld [vmem:[%s2 + $0x3c0] sm:$0xff]
  %v284 = vld [vmem:[%s2 + $0x3c8] sm:$0xff]
  %v285 = vld [vmem:[%s2 + $0x3d0] sm:$0xff]
  %v286 = vld [vmem:[%s2 + $0x3d8] sm:$0xff]
  %v287 = vld [vmem:[%s2 + $0x3e0] sm:$0xff]
  %v288 = vld [vmem:[%s2 + $0x3e8] sm:$0xff]
  %v289 = vld [vmem:[%s2 + $0x3f0] sm:$0xff]
  %v290 = vld [vmem:[%s2 + $0x3f8] sm:$0xff]
  %292 = vset.pattern.permute.xlu0 0
  %293 = vperm.xlu0 %292, %v163
  %v294 = vpop.permute.xlu0 %293
  %297 = vset.pattern.permute.xlu0 0
  %298 = vperm.xlu0 %297, %v164
  %v299 = vpop.permute.xlu0 %298
  %302 = vset.pattern.permute.xlu0 0
  %303 = vperm.xlu0 %302, %v165
  %v304 = vpop.permute.xlu0 %303
  %307 = vset.pattern.permute.xlu0 0
  %308 = vperm.xlu0 %307, %v166
  %v309 = vpop.permute.xlu0 %308
  %312 = vset.pattern.permute.xlu0 0
  %313 = vperm.xlu0 %312, %v167
  %v314 = vpop.permute.xlu0 %313
  %317 = vset.pattern.permute.xlu0 0
  %318 = vperm.xlu0 %317, %v168
  %v319 = vpop.permute.xlu0 %318
  %322 = vset.pattern.permute.xlu0 0
  %323 = vperm.xlu0 %322, %v169
  %v324 = vpop.permute.xlu0 %323
  %327 = vset.pattern.permute.xlu0 0
  %328 = vperm.xlu0 %327, %v170
  %v329 = vpop.permute.xlu0 %328
  %332 = vset.pattern.permute.xlu0 0
  %333 = vperm.xlu0 %332, %v171
  %v334 = vpop.permute.xlu0 %333
  %337 = vset.pattern.permute.xlu0 0
  %338 = vperm.xlu0 %337, %v172
  %v339 = vpop.permute.xlu0 %338
  %342 = vset.pattern.permute.xlu0 0
  %343 = vperm.xlu0 %342, %v173
  %v344 = vpop.permute.xlu0 %343
  %347 = vset.pattern.permute.xlu0 0
  %348 = vperm.xlu0 %347, %v174
  %v349 = vpop.permute.xlu0 %348
  %352 = vset.pattern.permute.xlu0 0
  %353 = vperm.xlu0 %352, %v175
  %v354 = vpop.permute.xlu0 %353
  %357 = vset.pattern.permute.xlu0 0
  %358 = vperm.xlu0 %357, %v176
  %v359 = vpop.permute.xlu0 %358
  %362 = vset.pattern.permute.xlu0 0
  %363 = vperm.xlu0 %362, %v177
  %v364 = vpop.permute.xlu0 %363
  %367 = vset.pattern.permute.xlu0 0
  %368 = vperm.xlu0 %367, %v178
  %v369 = vpop.permute.xlu0 %368
  %372 = vset.pattern.permute.xlu0 0
  %373 = vperm.xlu0 %372, %v179
  %v374 = vpop.permute.xlu0 %373
  %377 = vset.pattern.permute.xlu0 0
  %378 = vperm.xlu0 %377, %v180
  %v379 = vpop.permute.xlu0 %378
  %382 = vset.pattern.permute.xlu0 0
  %383 = vperm.xlu0 %382, %v181
  %v384 = vpop.permute.xlu0 %383
  %387 = vset.pattern.permute.xlu0 0
  %388 = vperm.xlu0 %387, %v182
  %v389 = vpop.permute.xlu0 %388
  %392 = vset.pattern.permute.xlu0 0
  %393 = vperm.xlu0 %392, %v183
  %v394 = vpop.permute.xlu0 %393
  %397 = vset.pattern.permute.xlu0 0
  %398 = vperm.xlu0 %397, %v184
  %v399 = vpop.permute.xlu0 %398
  %402 = vset.pattern.permute.xlu0 0
  %403 = vperm.xlu0 %402, %v185
  %v404 = vpop.permute.xlu0 %403
  %407 = vset.pattern.permute.xlu0 0
  %408 = vperm.xlu0 %407, %v186
  %v409 = vpop.permute.xlu0 %408
  %412 = vset.pattern.permute.xlu0 0
  %413 = vperm.xlu0 %412, %v187
  %v414 = vpop.permute.xlu0 %413
  %417 = vset.pattern.permute.xlu0 0
  %418 = vperm.xlu0 %417, %v188
  %v419 = vpop.permute.xlu0 %418
  %422 = vset.pattern.permute.xlu0 0
  %423 = vperm.xlu0 %422, %v189
  %v424 = vpop.permute.xlu0 %423
  %427 = vset.pattern.permute.xlu0 0
  %428 = vperm.xlu0 %427, %v190
  %v429 = vpop.permute.xlu0 %428
  %432 = vset.pattern.permute.xlu0 0
  %433 = vperm.xlu0 %432, %v191
  %v434 = vpop.permute.xlu0 %433
  %437 = vset.pattern.permute.xlu0 0
  %438 = vperm.xlu0 %437, %v192
  %v439 = vpop.permute.xlu0 %438
  %442 = vset.pattern.permute.xlu0 0
  %443 = vperm.xlu0 %442, %v193
  %v444 = vpop.permute.xlu0 %443
  %447 = vset.pattern.permute.xlu0 0
  %448 = vperm.xlu0 %447, %v194
  %v449 = vpop.permute.xlu0 %448
  %452 = vset.pattern.permute.xlu0 0
  %453 = vperm.xlu0 %452, %v195
  %v454 = vpop.permute.xlu0 %453
  %457 = vset.pattern.permute.xlu0 0
  %458 = vperm.xlu0 %457, %v196
  %v459 = vpop.permute.xlu0 %458
  %462 = vset.pattern.permute.xlu0 0
  %463 = vperm.xlu0 %462, %v197
  %v464 = vpop.permute.xlu0 %463
  %467 = vset.pattern.permute.xlu0 0
  %468 = vperm.xlu0 %467, %v198
  %v469 = vpop.permute.xlu0 %468
  %472 = vset.pattern.permute.xlu0 0
  %473 = vperm.xlu0 %472, %v199
  %v474 = vpop.permute.xlu0 %473
  %477 = vset.pattern.permute.xlu0 0
  %478 = vperm.xlu0 %477, %v200
  %v479 = vpop.permute.xlu0 %478
  %482 = vset.pattern.permute.xlu0 0
  %483 = vperm.xlu0 %482, %v201
  %v484 = vpop.permute.xlu0 %483
  %487 = vset.pattern.permute.xlu0 0
  %488 = vperm.xlu0 %487, %v202
  %v489 = vpop.permute.xlu0 %488
  %492 = vset.pattern.permute.xlu0 0
  %493 = vperm.xlu0 %492, %v203
  %v494 = vpop.permute.xlu0 %493
  %497 = vset.pattern.permute.xlu0 0
  %498 = vperm.xlu0 %497, %v204
  %v499 = vpop.permute.xlu0 %498
  %502 = vset.pattern.permute.xlu0 0
  %503 = vperm.xlu0 %502, %v205
  %v504 = vpop.permute.xlu0 %503
  %507 = vset.pattern.permute.xlu0 0
  %508 = vperm.xlu0 %507, %v206
  %v509 = vpop.permute.xlu0 %508
  %512 = vset.pattern.permute.xlu0 0
  %513 = vperm.xlu0 %512, %v207
  %v514 = vpop.permute.xlu0 %513
  %517 = vset.pattern.permute.xlu0 0
  %518 = vperm.xlu0 %517, %v208
  %v519 = vpop.permute.xlu0 %518
  %522 = vset.pattern.permute.xlu0 0
  %523 = vperm.xlu0 %522, %v209
  %v524 = vpop.permute.xlu0 %523
  %527 = vset.pattern.permute.xlu0 0
  %528 = vperm.xlu0 %527, %v210
  %v529 = vpop.permute.xlu0 %528
  %532 = vset.pattern.permute.xlu0 0
  %533 = vperm.xlu0 %532, %v211
  %v534 = vpop.permute.xlu0 %533
  %537 = vset.pattern.permute.xlu0 0
  %538 = vperm.xlu0 %537, %v212
  %v539 = vpop.permute.xlu0 %538
  %542 = vset.pattern.permute.xlu0 0
  %543 = vperm.xlu0 %542, %v213
  %v544 = vpop.permute.xlu0 %543
  %547 = vset.pattern.permute.xlu0 0
  %548 = vperm.xlu0 %547, %v214
  %v549 = vpop.permute.xlu0 %548
  %552 = vset.pattern.permute.xlu0 0
  %553 = vperm.xlu0 %552, %v215
  %v554 = vpop.permute.xlu0 %553
  %557 = vset.pattern.permute.xlu0 0
  %558 = vperm.xlu0 %557, %v216
  %v559 = vpop.permute.xlu0 %558
  %562 = vset.pattern.permute.xlu0 0
  %563 = vperm.xlu0 %562, %v217
  %v564 = vpop.permute.xlu0 %563
  %567 = vset.pattern.permute.xlu0 0
  %568 = vperm.xlu0 %567, %v218
  %v569 = vpop.permute.xlu0 %568
  %572 = vset.pattern.permute.xlu0 0
  %573 = vperm.xlu0 %572, %v219
  %v574 = vpop.permute.xlu0 %573
  %577 = vset.pattern.permute.xlu0 0
  %578 = vperm.xlu0 %577, %v220
  %v579 = vpop.permute.xlu0 %578
  %582 = vset.pattern.permute.xlu0 0
  %583 = vperm.xlu0 %582, %v221
  %v584 = vpop.permute.xlu0 %583
  %587 = vset.pattern.permute.xlu0 0
  %588 = vperm.xlu0 %587, %v222
  %v589 = vpop.permute.xlu0 %588
  %592 = vset.pattern.permute.xlu0 0
  %593 = vperm.xlu0 %592, %v223
  %v594 = vpop.permute.xlu0 %593
  %597 = vset.pattern.permute.xlu0 0
  %598 = vperm.xlu0 %597, %v224
  %v599 = vpop.permute.xlu0 %598
  %602 = vset.pattern.permute.xlu0 0
  %603 = vperm.xlu0 %602, %v225
  %v604 = vpop.permute.xlu0 %603
  %607 = vset.pattern.permute.xlu0 0
  %608 = vperm.xlu0 %607, %v226
  %v609 = vpop.permute.xlu0 %608
  %612 = vset.pattern.permute.xlu0 0
  %613 = vperm.xlu0 %612, %v227
  %v614 = vpop.permute.xlu0 %613
  %617 = vset.pattern.permute.xlu0 0
  %618 = vperm.xlu0 %617, %v228
  %v619 = vpop.permute.xlu0 %618
  %622 = vset.pattern.permute.xlu0 0
  %623 = vperm.xlu0 %622, %v229
  %v624 = vpop.permute.xlu0 %623
  %627 = vset.pattern.permute.xlu0 0
  %628 = vperm.xlu0 %627, %v230
  %v629 = vpop.permute.xlu0 %628
  %632 = vset.pattern.permute.xlu0 0
  %633 = vperm.xlu0 %632, %v231
  %v634 = vpop.permute.xlu0 %633
  %637 = vset.pattern.permute.xlu0 0
  %638 = vperm.xlu0 %637, %v232
  %v639 = vpop.permute.xlu0 %638
  %642 = vset.pattern.permute.xlu0 0
  %643 = vperm.xlu0 %642, %v233
  %v644 = vpop.permute.xlu0 %643
  %647 = vset.pattern.permute.xlu0 0
  %648 = vperm.xlu0 %647, %v234
  %v649 = vpop.permute.xlu0 %648
  %652 = vset.pattern.permute.xlu0 0
  %653 = vperm.xlu0 %652, %v235
  %v654 = vpop.permute.xlu0 %653
  %657 = vset.pattern.permute.xlu0 0
  %658 = vperm.xlu0 %657, %v236
  %v659 = vpop.permute.xlu0 %658
  %662 = vset.pattern.permute.xlu0 0
  %663 = vperm.xlu0 %662, %v237
  %v664 = vpop.permute.xlu0 %663
  %667 = vset.pattern.permute.xlu0 0
  %668 = vperm.xlu0 %667, %v238
  %v669 = vpop.permute.xlu0 %668
  %672 = vset.pattern.permute.xlu0 0
  %673 = vperm.xlu0 %672, %v239
  %v674 = vpop.permute.xlu0 %673
  %677 = vset.pattern.permute.xlu0 0
  %678 = vperm.xlu0 %677, %v240
  %v679 = vpop.permute.xlu0 %678
  %682 = vset.pattern.permute.xlu0 0
  %683 = vperm.xlu0 %682, %v241
  %v684 = vpop.permute.xlu0 %683
  %687 = vset.pattern.permute.xlu0 0
  %688 = vperm.xlu0 %687, %v242
  %v689 = vpop.permute.xlu0 %688
  %692 = vset.pattern.permute.xlu0 0
  %693 = vperm.xlu0 %692, %v243
  %v694 = vpop.permute.xlu0 %693
  %697 = vset.pattern.permute.xlu0 0
  %698 = vperm.xlu0 %697, %v244
  %v699 = vpop.permute.xlu0 %698
  %702 = vset.pattern.permute.xlu0 0
  %703 = vperm.xlu0 %702, %v245
  %v704 = vpop.permute.xlu0 %703
  %707 = vset.pattern.permute.xlu0 0
  %708 = vperm.xlu0 %707, %v246
  %v709 = vpop.permute.xlu0 %708
  %712 = vset.pattern.permute.xlu0 0
  %713 = vperm.xlu0 %712, %v247
  %v714 = vpop.permute.xlu0 %713
  %717 = vset.pattern.permute.xlu0 0
  %718 = vperm.xlu0 %717, %v248
  %v719 = vpop.permute.xlu0 %718
  %722 = vset.pattern.permute.xlu0 0
  %723 = vperm.xlu0 %722, %v249
  %v724 = vpop.permute.xlu0 %723
  %727 = vset.pattern.permute.xlu0 0
  %728 = vperm.xlu0 %727, %v250
  %v729 = vpop.permute.xlu0 %728
  %732 = vset.pattern.permute.xlu0 0
  %733 = vperm.xlu0 %732, %v251
  %v734 = vpop.permute.xlu0 %733
  %737 = vset.pattern.permute.xlu0 0
  %738 = vperm.xlu0 %737, %v252
  %v739 = vpop.permute.xlu0 %738
  %742 = vset.pattern.permute.xlu0 0
  %743 = vperm.xlu0 %742, %v253
  %v744 = vpop.permute.xlu0 %743
  %747 = vset.pattern.permute.xlu0 0
  %748 = vperm.xlu0 %747, %v254
  %v749 = vpop.permute.xlu0 %748
  %752 = vset.pattern.permute.xlu0 0
  %753 = vperm.xlu0 %752, %v255
  %v754 = vpop.permute.xlu0 %753
  %757 = vset.pattern.permute.xlu0 0
  %758 = vperm.xlu0 %757, %v256
  %v759 = vpop.permute.xlu0 %758
  %762 = vset.pattern.permute.xlu0 0
  %763 = vperm.xlu0 %762, %v257
  %v764 = vpop.permute.xlu0 %763
  %767 = vset.pattern.permute.xlu0 0
  %768 = vperm.xlu0 %767, %v258
  %v769 = vpop.permute.xlu0 %768
  %772 = vset.pattern.permute.xlu0 0
  %773 = vperm.xlu0 %772, %v259
  %v774 = vpop.permute.xlu0 %773
  %777 = vset.pattern.permute.xlu0 0
  %778 = vperm.xlu0 %777, %v260
  %v779 = vpop.permute.xlu0 %778
  %782 = vset.pattern.permute.xlu0 0
  %783 = vperm.xlu0 %782, %v261
  %v784 = vpop.permute.xlu0 %783
  %787 = vset.pattern.permute.xlu0 0
  %788 = vperm.xlu0 %787, %v262
  %v789 = vpop.permute.xlu0 %788
  %792 = vset.pattern.permute.xlu0 0
  %793 = vperm.xlu0 %792, %v263
  %v794 = vpop.permute.xlu0 %793
  %797 = vset.pattern.permute.xlu0 0
  %798 = vperm.xlu0 %797, %v264
  %v799 = vpop.permute.xlu0 %798
  %802 = vset.pattern.permute.xlu0 0
  %803 = vperm.xlu0 %802, %v265
  %v804 = vpop.permute.xlu0 %803
  %807 = vset.pattern.permute.xlu0 0
  %808 = vperm.xlu0 %807, %v266
  %v809 = vpop.permute.xlu0 %808
  %812 = vset.pattern.permute.xlu0 0
  %813 = vperm.xlu0 %812, %v267
  %v814 = vpop.permute.xlu0 %813
  %817 = vset.pattern.permute.xlu0 0
  %818 = vperm.xlu0 %817, %v268
  %v819 = vpop.permute.xlu0 %818
  %822 = vset.pattern.permute.xlu0 0
  %823 = vperm.xlu0 %822, %v269
  %v824 = vpop.permute.xlu0 %823
  %827 = vset.pattern.permute.xlu0 0
  %828 = vperm.xlu0 %827, %v270
  %v829 = vpop.permute.xlu0 %828
  %832 = vset.pattern.permute.xlu0 0
  %833 = vperm.xlu0 %832, %v271
  %v834 = vpop.permute.xlu0 %833
  %837 = vset.pattern.permute.xlu0 0
  %838 = vperm.xlu0 %837, %v272
  %v839 = vpop.permute.xlu0 %838
  %842 = vset.pattern.permute.xlu0 0
  %843 = vperm.xlu0 %842, %v273
  %v844 = vpop.permute.xlu0 %843
  %847 = vset.pattern.permute.xlu0 0
  %848 = vperm.xlu0 %847, %v274
  %v849 = vpop.permute.xlu0 %848
  %852 = vset.pattern.permute.xlu0 0
  %853 = vperm.xlu0 %852, %v275
  %v854 = vpop.permute.xlu0 %853
  %857 = vset.pattern.permute.xlu0 0
  %858 = vperm.xlu0 %857, %v276
  %v859 = vpop.permute.xlu0 %858
  %862 = vset.pattern.permute.xlu0 0
  %863 = vperm.xlu0 %862, %v277
  %v864 = vpop.permute.xlu0 %863
  %867 = vset.pattern.permute.xlu0 0
  %868 = vperm.xlu0 %867, %v278
  %v869 = vpop.permute.xlu0 %868
  %872 = vset.pattern.permute.xlu0 0
  %873 = vperm.xlu0 %872, %v279
  %v874 = vpop.permute.xlu0 %873
  %877 = vset.pattern.permute.xlu0 0
  %878 = vperm.xlu0 %877, %v280
  %v879 = vpop.permute.xlu0 %878
  %882 = vset.pattern.permute.xlu0 0
  %883 = vperm.xlu0 %882, %v281
  %v884 = vpop.permute.xlu0 %883
  %887 = vset.pattern.permute.xlu0 0
  %888 = vperm.xlu0 %887, %v282
  %v889 = vpop.permute.xlu0 %888
  %892 = vset.pattern.permute.xlu0 0
  %893 = vperm.xlu0 %892, %v283
  %v894 = vpop.permute.xlu0 %893
  %897 = vset.pattern.permute.xlu0 0
  %898 = vperm.xlu0 %897, %v284
  %v899 = vpop.permute.xlu0 %898
  %902 = vset.pattern.permute.xlu0 0
  %903 = vperm.xlu0 %902, %v285
  %v904 = vpop.permute.xlu0 %903
  %907 = vset.pattern.permute.xlu0 0
  %908 = vperm.xlu0 %907, %v286
  %v909 = vpop.permute.xlu0 %908
  %912 = vset.pattern.permute.xlu0 0
  %913 = vperm.xlu0 %912, %v287
  %v914 = vpop.permute.xlu0 %913
  %917 = vset.pattern.permute.xlu0 0
  %918 = vperm.xlu0 %917, %v288
  %v919 = vpop.permute.xlu0 %918
  %922 = vset.pattern.permute.xlu0 0
  %923 = vperm.xlu0 %922, %v289
  %v924 = vpop.permute.xlu0 %923
  %927 = vset.pattern.permute.xlu0 0
  %928 = vperm.xlu0 %927, %v290
  %v929 = vpop.permute.xlu0 %928
  %vm931 = vcmask 261120
  %v933 = vsel %vm931, %v31, 0
  %v936 = vsel %vm931, %v32, 0
  %v939 = vsel %vm931, %v33, 0
  %v942 = vsel %vm931, %v34, 0
  %v945 = vsel %vm931, %v35, 0
  %v948 = vsel %vm931, %v36, 0
  %v951 = vsel %vm931, %v37, 0
  %v954 = vsel %vm931, %v38, 0
  %v957 = vsel %vm931, %v39, 0
  %v960 = vsel %vm931, %v40, 0
  %v963 = vsel %vm931, %v41, 0
  %v966 = vsel %vm931, %v42, 0
  %v969 = vsel %vm931, %v43, 0
  %v972 = vsel %vm931, %v44, 0
  %v975 = vsel %vm931, %v45, 0
  %v978 = vsel %vm931, %v46, 0
  %v981 = vsel %vm931, %v47, 0
  %v984 = vsel %vm931, %v48, 0
  %v987 = vsel %vm931, %v49, 0
  %v990 = vsel %vm931, %v50, 0
  %v993 = vsel %vm931, %v51, 0
  %v996 = vsel %vm931, %v52, 0
  %v999 = vsel %vm931, %v53, 0
  %v1002 = vsel %vm931, %v54, 0
  %v1005 = vsel %vm931, %v55, 0
  %v1008 = vsel %vm931, %v56, 0
  %v1011 = vsel %vm931, %v57, 0
  %v1014 = vsel %vm931, %v58, 0
  %v1017 = vsel %vm931, %v59, 0
  %v1020 = vsel %vm931, %v60, 0
  %v1023 = vsel %vm931, %v61, 0
  %v1026 = vsel %vm931, %v62, 0
  %v1029 = vsel %vm931, %v63, 0
  %v1032 = vsel %vm931, %v64, 0
  %v1035 = vsel %vm931, %v65, 0
  %v1038 = vsel %vm931, %v66, 0
  %v1041 = vsel %vm931, %v67, 0
  %v1044 = vsel %vm931, %v68, 0
  %v1047 = vsel %vm931, %v69, 0
  %v1050 = vsel %vm931, %v70, 0
  %v1053 = vsel %vm931, %v71, 0
  %v1056 = vsel %vm931, %v72, 0
  %v1059 = vsel %vm931, %v73, 0
  %v1062 = vsel %vm931, %v74, 0
  %v1065 = vsel %vm931, %v75, 0
  %v1068 = vsel %vm931, %v76, 0
  %v1071 = vsel %vm931, %v77, 0
  %v1074 = vsel %vm931, %v78, 0
  %v1077 = vsel %vm931, %v79, 0
  %v1080 = vsel %vm931, %v80, 0
  %v1083 = vsel %vm931, %v81, 0
  %v1086 = vsel %vm931, %v82, 0
  %v1089 = vsel %vm931, %v83, 0
  %v1092 = vsel %vm931, %v84, 0
  %v1095 = vsel %vm931, %v85, 0
  %v1098 = vsel %vm931, %v86, 0
  %v1101 = vsel %vm931, %v87, 0
  %v1104 = vsel %vm931, %v88, 0
  %v1107 = vsel %vm931, %v89, 0
  %v1110 = vsel %vm931, %v90, 0
  %v1113 = vsel %vm931, %v91, 0
  %v1116 = vsel %vm931, %v92, 0
  %v1119 = vsel %vm931, %v93, 0
  %v1122 = vsel %vm931, %v94, 0
  %v1125 = vsel %vm931, %v95, 0
  %v1128 = vsel %vm931, %v96, 0
  %v1131 = vsel %vm931, %v97, 0
  %v1134 = vsel %vm931, %v98, 0
  %v1137 = vsel %vm931, %v99, 0
  %v1140 = vsel %vm931, %v100, 0
  %v1143 = vsel %vm931, %v101, 0
  %v1146 = vsel %vm931, %v102, 0
  %v1149 = vsel %vm931, %v103, 0
  %v1152 = vsel %vm931, %v104, 0
  %v1155 = vsel %vm931, %v105, 0
  %v1158 = vsel %vm931, %v106, 0
  %v1161 = vsel %vm931, %v107, 0
  %v1164 = vsel %vm931, %v108, 0
  %v1167 = vsel %vm931, %v109, 0
  %v1170 = vsel %vm931, %v110, 0
  %v1173 = vsel %vm931, %v111, 0
  %v1176 = vsel %vm931, %v112, 0
  %v1179 = vsel %vm931, %v113, 0
  %v1182 = vsel %vm931, %v114, 0
  %v1185 = vsel %vm931, %v115, 0
  %v1188 = vsel %vm931, %v116, 0
  %v1191 = vsel %vm931, %v117, 0
  %v1194 = vsel %vm931, %v118, 0
  %v1197 = vsel %vm931, %v119, 0
  %v1200 = vsel %vm931, %v120, 0
  %v1203 = vsel %vm931, %v121, 0
  %v1206 = vsel %vm931, %v122, 0
  %v1209 = vsel %vm931, %v123, 0
  %v1212 = vsel %vm931, %v124, 0
  %v1215 = vsel %vm931, %v125, 0
  %v1218 = vsel %vm931, %v126, 0
  %v1221 = vsel %vm931, %v127, 0
  %v1224 = vsel %vm931, %v128, 0
  %v1227 = vsel %vm931, %v129, 0
  %v1230 = vsel %vm931, %v130, 0
  %v1233 = vsel %vm931, %v131, 0
  %v1236 = vsel %vm931, %v132, 0
  %v1239 = vsel %vm931, %v133, 0
  %v1242 = vsel %vm931, %v134, 0
  %v1245 = vsel %vm931, %v135, 0
  %v1248 = vsel %vm931, %v136, 0
  %v1251 = vsel %vm931, %v137, 0
  %v1254 = vsel %vm931, %v138, 0
  %v1257 = vsel %vm931, %v139, 0
  %v1260 = vsel %vm931, %v140, 0
  %v1263 = vsel %vm931, %v141, 0
  %v1266 = vsel %vm931, %v142, 0
  %v1269 = vsel %vm931, %v143, 0
  %v1272 = vsel %vm931, %v144, 0
  %v1275 = vsel %vm931, %v145, 0
  %v1278 = vsel %vm931, %v146, 0
  %v1281 = vsel %vm931, %v147, 0
  %v1284 = vsel %vm931, %v148, 0
  %v1287 = vsel %vm931, %v149, 0
  %v1290 = vsel %vm931, %v150, 0
  %v1293 = vsel %vm931, %v151, 0
  %v1296 = vsel %vm931, %v152, 0
  %v1299 = vsel %vm931, %v153, 0
  %v1302 = vsel %vm931, %v154, 0
  %v1305 = vsel %vm931, %v155, 0
  %v1308 = vsel %vm931, %v156, 0
  %v1311 = vsel %vm931, %v157, 0
  %v1314 = vsel %vm931, %v158, 0
  %1316 = vmatprep.subr.mxu0 0.0
  %1317 = vmatpush1.msra.mxu0 0.0
  %1318 = vmatprep.subr.mxu0 0.0
  %1319 = vmatpush1.msra.mxu0 0.0
  %1320 = vmatprep.subr.mxu0 0.0
  %1321 = vmatpush1.msra.mxu0 0.0
  %1322 = vmatprep.subr.mxu0 0.0
  %1323 = vmatpush1.msra.mxu0 0.0
  %1324 = vmatprep.subr.mxu0 0.0
  %1325 = vmatpush1.msra.mxu0 0.0
  %1326 = vmatprep.subr.mxu0 0.0
  %1327 = vmatpush1.msra.mxu0 0.0
  %1328 = vmatprep.subr.mxu0 0.0
  %1329 = vmatpush1.msra.mxu0 0.0
  %1330 = vmatprep.subr.mxu0 0.0
  %1331 = vmatpush1.msra.mxu0 0.0
  %1332 = vmatprep.subr.mxu0 0.0
  %1333 = vmatpush1.msra.mxu0 0.0
  %1334 = vmatprep.subr.mxu0 0.0
  %1335 = vmatpush1.msra.mxu0 0.0
  %1336 = vmatprep.subr.mxu0 0.0
  %1337 = vmatpush1.msra.mxu0 0.0
  %1338 = vmatprep.subr.mxu0 0.0
  %1339 = vmatpush1.msra.mxu0 0.0
  %1340 = vmatprep.subr.mxu0 0.0
  %1341 = vmatpush1.msra.mxu0 %v162
  %1342 = vmatprep.subr.mxu0 0.0
  %1343 = vmatpush1.msra.mxu0 %v161
  %1344 = vmatprep.subr.mxu0 0.0
  %1345 = vmatpush1.msra.mxu0 %v160
  %1346 = vmatprep.subr.mxu0 0.0
  %1347 = vmatpush1.msra.mxu0 %v159
  %1348 = vmatprep.subr.mxu0 0.0
  %1349 = vmatpush2.msra.mxu0 0.0
  %1350 = vmatprep.subr.mxu0 0.0
  %1351 = vmatpush2.msra.mxu0 0.0
  %1352 = vmatprep.subr.mxu0 0.0
  %1353 = vmatpush2.msra.mxu0 0.0
  %1354 = vmatprep.subr.mxu0 0.0
  %1355 = vmatpush2.msra.mxu0 0.0
  %1356 = vmatprep.subr.mxu0 0.0
  %1357 = vmatpush2.msra.mxu0 0.0
  %1358 = vmatprep.subr.mxu0 0.0
  %1359 = vmatpush2.msra.mxu0 0.0
  %1360 = vmatprep.subr.mxu0 0.0
  %1361 = vmatpush2.msra.mxu0 0.0
  %1362 = vmatprep.subr.mxu0 0.0
  %1363 = vmatpush2.msra.mxu0 0.0
  %1364 = vmatprep.subr.mxu0 0.0
  %1365 = vmatpush2.msra.mxu0 0.0
  %1366 = vmatprep.subr.mxu0 0.0
  %1367 = vmatpush2.msra.mxu0 0.0
  %1368 = vmatprep.subr.mxu0 0.0
  %1369 = vmatpush2.msra.mxu0 0.0
  %1370 = vmatprep.subr.mxu0 0.0
  %1371 = vmatpush2.msra.mxu0 0.0
  %1372 = vmatprep.subr.mxu0 0.0
  %1373 = vmatpush2.msra.mxu0 0.0
  %1374 = vmatprep.subr.mxu0 0.0
  %1375 = vmatpush2.msra.mxu0 0.0
  %1376 = vmatprep.subr.mxu0 0.0
  %1377 = vmatpush2.msra.mxu0 0.0
  %1378 = vmatprep.subr.mxu0 0.0
  %1379 = vmatpush2.msra.mxu0 0.0
  %1380 = vmatprep.mubr.f32.mxu0 0.0
  %1381 = vmatmul.mubr.f32.gmra.mxu0 %v933
  %v1382 = vpop.f32.mrf.mxu0
  %v1383 = vadd.f32 %v294, %v1382
  %v1384 = vpop.f32.mrf.mxu0
  %1385 = vmatprep.mubr.f32.mxu0 0.0
  %1386 = vmatmul.mubr.f32.gmra.mxu0 %v936
  %v1387 = vpop.f32.mrf.mxu0
  %v1388 = vadd.f32 %v299, %v1387
  %v1389 = vpop.f32.mrf.mxu0
  %1390 = vmatprep.mubr.f32.mxu0 0.0
  %1391 = vmatmul.mubr.f32.gmra.mxu0 %v939
  %v1392 = vpop.f32.mrf.mxu0
  %v1393 = vadd.f32 %v304, %v1392
  %v1394 = vpop.f32.mrf.mxu0
  %1395 = vmatprep.mubr.f32.mxu0 0.0
  %1396 = vmatmul.mubr.f32.gmra.mxu0 %v942
  %v1397 = vpop.f32.mrf.mxu0
  %v1398 = vadd.f32 %v309, %v1397
  %v1399 = vpop.f32.mrf.mxu0
  %1400 = vmatprep.mubr.f32.mxu0 0.0
  %1401 = vmatmul.mubr.f32.gmra.mxu0 %v945
  %v1402 = vpop.f32.mrf.mxu0
  %v1403 = vadd.f32 %v314, %v1402
  %v1404 = vpop.f32.mrf.mxu0
  %1405 = vmatprep.mubr.f32.mxu0 0.0
  %1406 = vmatmul.mubr.f32.gmra.mxu0 %v948
  %v1407 = vpop.f32.mrf.mxu0
  %v1408 = vadd.f32 %v319, %v1407
  %v1409 = vpop.f32.mrf.mxu0
  %1410 = vmatprep.mubr.f32.mxu0 0.0
  %1411 = vmatmul.mubr.f32.gmra.mxu0 %v951
  %v1412 = vpop.f32.mrf.mxu0
  %v1413 = vadd.f32 %v324, %v1412
  %v1414 = vpop.f32.mrf.mxu0
  %1415 = vmatprep.mubr.f32.mxu0 0.0
  %1416 = vmatmul.mubr.f32.gmra.mxu0 %v954
  %v1417 = vpop.f32.mrf.mxu0
  %v1418 = vadd.f32 %v329, %v1417
  %v1419 = vpop.f32.mrf.mxu0
  %1420 = vmatprep.mubr.f32.mxu0 0.0
  %1421 = vmatmul.mubr.f32.gmra.mxu0 %v957
  %v1422 = vpop.f32.mrf.mxu0
  %v1423 = vadd.f32 %v334, %v1422
  %v1424 = vpop.f32.mrf.mxu0
  %1425 = vmatprep.mubr.f32.mxu0 0.0
  %1426 = vmatmul.mubr.f32.gmra.mxu0 %v960
  %v1427 = vpop.f32.mrf.mxu0
  %v1428 = vadd.f32 %v339, %v1427
  %v1429 = vpop.f32.mrf.mxu0
  %1430 = vmatprep.mubr.f32.mxu0 0.0
  %1431 = vmatmul.mubr.f32.gmra.mxu0 %v963
  %v1432 = vpop.f32.mrf.mxu0
  %v1433 = vadd.f32 %v344, %v1432
  %v1434 = vpop.f32.mrf.mxu0
  %1435 = vmatprep.mubr.f32.mxu0 0.0
  %1436 = vmatmul.mubr.f32.gmra.mxu0 %v966
  %v1437 = vpop.f32.mrf.mxu0
  %v1438 = vadd.f32 %v349, %v1437
  %v1439 = vpop.f32.mrf.mxu0
  %1440 = vmatprep.mubr.f32.mxu0 0.0
  %1441 = vmatmul.mubr.f32.gmra.mxu0 %v969
  %v1442 = vpop.f32.mrf.mxu0
  %v1443 = vadd.f32 %v354, %v1442
  %v1444 = vpop.f32.mrf.mxu0
  %1445 = vmatprep.mubr.f32.mxu0 0.0
  %1446 = vmatmul.mubr.f32.gmra.mxu0 %v972
  %v1447 = vpop.f32.mrf.mxu0
  %v1448 = vadd.f32 %v359, %v1447
  %v1449 = vpop.f32.mrf.mxu0
  %1450 = vmatprep.mubr.f32.mxu0 0.0
  %1451 = vmatmul.mubr.f32.gmra.mxu0 %v975
  %v1452 = vpop.f32.mrf.mxu0
  %v1453 = vadd.f32 %v364, %v1452
  %v1454 = vpop.f32.mrf.mxu0
  %1455 = vmatprep.mubr.f32.mxu0 0.0
  %1456 = vmatmul.mubr.f32.gmra.mxu0 %v978
  %v1457 = vpop.f32.mrf.mxu0
  %v1458 = vadd.f32 %v369, %v1457
  %v1459 = vpop.f32.mrf.mxu0
  %1460 = vmatprep.mubr.f32.mxu0 0.0
  %1461 = vmatmul.mubr.f32.gmra.mxu0 %v981
  %v1462 = vpop.f32.mrf.mxu0
  %v1463 = vadd.f32 %v374, %v1462
  %v1464 = vpop.f32.mrf.mxu0
  %1465 = vmatprep.mubr.f32.mxu0 0.0
  %1466 = vmatmul.mubr.f32.gmra.mxu0 %v984
  %v1467 = vpop.f32.mrf.mxu0
  %v1468 = vadd.f32 %v379, %v1467
  %v1469 = vpop.f32.mrf.mxu0
  %1470 = vmatprep.mubr.f32.mxu0 0.0
  %1471 = vmatmul.mubr.f32.gmra.mxu0 %v987
  %v1472 = vpop.f32.mrf.mxu0
  %v1473 = vadd.f32 %v384, %v1472
  %v1474 = vpop.f32.mrf.mxu0
  %1475 = vmatprep.mubr.f32.mxu0 0.0
  %1476 = vmatmul.mubr.f32.gmra.mxu0 %v990
  %v1477 = vpop.f32.mrf.mxu0
  %v1478 = vadd.f32 %v389, %v1477
  %v1479 = vpop.f32.mrf.mxu0
  %1480 = vmatprep.mubr.f32.mxu0 0.0
  %1481 = vmatmul.mubr.f32.gmra.mxu0 %v993
  %v1482 = vpop.f32.mrf.mxu0
  %v1483 = vadd.f32 %v394, %v1482
  %v1484 = vpop.f32.mrf.mxu0
  %1485 = vmatprep.mubr.f32.mxu0 0.0
  %1486 = vmatmul.mubr.f32.gmra.mxu0 %v996
  %v1487 = vpop.f32.mrf.mxu0
  %v1488 = vadd.f32 %v399, %v1487
  %v1489 = vpop.f32.mrf.mxu0
  %1490 = vmatprep.mubr.f32.mxu0 0.0
  %1491 = vmatmul.mubr.f32.gmra.mxu0 %v999
  %v1492 = vpop.f32.mrf.mxu0
  %v1493 = vadd.f32 %v404, %v1492
  %v1494 = vpop.f32.mrf.mxu0
  %1495 = vmatprep.mubr.f32.mxu0 0.0
  %1496 = vmatmul.mubr.f32.gmra.mxu0 %v1002
  %v1497 = vpop.f32.mrf.mxu0
  %v1498 = vadd.f32 %v409, %v1497
  %v1499 = vpop.f32.mrf.mxu0
  %1500 = vmatprep.mubr.f32.mxu0 0.0
  %1501 = vmatmul.mubr.f32.gmra.mxu0 %v1005
  %v1502 = vpop.f32.mrf.mxu0
  %v1503 = vadd.f32 %v414, %v1502
  %v1504 = vpop.f32.mrf.mxu0
  %1505 = vmatprep.mubr.f32.mxu0 0.0
  %1506 = vmatmul.mubr.f32.gmra.mxu0 %v1008
  %v1507 = vpop.f32.mrf.mxu0
  %v1508 = vadd.f32 %v419, %v1507
  %v1509 = vpop.f32.mrf.mxu0
  %1510 = vmatprep.mubr.f32.mxu0 0.0
  %1511 = vmatmul.mubr.f32.gmra.mxu0 %v1011
  %v1512 = vpop.f32.mrf.mxu0
  %v1513 = vadd.f32 %v424, %v1512
  %v1514 = vpop.f32.mrf.mxu0
  %1515 = vmatprep.mubr.f32.mxu0 0.0
  %1516 = vmatmul.mubr.f32.gmra.mxu0 %v1014
  %v1517 = vpop.f32.mrf.mxu0
  %v1518 = vadd.f32 %v429, %v1517
  %v1519 = vpop.f32.mrf.mxu0
  %1520 = vmatprep.mubr.f32.mxu0 0.0
  %1521 = vmatmul.mubr.f32.gmra.mxu0 %v1017
  %v1522 = vpop.f32.mrf.mxu0
  %v1523 = vadd.f32 %v434, %v1522
  %v1524 = vpop.f32.mrf.mxu0
  %1525 = vmatprep.mubr.f32.mxu0 0.0
  %1526 = vmatmul.mubr.f32.gmra.mxu0 %v1020
  %v1527 = vpop.f32.mrf.mxu0
  %v1528 = vadd.f32 %v439, %v1527
  %v1529 = vpop.f32.mrf.mxu0
  %1530 = vmatprep.mubr.f32.mxu0 0.0
  %1531 = vmatmul.mubr.f32.gmra.mxu0 %v1023
  %v1532 = vpop.f32.mrf.mxu0
  %v1533 = vadd.f32 %v444, %v1532
  %v1534 = vpop.f32.mrf.mxu0
  %1535 = vmatprep.mubr.f32.mxu0 0.0
  %1536 = vmatmul.mubr.f32.gmra.mxu0 %v1026
  %v1537 = vpop.f32.mrf.mxu0
  %v1538 = vadd.f32 %v449, %v1537
  %v1539 = vpop.f32.mrf.mxu0
  %1540 = vmatprep.mubr.f32.mxu0 0.0
  %1541 = vmatmul.mubr.f32.gmra.mxu0 %v1029
  %v1542 = vpop.f32.mrf.mxu0
  %v1543 = vadd.f32 %v454, %v1542
  %v1544 = vpop.f32.mrf.mxu0
  %1545 = vmatprep.mubr.f32.mxu0 0.0
  %1546 = vmatmul.mubr.f32.gmra.mxu0 %v1032
  %v1547 = vpop.f32.mrf.mxu0
  %v1548 = vadd.f32 %v459, %v1547
  %v1549 = vpop.f32.mrf.mxu0
  %1550 = vmatprep.mubr.f32.mxu0 0.0
  %1551 = vmatmul.mubr.f32.gmra.mxu0 %v1035
  %v1552 = vpop.f32.mrf.mxu0
  %v1553 = vadd.f32 %v464, %v1552
  %v1554 = vpop.f32.mrf.mxu0
  %1555 = vmatprep.mubr.f32.mxu0 0.0
  %1556 = vmatmul.mubr.f32.gmra.mxu0 %v1038
  %v1557 = vpop.f32.mrf.mxu0
  %v1558 = vadd.f32 %v469, %v1557
  %v1559 = vpop.f32.mrf.mxu0
  %1560 = vmatprep.mubr.f32.mxu0 0.0
  %1561 = vmatmul.mubr.f32.gmra.mxu0 %v1041
  %v1562 = vpop.f32.mrf.mxu0
  %v1563 = vadd.f32 %v474, %v1562
  %v1564 = vpop.f32.mrf.mxu0
  %1565 = vmatprep.mubr.f32.mxu0 0.0
  %1566 = vmatmul.mubr.f32.gmra.mxu0 %v1044
  %v1567 = vpop.f32.mrf.mxu0
  %v1568 = vadd.f32 %v479, %v1567
  %v1569 = vpop.f32.mrf.mxu0
  %1570 = vmatprep.mubr.f32.mxu0 0.0
  %1571 = vmatmul.mubr.f32.gmra.mxu0 %v1047
  %v1572 = vpop.f32.mrf.mxu0
  %v1573 = vadd.f32 %v484, %v1572
  %v1574 = vpop.f32.mrf.mxu0
  %1575 = vmatprep.mubr.f32.mxu0 0.0
  %1576 = vmatmul.mubr.f32.gmra.mxu0 %v1050
  %v1577 = vpop.f32.mrf.mxu0
  %v1578 = vadd.f32 %v489, %v1577
  %v1579 = vpop.f32.mrf.mxu0
  %1580 = vmatprep.mubr.f32.mxu0 0.0
  %1581 = vmatmul.mubr.f32.gmra.mxu0 %v1053
  %v1582 = vpop.f32.mrf.mxu0
  %v1583 = vadd.f32 %v494, %v1582
  %v1584 = vpop.f32.mrf.mxu0
  %1585 = vmatprep.mubr.f32.mxu0 0.0
  %1586 = vmatmul.mubr.f32.gmra.mxu0 %v1056
  %v1587 = vpop.f32.mrf.mxu0
  %v1588 = vadd.f32 %v499, %v1587
  %v1589 = vpop.f32.mrf.mxu0
  %1590 = vmatprep.mubr.f32.mxu0 0.0
  %1591 = vmatmul.mubr.f32.gmra.mxu0 %v1059
  %v1592 = vpop.f32.mrf.mxu0
  %v1593 = vadd.f32 %v504, %v1592
  %v1594 = vpop.f32.mrf.mxu0
  %1595 = vmatprep.mubr.f32.mxu0 0.0
  %1596 = vmatmul.mubr.f32.gmra.mxu0 %v1062
  %v1597 = vpop.f32.mrf.mxu0
  %v1598 = vadd.f32 %v509, %v1597
  %v1599 = vpop.f32.mrf.mxu0
  %1600 = vmatprep.mubr.f32.mxu0 0.0
  %1601 = vmatmul.mubr.f32.gmra.mxu0 %v1065
  %v1602 = vpop.f32.mrf.mxu0
  %v1603 = vadd.f32 %v514, %v1602
  %v1604 = vpop.f32.mrf.mxu0
  %1605 = vmatprep.mubr.f32.mxu0 0.0
  %1606 = vmatmul.mubr.f32.gmra.mxu0 %v1068
  %v1607 = vpop.f32.mrf.mxu0
  %v1608 = vadd.f32 %v519, %v1607
  %v1609 = vpop.f32.mrf.mxu0
  %1610 = vmatprep.mubr.f32.mxu0 0.0
  %1611 = vmatmul.mubr.f32.gmra.mxu0 %v1071
  %v1612 = vpop.f32.mrf.mxu0
  %v1613 = vadd.f32 %v524, %v1612
  %v1614 = vpop.f32.mrf.mxu0
  %1615 = vmatprep.mubr.f32.mxu0 0.0
  %1616 = vmatmul.mubr.f32.gmra.mxu0 %v1074
  %v1617 = vpop.f32.mrf.mxu0
  %v1618 = vadd.f32 %v529, %v1617
  %v1619 = vpop.f32.mrf.mxu0
  %1620 = vmatprep.mubr.f32.mxu0 0.0
  %1621 = vmatmul.mubr.f32.gmra.mxu0 %v1077
  %v1622 = vpop.f32.mrf.mxu0
  %v1623 = vadd.f32 %v534, %v1622
  %v1624 = vpop.f32.mrf.mxu0
  %1625 = vmatprep.mubr.f32.mxu0 0.0
  %1626 = vmatmul.mubr.f32.gmra.mxu0 %v1080
  %v1627 = vpop.f32.mrf.mxu0
  %v1628 = vadd.f32 %v539, %v1627
  %v1629 = vpop.f32.mrf.mxu0
  %1630 = vmatprep.mubr.f32.mxu0 0.0
  %1631 = vmatmul.mubr.f32.gmra.mxu0 %v1083
  %v1632 = vpop.f32.mrf.mxu0
  %v1633 = vadd.f32 %v544, %v1632
  %v1634 = vpop.f32.mrf.mxu0
  %1635 = vmatprep.mubr.f32.mxu0 0.0
  %1636 = vmatmul.mubr.f32.gmra.mxu0 %v1086
  %v1637 = vpop.f32.mrf.mxu0
  %v1638 = vadd.f32 %v549, %v1637
  %v1639 = vpop.f32.mrf.mxu0
  %1640 = vmatprep.mubr.f32.mxu0 0.0
  %1641 = vmatmul.mubr.f32.gmra.mxu0 %v1089
  %v1642 = vpop.f32.mrf.mxu0
  %v1643 = vadd.f32 %v554, %v1642
  %v1644 = vpop.f32.mrf.mxu0
  %1645 = vmatprep.mubr.f32.mxu0 0.0
  %1646 = vmatmul.mubr.f32.gmra.mxu0 %v1092
  %v1647 = vpop.f32.mrf.mxu0
  %v1648 = vadd.f32 %v559, %v1647
  %v1649 = vpop.f32.mrf.mxu0
  %1650 = vmatprep.mubr.f32.mxu0 0.0
  %1651 = vmatmul.mubr.f32.gmra.mxu0 %v1095
  %v1652 = vpop.f32.mrf.mxu0
  %v1653 = vadd.f32 %v564, %v1652
  %v1654 = vpop.f32.mrf.mxu0
  %1655 = vmatprep.mubr.f32.mxu0 0.0
  %1656 = vmatmul.mubr.f32.gmra.mxu0 %v1098
  %v1657 = vpop.f32.mrf.mxu0
  %v1658 = vadd.f32 %v569, %v1657
  %v1659 = vpop.f32.mrf.mxu0
  %1660 = vmatprep.mubr.f32.mxu0 0.0
  %1661 = vmatmul.mubr.f32.gmra.mxu0 %v1101
  %v1662 = vpop.f32.mrf.mxu0
  %v1663 = vadd.f32 %v574, %v1662
  %v1664 = vpop.f32.mrf.mxu0
  %1665 = vmatprep.mubr.f32.mxu0 0.0
  %1666 = vmatmul.mubr.f32.gmra.mxu0 %v1104
  %v1667 = vpop.f32.mrf.mxu0
  %v1668 = vadd.f32 %v579, %v1667
  %v1669 = vpop.f32.mrf.mxu0
  %1670 = vmatprep.mubr.f32.mxu0 0.0
  %1671 = vmatmul.mubr.f32.gmra.mxu0 %v1107
  %v1672 = vpop.f32.mrf.mxu0
  %v1673 = vadd.f32 %v584, %v1672
  %v1674 = vpop.f32.mrf.mxu0
  %1675 = vmatprep.mubr.f32.mxu0 0.0
  %1676 = vmatmul.mubr.f32.gmra.mxu0 %v1110
  %v1677 = vpop.f32.mrf.mxu0
  %v1678 = vadd.f32 %v589, %v1677
  %v1679 = vpop.f32.mrf.mxu0
  %1680 = vmatprep.mubr.f32.mxu0 0.0
  %1681 = vmatmul.mubr.f32.gmra.mxu0 %v1113
  %v1682 = vpop.f32.mrf.mxu0
  %v1683 = vadd.f32 %v594, %v1682
  %v1684 = vpop.f32.mrf.mxu0
  %1685 = vmatprep.mubr.f32.mxu0 0.0
  %1686 = vmatmul.mubr.f32.gmra.mxu0 %v1116
  %v1687 = vpop.f32.mrf.mxu0
  %v1688 = vadd.f32 %v599, %v1687
  %v1689 = vpop.f32.mrf.mxu0
  %1690 = vmatprep.mubr.f32.mxu0 0.0
  %1691 = vmatmul.mubr.f32.gmra.mxu0 %v1119
  %v1692 = vpop.f32.mrf.mxu0
  %v1693 = vadd.f32 %v604, %v1692
  %v1694 = vpop.f32.mrf.mxu0
  %1695 = vmatprep.mubr.f32.mxu0 0.0
  %1696 = vmatmul.mubr.f32.gmra.mxu0 %v1122
  %v1697 = vpop.f32.mrf.mxu0
  %v1698 = vadd.f32 %v609, %v1697
  %v1699 = vpop.f32.mrf.mxu0
  %1700 = vmatprep.mubr.f32.mxu0 0.0
  %1701 = vmatmul.mubr.f32.gmra.mxu0 %v1125
  %v1702 = vpop.f32.mrf.mxu0
  %v1703 = vadd.f32 %v614, %v1702
  %v1704 = vpop.f32.mrf.mxu0
  %1705 = vmatprep.mubr.f32.mxu0 0.0
  %1706 = vmatmul.mubr.f32.gmra.mxu0 %v1128
  %v1707 = vpop.f32.mrf.mxu0
  %v1708 = vadd.f32 %v619, %v1707
  %v1709 = vpop.f32.mrf.mxu0
  %1710 = vmatprep.mubr.f32.mxu0 0.0
  %1711 = vmatmul.mubr.f32.gmra.mxu0 %v1131
  %v1712 = vpop.f32.mrf.mxu0
  %v1713 = vadd.f32 %v624, %v1712
  %v1714 = vpop.f32.mrf.mxu0
  %1715 = vmatprep.mubr.f32.mxu0 0.0
  %1716 = vmatmul.mubr.f32.gmra.mxu0 %v1134
  %v1717 = vpop.f32.mrf.mxu0
  %v1718 = vadd.f32 %v629, %v1717
  %v1719 = vpop.f32.mrf.mxu0
  %1720 = vmatprep.mubr.f32.mxu0 0.0
  %1721 = vmatmul.mubr.f32.gmra.mxu0 %v1137
  %v1722 = vpop.f32.mrf.mxu0
  %v1723 = vadd.f32 %v634, %v1722
  %v1724 = vpop.f32.mrf.mxu0
  %1725 = vmatprep.mubr.f32.mxu0 0.0
  %1726 = vmatmul.mubr.f32.gmra.mxu0 %v1140
  %v1727 = vpop.f32.mrf.mxu0
  %v1728 = vadd.f32 %v639, %v1727
  %v1729 = vpop.f32.mrf.mxu0
  %1730 = vmatprep.mubr.f32.mxu0 0.0
  %1731 = vmatmul.mubr.f32.gmra.mxu0 %v1143
  %v1732 = vpop.f32.mrf.mxu0
  %v1733 = vadd.f32 %v644, %v1732
  %v1734 = vpop.f32.mrf.mxu0
  %1735 = vmatprep.mubr.f32.mxu0 0.0
  %1736 = vmatmul.mubr.f32.gmra.mxu0 %v1146
  %v1737 = vpop.f32.mrf.mxu0
  %v1738 = vadd.f32 %v649, %v1737
  %v1739 = vpop.f32.mrf.mxu0
  %1740 = vmatprep.mubr.f32.mxu0 0.0
  %1741 = vmatmul.mubr.f32.gmra.mxu0 %v1149
  %v1742 = vpop.f32.mrf.mxu0
  %v1743 = vadd.f32 %v654, %v1742
  %v1744 = vpop.f32.mrf.mxu0
  %1745 = vmatprep.mubr.f32.mxu0 0.0
  %1746 = vmatmul.mubr.f32.gmra.mxu0 %v1152
  %v1747 = vpop.f32.mrf.mxu0
  %v1748 = vadd.f32 %v659, %v1747
  %v1749 = vpop.f32.mrf.mxu0
  %1750 = vmatprep.mubr.f32.mxu0 0.0
  %1751 = vmatmul.mubr.f32.gmra.mxu0 %v1155
  %v1752 = vpop.f32.mrf.mxu0
  %v1753 = vadd.f32 %v664, %v1752
  %v1754 = vpop.f32.mrf.mxu0
  %1755 = vmatprep.mubr.f32.mxu0 0.0
  %1756 = vmatmul.mubr.f32.gmra.mxu0 %v1158
  %v1757 = vpop.f32.mrf.mxu0
  %v1758 = vadd.f32 %v669, %v1757
  %v1759 = vpop.f32.mrf.mxu0
  %1760 = vmatprep.mubr.f32.mxu0 0.0
  %1761 = vmatmul.mubr.f32.gmra.mxu0 %v1161
  %v1762 = vpop.f32.mrf.mxu0
  %v1763 = vadd.f32 %v674, %v1762
  %v1764 = vpop.f32.mrf.mxu0
  %1765 = vmatprep.mubr.f32.mxu0 0.0
  %1766 = vmatmul.mubr.f32.gmra.mxu0 %v1164
  %v1767 = vpop.f32.mrf.mxu0
  %v1768 = vadd.f32 %v679, %v1767
  %v1769 = vpop.f32.mrf.mxu0
  %1770 = vmatprep.mubr.f32.mxu0 0.0
  %1771 = vmatmul.mubr.f32.gmra.mxu0 %v1167
  %v1772 = vpop.f32.mrf.mxu0
  %v1773 = vadd.f32 %v684, %v1772
  %v1774 = vpop.f32.mrf.mxu0
  %1775 = vmatprep.mubr.f32.mxu0 0.0
  %1776 = vmatmul.mubr.f32.gmra.mxu0 %v1170
  %v1777 = vpop.f32.mrf.mxu0
  %v1778 = vadd.f32 %v689, %v1777
  %v1779 = vpop.f32.mrf.mxu0
  %1780 = vmatprep.mubr.f32.mxu0 0.0
  %1781 = vmatmul.mubr.f32.gmra.mxu0 %v1173
  %v1782 = vpop.f32.mrf.mxu0
  %v1783 = vadd.f32 %v694, %v1782
  %v1784 = vpop.f32.mrf.mxu0
  %1785 = vmatprep.mubr.f32.mxu0 0.0
  %1786 = vmatmul.mubr.f32.gmra.mxu0 %v1176
  %v1787 = vpop.f32.mrf.mxu0
  %v1788 = vadd.f32 %v699, %v1787
  %v1789 = vpop.f32.mrf.mxu0
  %1790 = vmatprep.mubr.f32.mxu0 0.0
  %1791 = vmatmul.mubr.f32.gmra.mxu0 %v1179
  %v1792 = vpop.f32.mrf.mxu0
  %v1793 = vadd.f32 %v704, %v1792
  %v1794 = vpop.f32.mrf.mxu0
  %1795 = vmatprep.mubr.f32.mxu0 0.0
  %1796 = vmatmul.mubr.f32.gmra.mxu0 %v1182
  %v1797 = vpop.f32.mrf.mxu0
  %v1798 = vadd.f32 %v709, %v1797
  %v1799 = vpop.f32.mrf.mxu0
  %1800 = vmatprep.mubr.f32.mxu0 0.0
  %1801 = vmatmul.mubr.f32.gmra.mxu0 %v1185
  %v1802 = vpop.f32.mrf.mxu0
  %v1803 = vadd.f32 %v714, %v1802
  %v1804 = vpop.f32.mrf.mxu0
  %1805 = vmatprep.mubr.f32.mxu0 0.0
  %1806 = vmatmul.mubr.f32.gmra.mxu0 %v1188
  %v1807 = vpop.f32.mrf.mxu0
  %v1808 = vadd.f32 %v719, %v1807
  %v1809 = vpop.f32.mrf.mxu0
  %1810 = vmatprep.mubr.f32.mxu0 0.0
  %1811 = vmatmul.mubr.f32.gmra.mxu0 %v1191
  %v1812 = vpop.f32.mrf.mxu0
  %v1813 = vadd.f32 %v724, %v1812
  %v1814 = vpop.f32.mrf.mxu0
  %1815 = vmatprep.mubr.f32.mxu0 0.0
  %1816 = vmatmul.mubr.f32.gmra.mxu0 %v1194
  %v1817 = vpop.f32.mrf.mxu0
  %v1818 = vadd.f32 %v729, %v1817
  %v1819 = vpop.f32.mrf.mxu0
  %1820 = vmatprep.mubr.f32.mxu0 0.0
  %1821 = vmatmul.mubr.f32.gmra.mxu0 %v1197
  %v1822 = vpop.f32.mrf.mxu0
  %v1823 = vadd.f32 %v734, %v1822
  %v1824 = vpop.f32.mrf.mxu0
  %1825 = vmatprep.mubr.f32.mxu0 0.0
  %1826 = vmatmul.mubr.f32.gmra.mxu0 %v1200
  %v1827 = vpop.f32.mrf.mxu0
  %v1828 = vadd.f32 %v739, %v1827
  %v1829 = vpop.f32.mrf.mxu0
  %1830 = vmatprep.mubr.f32.mxu0 0.0
  %1831 = vmatmul.mubr.f32.gmra.mxu0 %v1203
  %v1832 = vpop.f32.mrf.mxu0
  %v1833 = vadd.f32 %v744, %v1832
  %v1834 = vpop.f32.mrf.mxu0
  %1835 = vmatprep.mubr.f32.mxu0 0.0
  %1836 = vmatmul.mubr.f32.gmra.mxu0 %v1206
  %v1837 = vpop.f32.mrf.mxu0
  %v1838 = vadd.f32 %v749, %v1837
  %v1839 = vpop.f32.mrf.mxu0
  %1840 = vmatprep.mubr.f32.mxu0 0.0
  %1841 = vmatmul.mubr.f32.gmra.mxu0 %v1209
  %v1842 = vpop.f32.mrf.mxu0
  %v1843 = vadd.f32 %v754, %v1842
  %v1844 = vpop.f32.mrf.mxu0
  %1845 = vmatprep.mubr.f32.mxu0 0.0
  %1846 = vmatmul.mubr.f32.gmra.mxu0 %v1212
  %v1847 = vpop.f32.mrf.mxu0
  %v1848 = vadd.f32 %v759, %v1847
  %v1849 = vpop.f32.mrf.mxu0
  %1850 = vmatprep.mubr.f32.mxu0 0.0
  %1851 = vmatmul.mubr.f32.gmra.mxu0 %v1215
  %v1852 = vpop.f32.mrf.mxu0
  %v1853 = vadd.f32 %v764, %v1852
  %v1854 = vpop.f32.mrf.mxu0
  %1855 = vmatprep.mubr.f32.mxu0 0.0
  %1856 = vmatmul.mubr.f32.gmra.mxu0 %v1218
  %v1857 = vpop.f32.mrf.mxu0
  %v1858 = vadd.f32 %v769, %v1857
  %v1859 = vpop.f32.mrf.mxu0
  %1860 = vmatprep.mubr.f32.mxu0 0.0
  %1861 = vmatmul.mubr.f32.gmra.mxu0 %v1221
  %v1862 = vpop.f32.mrf.mxu0
  %v1863 = vadd.f32 %v774, %v1862
  %v1864 = vpop.f32.mrf.mxu0
  %1865 = vmatprep.mubr.f32.mxu0 0.0
  %1866 = vmatmul.mubr.f32.gmra.mxu0 %v1224
  %v1867 = vpop.f32.mrf.mxu0
  %v1868 = vadd.f32 %v779, %v1867
  %v1869 = vpop.f32.mrf.mxu0
  %1870 = vmatprep.mubr.f32.mxu0 0.0
  %1871 = vmatmul.mubr.f32.gmra.mxu0 %v1227
  %v1872 = vpop.f32.mrf.mxu0
  %v1873 = vadd.f32 %v784, %v1872
  %v1874 = vpop.f32.mrf.mxu0
  %1875 = vmatprep.mubr.f32.mxu0 0.0
  %1876 = vmatmul.mubr.f32.gmra.mxu0 %v1230
  %v1877 = vpop.f32.mrf.mxu0
  %v1878 = vadd.f32 %v789, %v1877
  %v1879 = vpop.f32.mrf.mxu0
  %1880 = vmatprep.mubr.f32.mxu0 0.0
  %1881 = vmatmul.mubr.f32.gmra.mxu0 %v1233
  %v1882 = vpop.f32.mrf.mxu0
  %v1883 = vadd.f32 %v794, %v1882
  %v1884 = vpop.f32.mrf.mxu0
  %1885 = vmatprep.mubr.f32.mxu0 0.0
  %1886 = vmatmul.mubr.f32.gmra.mxu0 %v1236
  %v1887 = vpop.f32.mrf.mxu0
  %v1888 = vadd.f32 %v799, %v1887
  %v1889 = vpop.f32.mrf.mxu0
  %1890 = vmatprep.mubr.f32.mxu0 0.0
  %1891 = vmatmul.mubr.f32.gmra.mxu0 %v1239
  %v1892 = vpop.f32.mrf.mxu0
  %v1893 = vadd.f32 %v804, %v1892
  %v1894 = vpop.f32.mrf.mxu0
  %1895 = vmatprep.mubr.f32.mxu0 0.0
  %1896 = vmatmul.mubr.f32.gmra.mxu0 %v1242
  %v1897 = vpop.f32.mrf.mxu0
  %v1898 = vadd.f32 %v809, %v1897
  %v1899 = vpop.f32.mrf.mxu0
  %1900 = vmatprep.mubr.f32.mxu0 0.0
  %1901 = vmatmul.mubr.f32.gmra.mxu0 %v1245
  %v1902 = vpop.f32.mrf.mxu0
  %v1903 = vadd.f32 %v814, %v1902
  %v1904 = vpop.f32.mrf.mxu0
  %1905 = vmatprep.mubr.f32.mxu0 0.0
  %1906 = vmatmul.mubr.f32.gmra.mxu0 %v1248
  %v1907 = vpop.f32.mrf.mxu0
  %v1908 = vadd.f32 %v819, %v1907
  %v1909 = vpop.f32.mrf.mxu0
  %1910 = vmatprep.mubr.f32.mxu0 0.0
  %1911 = vmatmul.mubr.f32.gmra.mxu0 %v1251
  %v1912 = vpop.f32.mrf.mxu0
  %v1913 = vadd.f32 %v824, %v1912
  %v1914 = vpop.f32.mrf.mxu0
  %1915 = vmatprep.mubr.f32.mxu0 0.0
  %1916 = vmatmul.mubr.f32.gmra.mxu0 %v1254
  %v1917 = vpop.f32.mrf.mxu0
  %v1918 = vadd.f32 %v829, %v1917
  %v1919 = vpop.f32.mrf.mxu0
  %1920 = vmatprep.mubr.f32.mxu0 0.0
  %1921 = vmatmul.mubr.f32.gmra.mxu0 %v1257
  %v1922 = vpop.f32.mrf.mxu0
  %v1923 = vadd.f32 %v834, %v1922
  %v1924 = vpop.f32.mrf.mxu0
  %1925 = vmatprep.mubr.f32.mxu0 0.0
  %1926 = vmatmul.mubr.f32.gmra.mxu0 %v1260
  %v1927 = vpop.f32.mrf.mxu0
  %v1928 = vadd.f32 %v839, %v1927
  %v1929 = vpop.f32.mrf.mxu0
  %1930 = vmatprep.mubr.f32.mxu0 0.0
  %1931 = vmatmul.mubr.f32.gmra.mxu0 %v1263
  %v1932 = vpop.f32.mrf.mxu0
  %v1933 = vadd.f32 %v844, %v1932
  %v1934 = vpop.f32.mrf.mxu0
  %1935 = vmatprep.mubr.f32.mxu0 0.0
  %1936 = vmatmul.mubr.f32.gmra.mxu0 %v1266
  %v1937 = vpop.f32.mrf.mxu0
  %v1938 = vadd.f32 %v849, %v1937
  %v1939 = vpop.f32.mrf.mxu0
  %1940 = vmatprep.mubr.f32.mxu0 0.0
  %1941 = vmatmul.mubr.f32.gmra.mxu0 %v1269
  %v1942 = vpop.f32.mrf.mxu0
  %v1943 = vadd.f32 %v854, %v1942
  %v1944 = vpop.f32.mrf.mxu0
  %1945 = vmatprep.mubr.f32.mxu0 0.0
  %1946 = vmatmul.mubr.f32.gmra.mxu0 %v1272
  %v1947 = vpop.f32.mrf.mxu0
  %v1948 = vadd.f32 %v859, %v1947
  %v1949 = vpop.f32.mrf.mxu0
  %1950 = vmatprep.mubr.f32.mxu0 0.0
  %1951 = vmatmul.mubr.f32.gmra.mxu0 %v1275
  %v1952 = vpop.f32.mrf.mxu0
  %v1953 = vadd.f32 %v864, %v1952
  %v1954 = vpop.f32.mrf.mxu0
  %1955 = vmatprep.mubr.f32.mxu0 0.0
  %1956 = vmatmul.mubr.f32.gmra.mxu0 %v1278
  %v1957 = vpop.f32.mrf.mxu0
  %v1958 = vadd.f32 %v869, %v1957
  %v1959 = vpop.f32.mrf.mxu0
  %1960 = vmatprep.mubr.f32.mxu0 0.0
  %1961 = vmatmul.mubr.f32.gmra.mxu0 %v1281
  %v1962 = vpop.f32.mrf.mxu0
  %v1963 = vadd.f32 %v874, %v1962
  %v1964 = vpop.f32.mrf.mxu0
  %1965 = vmatprep.mubr.f32.mxu0 0.0
  %1966 = vmatmul.mubr.f32.gmra.mxu0 %v1284
  %v1967 = vpop.f32.mrf.mxu0
  %v1968 = vadd.f32 %v879, %v1967
  %v1969 = vpop.f32.mrf.mxu0
  %1970 = vmatprep.mubr.f32.mxu0 0.0
  %1971 = vmatmul.mubr.f32.gmra.mxu0 %v1287
  %v1972 = vpop.f32.mrf.mxu0
  %v1973 = vadd.f32 %v884, %v1972
  %v1974 = vpop.f32.mrf.mxu0
  %1975 = vmatprep.mubr.f32.mxu0 0.0
  %1976 = vmatmul.mubr.f32.gmra.mxu0 %v1290
  %v1977 = vpop.f32.mrf.mxu0
  %v1978 = vadd.f32 %v889, %v1977
  %v1979 = vpop.f32.mrf.mxu0
  %1980 = vmatprep.mubr.f32.mxu0 0.0
  %1981 = vmatmul.mubr.f32.gmra.mxu0 %v1293
  %v1982 = vpop.f32.mrf.mxu0
  %v1983 = vadd.f32 %v894, %v1982
  %v1984 = vpop.f32.mrf.mxu0
  %1985 = vmatprep.mubr.f32.mxu0 0.0
  %1986 = vmatmul.mubr.f32.gmra.mxu0 %v1296
  %v1987 = vpop.f32.mrf.mxu0
  %v1988 = vadd.f32 %v899, %v1987
  %v1989 = vpop.f32.mrf.mxu0
  %1990 = vmatprep.mubr.f32.mxu0 0.0
  %1991 = vmatmul.mubr.f32.gmra.mxu0 %v1299
  %v1992 = vpop.f32.mrf.mxu0
  %v1993 = vadd.f32 %v904, %v1992
  %v1994 = vpop.f32.mrf.mxu0
  %1995 = vmatprep.mubr.f32.mxu0 0.0
  %1996 = vmatmul.mubr.f32.gmra.mxu0 %v1302
  %v1997 = vpop.f32.mrf.mxu0
  %v1998 = vadd.f32 %v909, %v1997
  %v1999 = vpop.f32.mrf.mxu0
  %2000 = vmatprep.mubr.f32.mxu0 0.0
  %2001 = vmatmul.mubr.f32.gmra.mxu0 %v1305
  %v2002 = vpop.f32.mrf.mxu0
  %v2003 = vadd.f32 %v914, %v2002
  %v2004 = vpop.f32.mrf.mxu0
  %2005 = vmatprep.mubr.f32.mxu0 0.0
  %2006 = vmatmul.mubr.f32.gmra.mxu0 %v1308
  %v2007 = vpop.f32.mrf.mxu0
  %v2008 = vadd.f32 %v919, %v2007
  %v2009 = vpop.f32.mrf.mxu0
  %2010 = vmatprep.mubr.f32.mxu0 0.0
  %2011 = vmatmul.mubr.f32.gmra.mxu0 %v1311
  %v2012 = vpop.f32.mrf.mxu0
  %v2013 = vadd.f32 %v924, %v2012
  %v2014 = vpop.f32.mrf.mxu0
  %2015 = vmatprep.mubr.f32.mxu0 0.0
  %2016 = vmatmul.mubr.f32.gmra.mxu0 %v1314
  %v2017 = vpop.f32.mrf.mxu0
  %v2018 = vadd.f32 %v929, %v2017
  %v2019 = vpop.f32.mrf.mxu0
  %2020 = vdwg.mxu0
  %2021 = vst [vmem:[#allocation2] sm:$0xff] %v1383
  %2022 = vst [vmem:[#allocation2 + $0x8] sm:$0xff] %v1388
  %2023 = vst [vmem:[#allocation2 + $0x10] sm:$0xff] %v1393
  %2024 = vst [vmem:[#allocation2 + $0x18] sm:$0xff] %v1398
  %2025 = vst [vmem:[#allocation2 + $0x20] sm:$0xff] %v1403
  %2026 = vst [vmem:[#allocation2 + $0x28] sm:$0xff] %v1408
  %2027 = vst [vmem:[#allocation2 + $0x30] sm:$0xff] %v1413
  %2028 = vst [vmem:[#allocation2 + $0x38] sm:$0xff] %v1418
  %2029 = vst [vmem:[#allocation2 + $0x40] sm:$0xff] %v1423
  %2030 = vst [vmem:[#allocation2 + $0x48] sm:$0xff] %v1428
  %2031 = vst [vmem:[#allocation2 + $0x50] sm:$0xff] %v1433
  %2032 = vst [vmem:[#allocation2 + $0x58] sm:$0xff] %v1438
  %2033 = vst [vmem:[#allocation2 + $0x60] sm:$0xff] %v1443
  %2034 = vst [vmem:[#allocation2 + $0x68] sm:$0xff] %v1448
  %2035 = vst [vmem:[#allocation2 + $0x70] sm:$0xff] %v1453
  %2036 = vst [vmem:[#allocation2 + $0x78] sm:$0xff] %v1458
  %2037 = vst [vmem:[#allocation2 + $0x80] sm:$0xff] %v1463
  %2038 = vst [vmem:[#allocation2 + $0x88] sm:$0xff] %v1468
  %2039 = vst [vmem:[#allocation2 + $0x90] sm:$0xff] %v1473
  %2040 = vst [vmem:[#allocation2 + $0x98] sm:$0xff] %v1478
  %2041 = vst [vmem:[#allocation2 + $0xa0] sm:$0xff] %v1483
  %2042 = vst [vmem:[#allocation2 + $0xa8] sm:$0xff] %v1488
  %2043 = vst [vmem:[#allocation2 + $0xb0] sm:$0xff] %v1493
  %2044 = vst [vmem:[#allocation2 + $0xb8] sm:$0xff] %v1498
  %2045 = vst [vmem:[#allocation2 + $0xc0] sm:$0xff] %v1503
  %2046 = vst [vmem:[#allocation2 + $0xc8] sm:$0xff] %v1508
  %2047 = vst [vmem:[#allocation2 + $0xd0] sm:$0xff] %v1513
  %2048 = vst [vmem:[#allocation2 + $0xd8] sm:$0xff] %v1518
  %2049 = vst [vmem:[#allocation2 + $0xe0] sm:$0xff] %v1523
  %2050 = vst [vmem:[#allocation2 + $0xe8] sm:$0xff] %v1528
  %2051 = vst [vmem:[#allocation2 + $0xf0] sm:$0xff] %v1533
  %2052 = vst [vmem:[#allocation2 + $0xf8] sm:$0xff] %v1538
  %2053 = vst [vmem:[#allocation2 + $0x100] sm:$0xff] %v1543
  %2054 = vst [vmem:[#allocation2 + $0x108] sm:$0xff] %v1548
  %2055 = vst [vmem:[#allocation2 + $0x110] sm:$0xff] %v1553
  %2056 = vst [vmem:[#allocation2 + $0x118] sm:$0xff] %v1558
  %2057 = vst [vmem:[#allocation2 + $0x120] sm:$0xff] %v1563
  %2058 = vst [vmem:[#allocation2 + $0x128] sm:$0xff] %v1568
  %2059 = vst [vmem:[#allocation2 + $0x130] sm:$0xff] %v1573
  %2060 = vst [vmem:[#allocation2 + $0x138] sm:$0xff] %v1578
  %2061 = vst [vmem:[#allocation2 + $0x140] sm:$0xff] %v1583
  %2062 = vst [vmem:[#allocation2 + $0x148] sm:$0xff] %v1588
  %2063 = vst [vmem:[#allocation2 + $0x150] sm:$0xff] %v1593
  %2064 = vst [vmem:[#allocation2 + $0x158] sm:$0xff] %v1598
  %2065 = vst [vmem:[#allocation2 + $0x160] sm:$0xff] %v1603
  %2066 = vst [vmem:[#allocation2 + $0x168] sm:$0xff] %v1608
  %2067 = vst [vmem:[#allocation2 + $0x170] sm:$0xff] %v1613
  %2068 = vst [vmem:[#allocation2 + $0x178] sm:$0xff] %v1618
  %2069 = vst [vmem:[#allocation2 + $0x180] sm:$0xff] %v1623
  %2070 = vst [vmem:[#allocation2 + $0x188] sm:$0xff] %v1628
  %2071 = vst [vmem:[#allocation2 + $0x190] sm:$0xff] %v1633
  %2072 = vst [vmem:[#allocation2 + $0x198] sm:$0xff] %v1638
  %2073 = vst [vmem:[#allocation2 + $0x1a0] sm:$0xff] %v1643
  %2074 = vst [vmem:[#allocation2 + $0x1a8] sm:$0xff] %v1648
  %2075 = vst [vmem:[#allocation2 + $0x1b0] sm:$0xff] %v1653
  %2076 = vst [vmem:[#allocation2 + $0x1b8] sm:$0xff] %v1658
  %2077 = vst [vmem:[#allocation2 + $0x1c0] sm:$0xff] %v1663
  %2078 = vst [vmem:[#allocation2 + $0x1c8] sm:$0xff] %v1668
  %2079 = vst [vmem:[#allocation2 + $0x1d0] sm:$0xff] %v1673
  %2080 = vst [vmem:[#allocation2 + $0x1d8] sm:$0xff] %v1678
  %2081 = vst [vmem:[#allocation2 + $0x1e0] sm:$0xff] %v1683
  %2082 = vst [vmem:[#allocation2 + $0x1e8] sm:$0xff] %v1688
  %2083 = vst [vmem:[#allocation2 + $0x1f0] sm:$0xff] %v1693
  %2084 = vst [vmem:[#allocation2 + $0x1f8] sm:$0xff] %v1698
  %2085 = vst [vmem:[#allocation2 + $0x200] sm:$0xff] %v1703
  %2086 = vst [vmem:[#allocation2 + $0x208] sm:$0xff] %v1708
  %2087 = vst [vmem:[#allocation2 + $0x210] sm:$0xff] %v1713
  %2088 = vst [vmem:[#allocation2 + $0x218] sm:$0xff] %v1718
  %2089 = vst [vmem:[#allocation2 + $0x220] sm:$0xff] %v1723
  %2090 = vst [vmem:[#allocation2 + $0x228] sm:$0xff] %v1728
  %2091 = vst [vmem:[#allocation2 + $0x230] sm:$0xff] %v1733
  %2092 = vst [vmem:[#allocation2 + $0x238] sm:$0xff] %v1738
  %2093 = vst [vmem:[#allocation2 + $0x240] sm:$0xff] %v1743
  %2094 = vst [vmem:[#allocation2 + $0x248] sm:$0xff] %v1748
  %2095 = vst [vmem:[#allocation2 + $0x250] sm:$0xff] %v1753
  %2096 = vst [vmem:[#allocation2 + $0x258] sm:$0xff] %v1758
  %2097 = vst [vmem:[#allocation2 + $0x260] sm:$0xff] %v1763
  %2098 = vst [vmem:[#allocation2 + $0x268] sm:$0xff] %v1768
  %2099 = vst [vmem:[#allocation2 + $0x270] sm:$0xff] %v1773
  %2100 = vst [vmem:[#allocation2 + $0x278] sm:$0xff] %v1778
  %2101 = vst [vmem:[#allocation2 + $0x280] sm:$0xff] %v1783
  %2102 = vst [vmem:[#allocation2 + $0x288] sm:$0xff] %v1788
  %2103 = vst [vmem:[#allocation2 + $0x290] sm:$0xff] %v1793
  %2104 = vst [vmem:[#allocation2 + $0x298] sm:$0xff] %v1798
  %2105 = vst [vmem:[#allocation2 + $0x2a0] sm:$0xff] %v1803
  %2106 = vst [vmem:[#allocation2 + $0x2a8] sm:$0xff] %v1808
  %2107 = vst [vmem:[#allocation2 + $0x2b0] sm:$0xff] %v1813
  %2108 = vst [vmem:[#allocation2 + $0x2b8] sm:$0xff] %v1818
  %2109 = vst [vmem:[#allocation2 + $0x2c0] sm:$0xff] %v1823
  %2110 = vst [vmem:[#allocation2 + $0x2c8] sm:$0xff] %v1828
  %2111 = vst [vmem:[#allocation2 + $0x2d0] sm:$0xff] %v1833
  %2112 = vst [vmem:[#allocation2 + $0x2d8] sm:$0xff] %v1838
  %2113 = vst [vmem:[#allocation2 + $0x2e0] sm:$0xff] %v1843
  %2114 = vst [vmem:[#allocation2 + $0x2e8] sm:$0xff] %v1848
  %2115 = vst [vmem:[#allocation2 + $0x2f0] sm:$0xff] %v1853
  %2116 = vst [vmem:[#allocation2 + $0x2f8] sm:$0xff] %v1858
  %2117 = vst [vmem:[#allocation2 + $0x300] sm:$0xff] %v1863
  %2118 = vst [vmem:[#allocation2 + $0x308] sm:$0xff] %v1868
  %2119 = vst [vmem:[#allocation2 + $0x310] sm:$0xff] %v1873
  %2120 = vst [vmem:[#allocation2 + $0x318] sm:$0xff] %v1878
  %2121 = vst [vmem:[#allocation2 + $0x320] sm:$0xff] %v1883
  %2122 = vst [vmem:[#allocation2 + $0x328] sm:$0xff] %v1888
  %2123 = vst [vmem:[#allocation2 + $0x330] sm:$0xff] %v1893
  %2124 = vst [vmem:[#allocation2 + $0x338] sm:$0xff] %v1898
  %2125 = vst [vmem:[#allocation2 + $0x340] sm:$0xff] %v1903
  %2126 = vst [vmem:[#allocation2 + $0x348] sm:$0xff] %v1908
  %2127 = vst [vmem:[#allocation2 + $0x350] sm:$0xff] %v1913
  %2128 = vst [vmem:[#allocation2 + $0x358] sm:$0xff] %v1918
  %2129 = vst [vmem:[#allocation2 + $0x360] sm:$0xff] %v1923
  %2130 = vst [vmem:[#allocation2 + $0x368] sm:$0xff] %v1928
  %2131 = vst [vmem:[#allocation2 + $0x370] sm:$0xff] %v1933
  %2132 = vst [vmem:[#allocation2 + $0x378] sm:$0xff] %v1938
  %2133 = vst [vmem:[#allocation2 + $0x380] sm:$0xff] %v1943
  %2134 = vst [vmem:[#allocation2 + $0x388] sm:$0xff] %v1948
  %2135 = vst [vmem:[#allocation2 + $0x390] sm:$0xff] %v1953
  %2136 = vst [vmem:[#allocation2 + $0x398] sm:$0xff] %v1958
  %2137 = vst [vmem:[#allocation2 + $0x3a0] sm:$0xff] %v1963
  %2138 = vst [vmem:[#allocation2 + $0x3a8] sm:$0xff] %v1968
  %2139 = vst [vmem:[#allocation2 + $0x3b0] sm:$0xff] %v1973
  %2140 = vst [vmem:[#allocation2 + $0x3b8] sm:$0xff] %v1978
  %2141 = vst [vmem:[#allocation2 + $0x3c0] sm:$0xff] %v1983
  %2142 = vst [vmem:[#allocation2 + $0x3c8] sm:$0xff] %v1988
  %2143 = vst [vmem:[#allocation2 + $0x3d0] sm:$0xff] %v1993
  %2144 = vst [vmem:[#allocation2 + $0x3d8] sm:$0xff] %v1998
  %2145 = vst [vmem:[#allocation2 + $0x3e0] sm:$0xff] %v2003
  %2146 = vst [vmem:[#allocation2 + $0x3e8] sm:$0xff] %v2008
  %2147 = vst [vmem:[#allocation2 + $0x3f0] sm:$0xff] %v2013
  %2148 = vst [vmem:[#allocation2 + $0x3f8] sm:$0xff] %v2018
  %v2149 = vld [vmem:[%s3] sm:$0xff]
  %v2150 = vld [vmem:[%s3 + $0x8] sm:$0xff]
  %v2151 = vld [vmem:[%s3 + $0x10] sm:$0xff]
  %v2152 = vld [vmem:[%s3 + $0x18] sm:$0xff]
  %v2153 = vld [vmem:[%s3 + $0x20] sm:$0xff]
  %v2154 = vld [vmem:[%s3 + $0x28] sm:$0xff]
  %v2155 = vld [vmem:[%s3 + $0x30] sm:$0xff]
  %v2156 = vld [vmem:[%s3 + $0x38] sm:$0xff]
  %v2157 = vld [vmem:[%s3 + $0x40] sm:$0xff]
  %v2158 = vld [vmem:[%s3 + $0x48] sm:$0xff]
  %v2159 = vld [vmem:[%s3 + $0x50] sm:$0xff]
  %v2160 = vld [vmem:[%s3 + $0x58] sm:$0xff]
  %v2161 = vld [vmem:[%s3 + $0x60] sm:$0xff]
  %v2162 = vld [vmem:[%s3 + $0x68] sm:$0xff]
  %v2163 = vld [vmem:[%s3 + $0x70] sm:$0xff]
  %v2164 = vld [vmem:[%s3 + $0x78] sm:$0xff]
  %v2165 = vld [vmem:[#allocation2] sm:$0xff]
  %v2166 = vld [vmem:[#allocation2 + $0x8] sm:$0xff]
  %v2167 = vld [vmem:[#allocation2 + $0x10] sm:$0xff]
  %v2168 = vld [vmem:[#allocation2 + $0x18] sm:$0xff]
  %v2169 = vld [vmem:[#allocation2 + $0x20] sm:$0xff]
  %v2170 = vld [vmem:[#allocation2 + $0x28] sm:$0xff]
  %v2171 = vld [vmem:[#allocation2 + $0x30] sm:$0xff]
  %v2172 = vld [vmem:[#allocation2 + $0x38] sm:$0xff]
  %v2173 = vld [vmem:[#allocation2 + $0x40] sm:$0xff]
  %v2174 = vld [vmem:[#allocation2 + $0x48] sm:$0xff]
  %v2175 = vld [vmem:[#allocation2 + $0x50] sm:$0xff]
  %v2176 = vld [vmem:[#allocation2 + $0x58] sm:$0xff]
  %v2177 = vld [vmem:[#allocation2 + $0x60] sm:$0xff]
  %v2178 = vld [vmem:[#allocation2 + $0x68] sm:$0xff]
  %v2179 = vld [vmem:[#allocation2 + $0x70] sm:$0xff]
  %v2180 = vld [vmem:[#allocation2 + $0x78] sm:$0xff]
  %v2182 = vsel %vm931, %v2149, 0
  %v2185 = vsel %vm931, %v2150, 0
  %v2188 = vsel %vm931, %v2151, 0
  %v2191 = vsel %vm931, %v2152, 0
  %v2194 = vsel %vm931, %v2153, 0
  %v2197 = vsel %vm931, %v2154, 0
  %v2200 = vsel %vm931, %v2155, 0
  %v2203 = vsel %vm931, %v2156, 0
  %v2206 = vsel %vm931, %v2157, 0
  %v2209 = vsel %vm931, %v2158, 0
  %v2212 = vsel %vm931, %v2159, 0
  %v2215 = vsel %vm931, %v2160, 0
  %v2218 = vsel %vm931, %v2161, 0
  %v2221 = vsel %vm931, %v2162, 0
  %v2224 = vsel %vm931, %v2163, 0
  %v2227 = vsel %vm931, %v2164, 0
  %2229 = vmatprep.subr.mxu0 0.0
  %2230 = vmatpush1.msra.mxu0 0.0
  %2231 = vmatprep.subr.mxu0 0.0
  %2232 = vmatpush1.msra.mxu0 0.0
  %2233 = vmatprep.subr.mxu0 0.0
  %2234 = vmatpush1.msra.mxu0 0.0
  %2235 = vmatprep.subr.mxu0 0.0
  %2236 = vmatpush1.msra.mxu0 0.0
  %2237 = vmatprep.subr.mxu0 0.0
  %2238 = vmatpush1.msra.mxu0 0.0
  %2239 = vmatprep.subr.mxu0 0.0
  %2240 = vmatpush1.msra.mxu0 0.0
  %2241 = vmatprep.subr.mxu0 0.0
  %2242 = vmatpush1.msra.mxu0 0.0
  %2243 = vmatprep.subr.mxu0 0.0
  %2244 = vmatpush1.msra.mxu0 0.0
  %2245 = vmatprep.subr.mxu0 0.0
  %2246 = vmatpush1.msra.mxu0 0.0
  %2247 = vmatprep.subr.mxu0 0.0
  %2248 = vmatpush1.msra.mxu0 0.0
  %2249 = vmatprep.subr.mxu0 0.0
  %2250 = vmatpush1.msra.mxu0 0.0
  %2251 = vmatprep.subr.mxu0 0.0
  %2252 = vmatpush1.msra.mxu0 0.0
  %2253 = vmatprep.subr.mxu0 0.0
  %2254 = vmatpush1.msra.mxu0 0.0
  %2255 = vmatprep.subr.mxu0 0.0
  %2256 = vmatpush1.msra.mxu0 0.0
  %2257 = vmatprep.subr.mxu0 0.0
  %2258 = vmatpush1.msra.mxu0 0.0
  %2259 = vmatprep.subr.mxu0 0.0
  %2260 = vmatpush1.msra.mxu0 0.0
  %2261 = vmatprep.subr.mxu0 0.0
  %2262 = vmatpush2.msra.mxu0 0.0
  %2263 = vmatprep.subr.mxu0 0.0
  %2264 = vmatpush2.msra.mxu0 0.0
  %2265 = vmatprep.subr.mxu0 0.0
  %2266 = vmatpush2.msra.mxu0 0.0
  %2267 = vmatprep.subr.mxu0 0.0
  %2268 = vmatpush2.msra.mxu0 0.0
  %2269 = vmatprep.subr.mxu0 0.0
  %2270 = vmatpush2.msra.mxu0 0.0
  %2271 = vmatprep.subr.mxu0 0.0
  %2272 = vmatpush2.msra.mxu0 0.0
  %2273 = vmatprep.subr.mxu0 0.0
  %2274 = vmatpush2.msra.mxu0 0.0
  %2275 = vmatprep.subr.mxu0 0.0
  %2276 = vmatpush2.msra.mxu0 0.0
  %2277 = vmatprep.subr.mxu0 0.0
  %2278 = vmatpush2.msra.mxu0 0.0
  %2279 = vmatprep.subr.mxu0 0.0
  %2280 = vmatpush2.msra.mxu0 0.0
  %2281 = vmatprep.subr.mxu0 0.0
  %2282 = vmatpush2.msra.mxu0 0.0
  %2283 = vmatprep.subr.mxu0 0.0
  %2284 = vmatpush2.msra.mxu0 0.0
  %2285 = vmatprep.subr.mxu0 0.0
  %2286 = vmatpush2.msra.mxu0 0.0
  %2287 = vmatprep.subr.mxu0 0.0
  %2288 = vmatpush2.msra.mxu0 0.0
  %2289 = vmatprep.subr.mxu0 0.0
  %2290 = vmatpush2.msra.mxu0 0.0
  %2291 = vmatprep.subr.mxu0 0.0
  %2292 = vmatpush2.msra.mxu0 0.0
  %2293 = vmatprep.mubr.f32.mxu0 0.0
  %2294 = vmatmul.mubr.f32.gmra.mxu0 %v2182
  %v2295 = vpop.f32.mrf.mxu0
  %v2296 = vadd.f32 0.0, %v2295
  %v2297 = vpop.f32.mrf.mxu0
  %2298 = vmatprep.mubr.f32.mxu0 0.0
  %2299 = vmatmul.mubr.f32.gmra.mxu0 %v2185
  %v2300 = vpop.f32.mrf.mxu0
  %v2301 = vadd.f32 0.0, %v2300
  %v2302 = vpop.f32.mrf.mxu0
  %2303 = vmatprep.mubr.f32.mxu0 0.0
  %2304 = vmatmul.mubr.f32.gmra.mxu0 %v2188
  %v2305 = vpop.f32.mrf.mxu0
  %v2306 = vadd.f32 0.0, %v2305
  %v2307 = vpop.f32.mrf.mxu0
  %2308 = vmatprep.mubr.f32.mxu0 0.0
  %2309 = vmatmul.mubr.f32.gmra.mxu0 %v2191
  %v2310 = vpop.f32.mrf.mxu0
  %v2311 = vadd.f32 0.0, %v2310
  %v2312 = vpop.f32.mrf.mxu0
  %2313 = vmatprep.mubr.f32.mxu0 0.0
  %2314 = vmatmul.mubr.f32.gmra.mxu0 %v2194
  %v2315 = vpop.f32.mrf.mxu0
  %v2316 = vadd.f32 0.0, %v2315
  %v2317 = vpop.f32.mrf.mxu0
  %2318 = vmatprep.mubr.f32.mxu0 0.0
  %2319 = vmatmul.mubr.f32.gmra.mxu0 %v2197
  %v2320 = vpop.f32.mrf.mxu0
  %v2321 = vadd.f32 0.0, %v2320
  %v2322 = vpop.f32.mrf.mxu0
  %2323 = vmatprep.mubr.f32.mxu0 0.0
  %2324 = vmatmul.mubr.f32.gmra.mxu0 %v2200
  %v2325 = vpop.f32.mrf.mxu0
  %v2326 = vadd.f32 0.0, %v2325
  %v2327 = vpop.f32.mrf.mxu0
  %2328 = vmatprep.mubr.f32.mxu0 0.0
  %2329 = vmatmul.mubr.f32.gmra.mxu0 %v2203
  %v2330 = vpop.f32.mrf.mxu0
  %v2331 = vadd.f32 0.0, %v2330
  %v2332 = vpop.f32.mrf.mxu0
  %2333 = vmatprep.mubr.f32.mxu0 0.0
  %2334 = vmatmul.mubr.f32.gmra.mxu0 %v2206
  %v2335 = vpop.f32.mrf.mxu0
  %v2336 = vadd.f32 0.0, %v2335
  %v2337 = vpop.f32.mrf.mxu0
  %2338 = vmatprep.mubr.f32.mxu0 0.0
  %2339 = vmatmul.mubr.f32.gmra.mxu0 %v2209
  %v2340 = vpop.f32.mrf.mxu0
  %v2341 = vadd.f32 0.0, %v2340
  %v2342 = vpop.f32.mrf.mxu0
  %2343 = vmatprep.mubr.f32.mxu0 0.0
  %2344 = vmatmul.mubr.f32.gmra.mxu0 %v2212
  %v2345 = vpop.f32.mrf.mxu0
  %v2346 = vadd.f32 0.0, %v2345
  %v2347 = vpop.f32.mrf.mxu0
  %2348 = vmatprep.mubr.f32.mxu0 0.0
  %2349 = vmatmul.mubr.f32.gmra.mxu0 %v2215
  %v2350 = vpop.f32.mrf.mxu0
  %v2351 = vadd.f32 0.0, %v2350
  %v2352 = vpop.f32.mrf.mxu0
  %2353 = vmatprep.mubr.f32.mxu0 0.0
  %2354 = vmatmul.mubr.f32.gmra.mxu0 %v2218
  %v2355 = vpop.f32.mrf.mxu0
  %v2356 = vadd.f32 0.0, %v2355
  %v2357 = vpop.f32.mrf.mxu0
  %2358 = vmatprep.mubr.f32.mxu0 0.0
  %2359 = vmatmul.mubr.f32.gmra.mxu0 %v2221
  %v2360 = vpop.f32.mrf.mxu0
  %v2361 = vadd.f32 0.0, %v2360
  %v2362 = vpop.f32.mrf.mxu0
  %2363 = vmatprep.mubr.f32.mxu0 0.0
  %2364 = vmatmul.mubr.f32.gmra.mxu0 %v2224
  %v2365 = vpop.f32.mrf.mxu0
  %v2366 = vadd.f32 0.0, %v2365
  %v2367 = vpop.f32.mrf.mxu0
  %2368 = vmatprep.mubr.f32.mxu0 0.0
  %2369 = vmatmul.mubr.f32.gmra.mxu0 %v2227
  %v2370 = vpop.f32.mrf.mxu0
  %v2371 = vadd.f32 0.0, %v2370
  %v2372 = vpop.f32.mrf.mxu0
  %2373 = vdwg.mxu0
  %v2374 = vadd.f32 %v2165, %v2296
  %v2375 = vadd.f32 %v2166, %v2301
  %v2376 = vadd.f32 %v2167, %v2306
  %v2377 = vadd.f32 %v2168, %v2311
  %v2378 = vadd.f32 %v2169, %v2316
  %v2379 = vadd.f32 %v2170, %v2321
  %v2380 = vadd.f32 %v2171, %v2326
  %v2381 = vadd.f32 %v2172, %v2331
  %v2382 = vadd.f32 %v2173, %v2336
  %v2383 = vadd.f32 %v2174, %v2341
  %v2384 = vadd.f32 %v2175, %v2346
  %v2385 = vadd.f32 %v2176, %v2351
  %v2386 = vadd.f32 %v2177, %v2356
  %v2387 = vadd.f32 %v2178, %v2361
  %v2388 = vadd.f32 %v2179, %v2366
  %v2389 = vadd.f32 %v2180, %v2371
  %v2390 = vmul.f32 %v2374, 0.5
  %v2391 = vmul.f32 %v2375, 0.5
  %v2392 = vmul.f32 %v2376, 0.5
  %v2393 = vmul.f32 %v2377, 0.5
  %v2394 = vtanh.pop %v2390
  %v2395 = vtanh.pop %v2391
  %v2396 = vtanh.pop %v2392
  %v2397 = vtanh.pop %v2393
  %v2398 = vmul.f32 %v2394, 0.5
  %v2399 = vmul.f32 %v2395, 0.5
  %v2400 = vmul.f32 %v2396, 0.5
  %v2401 = vmul.f32 %v2397, 0.5
  %v2402 = vadd.f32 %v2398, 0.5
  %v2403 = vadd.f32 %v2399, 0.5
  %v2404 = vadd.f32 %v2400, 0.5
  %v2405 = vadd.f32 %v2401, 0.5
  %v2406 = vmul.f32 %v2378, 0.5
  %v2407 = vmul.f32 %v2379, 0.5
  %v2408 = vmul.f32 %v2380, 0.5
  %v2409 = vmul.f32 %v2381, 0.5
  %v2410 = vtanh.pop %v2406
  %v2411 = vtanh.pop %v2407
  %v2412 = vtanh.pop %v2408
  %v2413 = vtanh.pop %v2409
  %v2414 = vmul.f32 %v2410, 0.5
  %v2415 = vmul.f32 %v2411, 0.5
  %v2416 = vmul.f32 %v2412, 0.5
  %v2417 = vmul.f32 %v2413, 0.5
  %v2418 = vadd.f32 %v2414, 0.5
  %v2419 = vadd.f32 %v2415, 0.5
  %v2420 = vadd.f32 %v2416, 0.5
  %v2421 = vadd.f32 %v2417, 0.5
  %v2422 = vtanh.pop %v2382
  %v2423 = vtanh.pop %v2383
  %v2424 = vtanh.pop %v2384
  %v2425 = vtanh.pop %v2385
  %v2426 = vmul.f32 %v2386, 0.5
  %v2427 = vmul.f32 %v2387, 0.5
  %v2428 = vmul.f32 %v2388, 0.5
  %v2429 = vmul.f32 %v2389, 0.5
  %v2430 = vtanh.pop %v2426
  %v2431 = vtanh.pop %v2427
  %v2432 = vtanh.pop %v2428
  %v2433 = vtanh.pop %v2429
  %v2434 = vmul.f32 %v2430, 0.5
  %v2435 = vmul.f32 %v2431, 0.5
  %v2436 = vmul.f32 %v2432, 0.5
  %v2437 = vmul.f32 %v2433, 0.5
  %v2438 = vadd.f32 %v2434, 0.5
  %v2439 = vadd.f32 %v2435, 0.5
  %v2440 = vadd.f32 %v2436, 0.5
  %v2441 = vadd.f32 %v2437, 0.5
  %v2442 = vmul.f32 %v2418, 0.0
  %v2443 = vmul.f32 %v2419, 0.0
  %v2444 = vmul.f32 %v2420, 0.0
  %v2445 = vmul.f32 %v2421, 0.0
  %v2446 = vmul.f32 %v2402, %v2422
  %v2447 = vmul.f32 %v2403, %v2423
  %v2448 = vmul.f32 %v2404, %v2424
  %v2449 = vmul.f32 %v2405, %v2425
  %v2450 = vadd.f32 %v2442, %v2446
  %v2451 = vadd.f32 %v2443, %v2447
  %v2452 = vadd.f32 %v2444, %v2448
  %v2453 = vadd.f32 %v2445, %v2449
  %v2454 = vtanh.pop %v2450
  %v2455 = vtanh.pop %v2451
  %v2456 = vtanh.pop %v2452
  %v2457 = vtanh.pop %v2453
  %v2458 = vmul.f32 %v2438, %v2454
  %v2459 = vmul.f32 %v2439, %v2455
  %v2460 = vmul.f32 %v2440, %v2456
  %v2461 = vmul.f32 %v2441, %v2457
  %v2462 = vld [vmem:[#allocation2 + $0x80] sm:$0xff]
  %v2463 = vld [vmem:[#allocation2 + $0x88] sm:$0xff]
  %v2464 = vld [vmem:[#allocation2 + $0x90] sm:$0xff]
  %v2465 = vld [vmem:[#allocation2 + $0x98] sm:$0xff]
  %v2466 = vld [vmem:[#allocation2 + $0xa0] sm:$0xff]
  %v2467 = vld [vmem:[#allocation2 + $0xa8] sm:$0xff]
  %v2468 = vld [vmem:[#allocation2 + $0xb0] sm:$0xff]
  %v2469 = vld [vmem:[#allocation2 + $0xb8] sm:$0xff]
  %v2470 = vld [vmem:[#allocation2 + $0xc0] sm:$0xff]
  %v2471 = vld [vmem:[#allocation2 + $0xc8] sm:$0xff]
  %v2472 = vld [vmem:[#allocation2 + $0xd0] sm:$0xff]
  %v2473 = vld [vmem:[#allocation2 + $0xd8] sm:$0xff]
  %v2474 = vld [vmem:[#allocation2 + $0xe0] sm:$0xff]
  %v2475 = vld [vmem:[#allocation2 + $0xe8] sm:$0xff]
  %v2476 = vld [vmem:[#allocation2 + $0xf0] sm:$0xff]
  %v2477 = vld [vmem:[#allocation2 + $0xf8] sm:$0xff]
  %2478 = vmatprep.subr.mxu0 0.0
  %2479 = vmatpush1.msra.mxu0 0.0
  %2480 = vmatprep.subr.mxu0 0.0
  %2481 = vmatpush1.msra.mxu0 0.0
  %2482 = vmatprep.subr.mxu0 0.0
  %2483 = vmatpush1.msra.mxu0 0.0
  %2484 = vmatprep.subr.mxu0 0.0
  %2485 = vmatpush1.msra.mxu0 0.0
  %2486 = vmatprep.subr.mxu0 0.0
  %2487 = vmatpush1.msra.mxu0 0.0
  %2488 = vmatprep.subr.mxu0 0.0
  %2489 = vmatpush1.msra.mxu0 0.0
  %2490 = vmatprep.subr.mxu0 0.0
  %2491 = vmatpush1.msra.mxu0 0.0
  %2492 = vmatprep.subr.mxu0 0.0
  %2493 = vmatpush1.msra.mxu0 0.0
  %2494 = vmatprep.subr.mxu0 0.0
  %2495 = vmatpush1.msra.mxu0 0.0
  %2496 = vmatprep.subr.mxu0 0.0
  %2497 = vmatpush1.msra.mxu0 0.0
  %2498 = vmatprep.subr.mxu0 0.0
  %2499 = vmatpush1.msra.mxu0 0.0
  %2500 = vmatprep.subr.mxu0 0.0
  %2501 = vmatpush1.msra.mxu0 0.0
  %2502 = vmatprep.subr.mxu0 0.0
  %2503 = vmatpush1.msra.mxu0 %v2461
  %2504 = vmatprep.subr.mxu0 0.0
  %2505 = vmatpush1.msra.mxu0 %v2460
  %2506 = vmatprep.subr.mxu0 0.0
  %2507 = vmatpush1.msra.mxu0 %v2459
  %2508 = vmatprep.subr.mxu0 0.0
  %2509 = vmatpush1.msra.mxu0 %v2458
  %2510 = vmatprep.subr.mxu0 0.0
  %2511 = vmatpush2.msra.mxu0 0.0
  %2512 = vmatprep.subr.mxu0 0.0
  %2513 = vmatpush2.msra.mxu0 0.0
  %2514 = vmatprep.subr.mxu0 0.0
  %2515 = vmatpush2.msra.mxu0 0.0
  %2516 = vmatprep.subr.mxu0 0.0
  %2517 = vmatpush2.msra.mxu0 0.0
  %2518 = vmatprep.subr.mxu0 0.0
  %2519 = vmatpush2.msra.mxu0 0.0
  %2520 = vmatprep.subr.mxu0 0.0
  %2521 = vmatpush2.msra.mxu0 0.0
  %2522 = vmatprep.subr.mxu0 0.0
  %2523 = vmatpush2.msra.mxu0 0.0
  %2524 = vmatprep.subr.mxu0 0.0
  %2525 = vmatpush2.msra.mxu0 0.0
  %2526 = vmatprep.subr.mxu0 0.0
  %2527 = vmatpush2.msra.mxu0 0.0
  %2528 = vmatprep.subr.mxu0 0.0
  %2529 = vmatpush2.msra.mxu0 0.0
  %2530 = vmatprep.subr.mxu0 0.0
  %2531 = vmatpush2.msra.mxu0 0.0
  %2532 = vmatprep.subr.mxu0 0.0
  %2533 = vmatpush2.msra.mxu0 0.0
  %2534 = vmatprep.subr.mxu0 0.0
  %2535 = vmatpush2.msra.mxu0 0.0
  %2536 = vmatprep.subr.mxu0 0.0
  %2537 = vmatpush2.msra.mxu0 0.0
  %2538 = vmatprep.subr.mxu0 0.0
  %2539 = vmatpush2.msra.mxu0 0.0
  %2540 = vmatprep.subr.mxu0 0.0
  %2541 = vmatpush2.msra.mxu0 0.0
  %2542 = vmatprep.mubr.f32.mxu0 0.0
  %2543 = vmatmul.mubr.f32.gmra.mxu0 %v2182
  %v2544 = vpop.f32.mrf.mxu0
  %v2545 = vadd.f32 0.0, %v2544
  %v2546 = vpop.f32.mrf.mxu0
  %2547 = vmatprep.mubr.f32.mxu0 0.0
  %2548 = vmatmul.mubr.f32.gmra.mxu0 %v2185
  %v2549 = vpop.f32.mrf.mxu0
  %v2550 = vadd.f32 0.0, %v2549
  %v2551 = vpop.f32.mrf.mxu0
  %2552 = vmatprep.mubr.f32.mxu0 0.0
  %2553 = vmatmul.mubr.f32.gmra.mxu0 %v2188
  %v2554 = vpop.f32.mrf.mxu0
  %v2555 = vadd.f32 0.0, %v2554
  %v2556 = vpop.f32.mrf.mxu0
  %2557 = vmatprep.mubr.f32.mxu0 0.0
  %2558 = vmatmul.mubr.f32.gmra.mxu0 %v2191
  %v2559 = vpop.f32.mrf.mxu0
  %v2560 = vadd.f32 0.0, %v2559
  %v2561 = vpop.f32.mrf.mxu0
  %2562 = vmatprep.mubr.f32.mxu0 0.0
  %2563 = vmatmul.mubr.f32.gmra.mxu0 %v2194
  %v2564 = vpop.f32.mrf.mxu0
  %v2565 = vadd.f32 0.0, %v2564
  %v2566 = vpop.f32.mrf.mxu0
  %2567 = vmatprep.mubr.f32.mxu0 0.0
  %2568 = vmatmul.mubr.f32.gmra.mxu0 %v2197
  %v2569 = vpop.f32.mrf.mxu0
  %v2570 = vadd.f32 0.0, %v2569
  %v2571 = vpop.f32.mrf.mxu0
  %2572 = vmatprep.mubr.f32.mxu0 0.0
  %2573 = vmatmul.mubr.f32.gmra.mxu0 %v2200
  %v2574 = vpop.f32.mrf.mxu0
  %v2575 = vadd.f32 0.0, %v2574
  %v2576 = vpop.f32.mrf.mxu0
  %2577 = vmatprep.mubr.f32.mxu0 0.0
  %2578 = vmatmul.mubr.f32.gmra.mxu0 %v2203
  %v2579 = vpop.f32.mrf.mxu0
  %v2580 = vadd.f32 0.0, %v2579
  %v2581 = vpop.f32.mrf.mxu0
  %2582 = vmatprep.mubr.f32.mxu0 0.0
  %2583 = vmatmul.mubr.f32.gmra.mxu0 %v2206
  %v2584 = vpop.f32.mrf.mxu0
  %v2585 = vadd.f32 0.0, %v2584
  %v2586 = vpop.f32.mrf.mxu0
  %2587 = vmatprep.mubr.f32.mxu0 0.0
  %2588 = vmatmul.mubr.f32.gmra.mxu0 %v2209
  %v2589 = vpop.f32.mrf.mxu0
  %v2590 = vadd.f32 0.0, %v2589
  %v2591 = vpop.f32.mrf.mxu0
  %2592 = vmatprep.mubr.f32.mxu0 0.0
  %2593 = vmatmul.mubr.f32.gmra.mxu0 %v2212
  %v2594 = vpop.f32.mrf.mxu0
  %v2595 = vadd.f32 0.0, %v2594
  %v2596 = vpop.f32.mrf.mxu0
  %2597 = vmatprep.mubr.f32.mxu0 0.0
  %2598 = vmatmul.mubr.f32.gmra.mxu0 %v2215
  %v2599 = vpop.f32.mrf.mxu0
  %v2600 = vadd.f32 0.0, %v2599
  %v2601 = vpop.f32.mrf.mxu0
  %2602 = vmatprep.mubr.f32.mxu0 0.0
  %2603 = vmatmul.mubr.f32.gmra.mxu0 %v2218
  %v2604 = vpop.f32.mrf.mxu0
  %v2605 = vadd.f32 0.0, %v2604
  %v2606 = vpop.f32.mrf.mxu0
  %2607 = vmatprep.mubr.f32.mxu0 0.0
  %2608 = vmatmul.mubr.f32.gmra.mxu0 %v2221
  %v2609 = vpop.f32.mrf.mxu0
  %v2610 = vadd.f32 0.0, %v2609
  %v2611 = vpop.f32.mrf.mxu0
  %2612 = vmatprep.mubr.f32.mxu0 0.0
  %2613 = vmatmul.mubr.f32.gmra.mxu0 %v2224
  %v2614 = vpop.f32.mrf.mxu0
  %v2615 = vadd.f32 0.0, %v2614
  %v2616 = vpop.f32.mrf.mxu0
  %2617 = vmatprep.mubr.f32.mxu0 0.0
  %2618 = vmatmul.mubr.f32.gmra.mxu0 %v2227
  %v2619 = vpop.f32.mrf.mxu0
  %v2620 = vadd.f32 0.0, %v2619
  %v2621 = vpop.f32.mrf.mxu0
  %2622 = vdwg.mxu0
  %v2623 = vadd.f32 %v2462, %v2545
  %v2624 = vadd.f32 %v2463, %v2550
  %v2625 = vadd.f32 %v2464, %v2555
  %v2626 = vadd.f32 %v2465, %v2560
  %v2627 = vadd.f32 %v2466, %v2565
  %v2628 = vadd.f32 %v2467, %v2570
  %v2629 = vadd.f32 %v2468, %v2575
  %v2630 = vadd.f32 %v2469, %v2580
  %v2631 = vadd.f32 %v2470, %v2585
  %v2632 = vadd.f32 %v2471, %v2590
  %v2633 = vadd.f32 %v2472, %v2595
  %v2634 = vadd.f32 %v2473, %v2600
  %v2635 = vadd.f32 %v2474, %v2605
  %v2636 = vadd.f32 %v2475, %v2610
  %v2637 = vadd.f32 %v2476, %v2615
  %v2638 = vadd.f32 %v2477, %v2620
  %v2639 = vmul.f32 %v2623, 0.5
  %v2640 = vmul.f32 %v2624, 0.5
  %v2641 = vmul.f32 %v2625, 0.5
  %v2642 = vmul.f32 %v2626, 0.5
  %v2643 = vtanh.pop %v2639
  %v2644 = vtanh.pop %v2640
  %v2645 = vtanh.pop %v2641
  %v2646 = vtanh.pop %v2642
  %v2647 = vmul.f32 %v2643, 0.5
  %v2648 = vmul.f32 %v2644, 0.5
  %v2649 = vmul.f32 %v2645, 0.5
  %v2650 = vmul.f32 %v2646, 0.5
  %v2651 = vadd.f32 %v2647, 0.5
  %v2652 = vadd.f32 %v2648, 0.5
  %v2653 = vadd.f32 %v2649, 0.5
  %v2654 = vadd.f32 %v2650, 0.5
  %v2655 = vmul.f32 %v2627, 0.5
  %v2656 = vmul.f32 %v2628, 0.5
  %v2657 = vmul.f32 %v2629, 0.5
  %v2658 = vmul.f32 %v2630, 0.5
  %v2659 = vtanh.pop %v2655
  %v2660 = vtanh.pop %v2656
  %v2661 = vtanh.pop %v2657
  %v2662 = vtanh.pop %v2658
  %v2663 = vmul.f32 %v2659, 0.5
  %v2664 = vmul.f32 %v2660, 0.5
  %v2665 = vmul.f32 %v2661, 0.5
  %v2666 = vmul.f32 %v2662, 0.5
  %v2667 = vadd.f32 %v2663, 0.5
  %v2668 = vadd.f32 %v2664, 0.5
  %v2669 = vadd.f32 %v2665, 0.5
  %v2670 = vadd.f32 %v2666, 0.5
  %v2671 = vtanh.pop %v2631
  %v2672 = vtanh.pop %v2632
  %v2673 = vtanh.pop %v2633
  %v2674 = vtanh.pop %v2634
  %v2675 = vmul.f32 %v2635, 0.5
  %v2676 = vmul.f32 %v2636, 0.5
  %v2677 = vmul.f32 %v2637, 0.5
  %v2678 = vmul.f32 %v2638, 0.5
  %v2679 = vtanh.pop %v2675
  %v2680 = vtanh.pop %v2676
  %v2681 = vtanh.pop %v2677
  %v2682 = vtanh.pop %v2678
  %v2683 = vmul.f32 %v2679, 0.5
  %v2684 = vmul.f32 %v2680, 0.5
  %v2685 = vmul.f32 %v2681, 0.5
  %v2686 = vmul.f32 %v2682, 0.5
  %v2687 = vadd.f32 %v2683, 0.5
  %v2688 = vadd.f32 %v2684, 0.5
  %v2689 = vadd.f32 %v2685, 0.5
  %v2690 = vadd.f32 %v2686, 0.5
  %v2691 = vmul.f32 %v2667, %v2450
  %v2692 = vmul.f32 %v2668, %v2451
  %v2693 = vmul.f32 %v2669, %v2452
  %v2694 = vmul.f32 %v2670, %v2453
  %v2695 = vmul.f32 %v2651, %v2671
  %v2696 = vmul.f32 %v2652, %v2672
  %v2697 = vmul.f32 %v2653, %v2673
  %v2698 = vmul.f32 %v2654, %v2674
  %v2699 = vadd.f32 %v2691, %v2695
  %v2700 = vadd.f32 %v2692, %v2696
  %v2701 = vadd.f32 %v2693, %v2697
  %v2702 = vadd.f32 %v2694, %v2698
  %v2703 = vtanh.pop %v2699
  %v2704 = vtanh.pop %v2700
  %v2705 = vtanh.pop %v2701
  %v2706 = vtanh.pop %v2702
  %v2707 = vmul.f32 %v2687, %v2703
  %v2708 = vmul.f32 %v2688, %v2704
  %v2709 = vmul.f32 %v2689, %v2705
  %v2710 = vmul.f32 %v2690, %v2706
  %v2711 = vld [vmem:[#allocation2 + $0x100] sm:$0xff]
  %v2712 = vld [vmem:[#allocation2 + $0x108] sm:$0xff]
  %v2713 = vld [vmem:[#allocation2 + $0x110] sm:$0xff]
  %v2714 = vld [vmem:[#allocation2 + $0x118] sm:$0xff]
  %v2715 = vld [vmem:[#allocation2 + $0x120] sm:$0xff]
  %v2716 = vld [vmem:[#allocation2 + $0x128] sm:$0xff]
  %v2717 = vld [vmem:[#allocation2 + $0x130] sm:$0xff]
  %v2718 = vld [vmem:[#allocation2 + $0x138] sm:$0xff]
  %v2719 = vld [vmem:[#allocation2 + $0x140] sm:$0xff]
  %v2720 = vld [vmem:[#allocation2 + $0x148] sm:$0xff]
  %v2721 = vld [vmem:[#allocation2 + $0x150] sm:$0xff]
  %v2722 = vld [vmem:[#allocation2 + $0x158] sm:$0xff]
  %v2723 = vld [vmem:[#allocation2 + $0x160] sm:$0xff]
  %v2724 = vld [vmem:[#allocation2 + $0x168] sm:$0xff]
  %v2725 = vld [vmem:[#allocation2 + $0x170] sm:$0xff]
  %v2726 = vld [vmem:[#allocation2 + $0x178] sm:$0xff]
  %2727 = vmatprep.subr.mxu0 0.0
  %2728 = vmatpush1.msra.mxu0 0.0
  %2729 = vmatprep.subr.mxu0 0.0
  %2730 = vmatpush1.msra.mxu0 0.0
  %2731 = vmatprep.subr.mxu0 0.0
  %2732 = vmatpush1.msra.mxu0 0.0
  %2733 = vmatprep.subr.mxu0 0.0
  %2734 = vmatpush1.msra.mxu0 0.0
  %2735 = vmatprep.subr.mxu0 0.0
  %2736 = vmatpush1.msra.mxu0 0.0
  %2737 = vmatprep.subr.mxu0 0.0
  %2738 = vmatpush1.msra.mxu0 0.0
  %2739 = vmatprep.subr.mxu0 0.0
  %2740 = vmatpush1.msra.mxu0 0.0
  %2741 = vmatprep.subr.mxu0 0.0
  %2742 = vmatpush1.msra.mxu0 0.0
  %2743 = vmatprep.subr.mxu0 0.0
  %2744 = vmatpush1.msra.mxu0 0.0
  %2745 = vmatprep.subr.mxu0 0.0
  %2746 = vmatpush1.msra.mxu0 0.0
  %2747 = vmatprep.subr.mxu0 0.0
  %2748 = vmatpush1.msra.mxu0 0.0
  %2749 = vmatprep.subr.mxu0 0.0
  %2750 = vmatpush1.msra.mxu0 0.0
  %2751 = vmatprep.subr.mxu0 0.0
  %2752 = vmatpush1.msra.mxu0 %v2710
  %2753 = vmatprep.subr.mxu0 0.0
  %2754 = vmatpush1.msra.mxu0 %v2709
  %2755 = vmatprep.subr.mxu0 0.0
  %2756 = vmatpush1.msra.mxu0 %v2708
  %2757 = vmatprep.subr.mxu0 0.0
  %2758 = vmatpush1.msra.mxu0 %v2707
  %2759 = vmatprep.subr.mxu0 0.0
  %2760 = vmatpush2.msra.mxu0 0.0
  %2761 = vmatprep.subr.mxu0 0.0
  %2762 = vmatpush2.msra.mxu0 0.0
  %2763 = vmatprep.subr.mxu0 0.0
  %2764 = vmatpush2.msra.mxu0 0.0
  %2765 = vmatprep.subr.mxu0 0.0
  %2766 = vmatpush2.msra.mxu0 0.0
  %2767 = vmatprep.subr.mxu0 0.0
  %2768 = vmatpush2.msra.mxu0 0.0
  %2769 = vmatprep.subr.mxu0 0.0
  %2770 = vmatpush2.msra.mxu0 0.0
  %2771 = vmatprep.subr.mxu0 0.0
  %2772 = vmatpush2.msra.mxu0 0.0
  %2773 = vmatprep.subr.mxu0 0.0
  %2774 = vmatpush2.msra.mxu0 0.0
  %2775 = vmatprep.subr.mxu0 0.0
  %2776 = vmatpush2.msra.mxu0 0.0
  %2777 = vmatprep.subr.mxu0 0.0
  %2778 = vmatpush2.msra.mxu0 0.0
  %2779 = vmatprep.subr.mxu0 0.0
  %2780 = vmatpush2.msra.mxu0 0.0
  %2781 = vmatprep.subr.mxu0 0.0
  %2782 = vmatpush2.msra.mxu0 0.0
  %2783 = vmatprep.subr.mxu0 0.0
  %2784 = vmatpush2.msra.mxu0 0.0
  %2785 = vmatprep.subr.mxu0 0.0
  %2786 = vmatpush2.msra.mxu0 0.0
  %2787 = vmatprep.subr.mxu0 0.0
  %2788 = vmatpush2.msra.mxu0 0.0
  %2789 = vmatprep.subr.mxu0 0.0
  %2790 = vmatpush2.msra.mxu0 0.0
  %2791 = vmatprep.mubr.f32.mxu0 0.0
  %2792 = vmatmul.mubr.f32.gmra.mxu0 %v2182
  %v2793 = vpop.f32.mrf.mxu0
  %v2794 = vadd.f32 0.0, %v2793
  %v2795 = vpop.f32.mrf.mxu0
  %2796 = vmatprep.mubr.f32.mxu0 0.0
  %2797 = vmatmul.mubr.f32.gmra.mxu0 %v2185
  %v2798 = vpop.f32.mrf.mxu0
  %v2799 = vadd.f32 0.0, %v2798
  %v2800 = vpop.f32.mrf.mxu0
  %2801 = vmatprep.mubr.f32.mxu0 0.0
  %2802 = vmatmul.mubr.f32.gmra.mxu0 %v2188
  %v2803 = vpop.f32.mrf.mxu0
  %v2804 = vadd.f32 0.0, %v2803
  %v2805 = vpop.f32.mrf.mxu0
  %2806 = vmatprep.mubr.f32.mxu0 0.0
  %2807 = vmatmul.mubr.f32.gmra.mxu0 %v2191
  %v2808 = vpop.f32.mrf.mxu0
  %v2809 = vadd.f32 0.0, %v2808
  %v2810 = vpop.f32.mrf.mxu0
  %2811 = vmatprep.mubr.f32.mxu0 0.0
  %2812 = vmatmul.mubr.f32.gmra.mxu0 %v2194
  %v2813 = vpop.f32.mrf.mxu0
  %v2814 = vadd.f32 0.0, %v2813
  %v2815 = vpop.f32.mrf.mxu0
  %2816 = vmatprep.mubr.f32.mxu0 0.0
  %2817 = vmatmul.mubr.f32.gmra.mxu0 %v2197
  %v2818 = vpop.f32.mrf.mxu0
  %v2819 = vadd.f32 0.0, %v2818
  %v2820 = vpop.f32.mrf.mxu0
  %2821 = vmatprep.mubr.f32.mxu0 0.0
  %2822 = vmatmul.mubr.f32.gmra.mxu0 %v2200
  %v2823 = vpop.f32.mrf.mxu0
  %v2824 = vadd.f32 0.0, %v2823
  %v2825 = vpop.f32.mrf.mxu0
  %2826 = vmatprep.mubr.f32.mxu0 0.0
  %2827 = vmatmul.mubr.f32.gmra.mxu0 %v2203
  %v2828 = vpop.f32.mrf.mxu0
  %v2829 = vadd.f32 0.0, %v2828
  %v2830 = vpop.f32.mrf.mxu0
  %2831 = vmatprep.mubr.f32.mxu0 0.0
  %2832 = vmatmul.mubr.f32.gmra.mxu0 %v2206
  %v2833 = vpop.f32.mrf.mxu0
  %v2834 = vadd.f32 0.0, %v2833
  %v2835 = vpop.f32.mrf.mxu0
  %2836 = vmatprep.mubr.f32.mxu0 0.0
  %2837 = vmatmul.mubr.f32.gmra.mxu0 %v2209
  %v2838 = vpop.f32.mrf.mxu0
  %v2839 = vadd.f32 0.0, %v2838
  %v2840 = vpop.f32.mrf.mxu0
  %2841 = vmatprep.mubr.f32.mxu0 0.0
  %2842 = vmatmul.mubr.f32.gmra.mxu0 %v2212
  %v2843 = vpop.f32.mrf.mxu0
  %v2844 = vadd.f32 0.0, %v2843
  %v2845 = vpop.f32.mrf.mxu0
  %2846 = vmatprep.mubr.f32.mxu0 0.0
  %2847 = vmatmul.mubr.f32.gmra.mxu0 %v2215
  %v2848 = vpop.f32.mrf.mxu0
  %v2849 = vadd.f32 0.0, %v2848
  %v2850 = vpop.f32.mrf.mxu0
  %2851 = vmatprep.mubr.f32.mxu0 0.0
  %2852 = vmatmul.mubr.f32.gmra.mxu0 %v2218
  %v2853 = vpop.f32.mrf.mxu0
  %v2854 = vadd.f32 0.0, %v2853
  %v2855 = vpop.f32.mrf.mxu0
  %2856 = vmatprep.mubr.f32.mxu0 0.0
  %2857 = vmatmul.mubr.f32.gmra.mxu0 %v2221
  %v2858 = vpop.f32.mrf.mxu0
  %v2859 = vadd.f32 0.0, %v2858
  %v2860 = vpop.f32.mrf.mxu0
  %2861 = vmatprep.mubr.f32.mxu0 0.0
  %2862 = vmatmul.mubr.f32.gmra.mxu0 %v2224
  %v2863 = vpop.f32.mrf.mxu0
  %v2864 = vadd.f32 0.0, %v2863
  %v2865 = vpop.f32.mrf.mxu0
  %2866 = vmatprep.mubr.f32.mxu0 0.0
  %2867 = vmatmul.mubr.f32.gmra.mxu0 %v2227
  %v2868 = vpop.f32.mrf.mxu0
  %v2869 = vadd.f32 0.0, %v2868
  %v2870 = vpop.f32.mrf.mxu0
  %2871 = vdwg.mxu0
  %v2872 = vadd.f32 %v2711, %v2794
  %v2873 = vadd.f32 %v2712, %v2799
  %v2874 = vadd.f32 %v2713, %v2804
  %v2875 = vadd.f32 %v2714, %v2809
  %v2876 = vadd.f32 %v2715, %v2814
  %v2877 = vadd.f32 %v2716, %v2819
  %v2878 = vadd.f32 %v2717, %v2824
  %v2879 = vadd.f32 %v2718, %v2829
  %v2880 = vadd.f32 %v2719, %v2834
  %v2881 = vadd.f32 %v2720, %v2839
  %v2882 = vadd.f32 %v2721, %v2844
  %v2883 = vadd.f32 %v2722, %v2849
  %v2884 = vadd.f32 %v2723, %v2854
  %v2885 = vadd.f32 %v2724, %v2859
  %v2886 = vadd.f32 %v2725, %v2864
  %v2887 = vadd.f32 %v2726, %v2869
  %v2888 = vmul.f32 %v2872, 0.5
  %v2889 = vmul.f32 %v2873, 0.5
  %v2890 = vmul.f32 %v2874, 0.5
  %v2891 = vmul.f32 %v2875, 0.5
  %v2892 = vtanh.pop %v2888
  %v2893 = vtanh.pop %v2889
  %v2894 = vtanh.pop %v2890
  %v2895 = vtanh.pop %v2891
  %v2896 = vmul.f32 %v2892, 0.5
  %v2897 = vmul.f32 %v2893, 0.5
  %v2898 = vmul.f32 %v2894, 0.5
  %v2899 = vmul.f32 %v2895, 0.5
  %v2900 = vadd.f32 %v2896, 0.5
  %v2901 = vadd.f32 %v2897, 0.5
  %v2902 = vadd.f32 %v2898, 0.5
  %v2903 = vadd.f32 %v2899, 0.5
  %v2904 = vmul.f32 %v2876, 0.5
  %v2905 = vmul.f32 %v2877, 0.5
  %v2906 = vmul.f32 %v2878, 0.5
  %v2907 = vmul.f32 %v2879, 0.5
  %v2908 = vtanh.pop %v2904
  %v2909 = vtanh.pop %v2905
  %v2910 = vtanh.pop %v2906
  %v2911 = vtanh.pop %v2907
  %v2912 = vmul.f32 %v2908, 0.5
  %v2913 = vmul.f32 %v2909, 0.5
  %v2914 = vmul.f32 %v2910, 0.5
  %v2915 = vmul.f32 %v2911, 0.5
  %v2916 = vadd.f32 %v2912, 0.5
  %v2917 = vadd.f32 %v2913, 0.5
  %v2918 = vadd.f32 %v2914, 0.5
  %v2919 = vadd.f32 %v2915, 0.5
  %v2920 = vtanh.pop %v2880
  %v2921 = vtanh.pop %v2881
  %v2922 = vtanh.pop %v2882
  %v2923 = vtanh.pop %v2883
  %v2924 = vmul.f32 %v2884, 0.5
  %v2925 = vmul.f32 %v2885, 0.5
  %v2926 = vmul.f32 %v2886, 0.5
  %v2927 = vmul.f32 %v2887, 0.5
  %v2928 = vtanh.pop %v2924
  %v2929 = vtanh.pop %v2925
  %v2930 = vtanh.pop %v2926
  %v2931 = vtanh.pop %v2927
  %v2932 = vmul.f32 %v2928, 0.5
  %v2933 = vmul.f32 %v2929, 0.5
  %v2934 = vmul.f32 %v2930, 0.5
  %v2935 = vmul.f32 %v2931, 0.5
  %v2936 = vadd.f32 %v2932, 0.5
  %v2937 = vadd.f32 %v2933, 0.5
  %v2938 = vadd.f32 %v2934, 0.5
  %v2939 = vadd.f32 %v2935, 0.5
  %v2940 = vmul.f32 %v2916, %v2699
  %v2941 = vmul.f32 %v2917, %v2700
  %v2942 = vmul.f32 %v2918, %v2701
  %v2943 = vmul.f32 %v2919, %v2702
  %v2944 = vmul.f32 %v2900, %v2920
  %v2945 = vmul.f32 %v2901, %v2921
  %v2946 = vmul.f32 %v2902, %v2922
  %v2947 = vmul.f32 %v2903, %v2923
  %v2948 = vadd.f32 %v2940, %v2944
  %v2949 = vadd.f32 %v2941, %v2945
  %v2950 = vadd.f32 %v2942, %v2946
  %v2951 = vadd.f32 %v2943, %v2947
  %v2952 = vtanh.pop %v2948
  %v2953 = vtanh.pop %v2949
  %v2954 = vtanh.pop %v2950
  %v2955 = vtanh.pop %v2951
  %v2956 = vmul.f32 %v2936, %v2952
  %v2957 = vmul.f32 %v2937, %v2953
  %v2958 = vmul.f32 %v2938, %v2954
  %v2959 = vmul.f32 %v2939, %v2955
  %v2960 = vld [vmem:[#allocation2 + $0x180] sm:$0xff]
  %v2961 = vld [vmem:[#allocation2 + $0x188] sm:$0xff]
  %v2962 = vld [vmem:[#allocation2 + $0x190] sm:$0xff]
  %v2963 = vld [vmem:[#allocation2 + $0x198] sm:$0xff]
  %v2964 = vld [vmem:[#allocation2 + $0x1a0] sm:$0xff]
  %v2965 = vld [vmem:[#allocation2 + $0x1a8] sm:$0xff]
  %v2966 = vld [vmem:[#allocation2 + $0x1b0] sm:$0xff]
  %v2967 = vld [vmem:[#allocation2 + $0x1b8] sm:$0xff]
  %v2968 = vld [vmem:[#allocation2 + $0x1c0] sm:$0xff]
  %v2969 = vld [vmem:[#allocation2 + $0x1c8] sm:$0xff]
  %v2970 = vld [vmem:[#allocation2 + $0x1d0] sm:$0xff]
  %v2971 = vld [vmem:[#allocation2 + $0x1d8] sm:$0xff]
  %v2972 = vld [vmem:[#allocation2 + $0x1e0] sm:$0xff]
  %v2973 = vld [vmem:[#allocation2 + $0x1e8] sm:$0xff]
  %v2974 = vld [vmem:[#allocation2 + $0x1f0] sm:$0xff]
  %v2975 = vld [vmem:[#allocation2 + $0x1f8] sm:$0xff]
  %2976 = vmatprep.subr.mxu0 0.0
  %2977 = vmatpush1.msra.mxu0 0.0
  %2978 = vmatprep.subr.mxu0 0.0
  %2979 = vmatpush1.msra.mxu0 0.0
  %2980 = vmatprep.subr.mxu0 0.0
  %2981 = vmatpush1.msra.mxu0 0.0
  %2982 = vmatprep.subr.mxu0 0.0
  %2983 = vmatpush1.msra.mxu0 0.0
  %2984 = vmatprep.subr.mxu0 0.0
  %2985 = vmatpush1.msra.mxu0 0.0
  %2986 = vmatprep.subr.mxu0 0.0
  %2987 = vmatpush1.msra.mxu0 0.0
  %2988 = vmatprep.subr.mxu0 0.0
  %2989 = vmatpush1.msra.mxu0 0.0
  %2990 = vmatprep.subr.mxu0 0.0
  %2991 = vmatpush1.msra.mxu0 0.0
  %2992 = vmatprep.subr.mxu0 0.0
  %2993 = vmatpush1.msra.mxu0 0.0
  %2994 = vmatprep.subr.mxu0 0.0
  %2995 = vmatpush1.msra.mxu0 0.0
  %2996 = vmatprep.subr.mxu0 0.0
  %2997 = vmatpush1.msra.mxu0 0.0
  %2998 = vmatprep.subr.mxu0 0.0
  %2999 = vmatpush1.msra.mxu0 0.0
  %3000 = vmatprep.subr.mxu0 0.0
  %3001 = vmatpush1.msra.mxu0 %v2959
  %3002 = vmatprep.subr.mxu0 0.0
  %3003 = vmatpush1.msra.mxu0 %v2958
  %3004 = vmatprep.subr.mxu0 0.0
  %3005 = vmatpush1.msra.mxu0 %v2957
  %3006 = vmatprep.subr.mxu0 0.0
  %3007 = vmatpush1.msra.mxu0 %v2956
  %3008 = vmatprep.subr.mxu0 0.0
  %3009 = vmatpush2.msra.mxu0 0.0
  %3010 = vmatprep.subr.mxu0 0.0
  %3011 = vmatpush2.msra.mxu0 0.0
  %3012 = vmatprep.subr.mxu0 0.0
  %3013 = vmatpush2.msra.mxu0 0.0
  %3014 = vmatprep.subr.mxu0 0.0
  %3015 = vmatpush2.msra.mxu0 0.0
  %3016 = vmatprep.subr.mxu0 0.0
  %3017 = vmatpush2.msra.mxu0 0.0
  %3018 = vmatprep.subr.mxu0 0.0
  %3019 = vmatpush2.msra.mxu0 0.0
  %3020 = vmatprep.subr.mxu0 0.0
  %3021 = vmatpush2.msra.mxu0 0.0
  %3022 = vmatprep.subr.mxu0 0.0
  %3023 = vmatpush2.msra.mxu0 0.0
  %3024 = vmatprep.subr.mxu0 0.0
  %3025 = vmatpush2.msra.mxu0 0.0
  %3026 = vmatprep.subr.mxu0 0.0
  %3027 = vmatpush2.msra.mxu0 0.0
  %3028 = vmatprep.subr.mxu0 0.0
  %3029 = vmatpush2.msra.mxu0 0.0
  %3030 = vmatprep.subr.mxu0 0.0
  %3031 = vmatpush2.msra.mxu0 0.0
  %3032 = vmatprep.subr.mxu0 0.0
  %3033 = vmatpush2.msra.mxu0 0.0
  %3034 = vmatprep.subr.mxu0 0.0
  %3035 = vmatpush2.msra.mxu0 0.0
  %3036 = vmatprep.subr.mxu0 0.0
  %3037 = vmatpush2.msra.mxu0 0.0
  %3038 = vmatprep.subr.mxu0 0.0
  %3039 = vmatpush2.msra.mxu0 0.0
  %3040 = vmatprep.mubr.f32.mxu0 0.0
  %3041 = vmatmul.mubr.f32.gmra.mxu0 %v2182
  %v3042 = vpop.f32.mrf.mxu0
  %v3043 = vadd.f32 0.0, %v3042
  %v3044 = vpop.f32.mrf.mxu0
  %3045 = vmatprep.mubr.f32.mxu0 0.0
  %3046 = vmatmul.mubr.f32.gmra.mxu0 %v2185
  %v3047 = vpop.f32.mrf.mxu0
  %v3048 = vadd.f32 0.0, %v3047
  %v3049 = vpop.f32.mrf.mxu0
  %3050 = vmatprep.mubr.f32.mxu0 0.0
  %3051 = vmatmul.mubr.f32.gmra.mxu0 %v2188
  %v3052 = vpop.f32.mrf.mxu0
  %v3053 = vadd.f32 0.0, %v3052
  %v3054 = vpop.f32.mrf.mxu0
  %3055 = vmatprep.mubr.f32.mxu0 0.0
  %3056 = vmatmul.mubr.f32.gmra.mxu0 %v2191
  %v3057 = vpop.f32.mrf.mxu0
  %v3058 = vadd.f32 0.0, %v3057
  %v3059 = vpop.f32.mrf.mxu0
  %3060 = vmatprep.mubr.f32.mxu0 0.0
  %3061 = vmatmul.mubr.f32.gmra.mxu0 %v2194
  %v3062 = vpop.f32.mrf.mxu0
  %v3063 = vadd.f32 0.0, %v3062
  %v3064 = vpop.f32.mrf.mxu0
  %3065 = vmatprep.mubr.f32.mxu0 0.0
  %3066 = vmatmul.mubr.f32.gmra.mxu0 %v2197
  %v3067 = vpop.f32.mrf.mxu0
  %v3068 = vadd.f32 0.0, %v3067
  %v3069 = vpop.f32.mrf.mxu0
  %3070 = vmatprep.mubr.f32.mxu0 0.0
  %3071 = vmatmul.mubr.f32.gmra.mxu0 %v2200
  %v3072 = vpop.f32.mrf.mxu0
  %v3073 = vadd.f32 0.0, %v3072
  %v3074 = vpop.f32.mrf.mxu0
  %3075 = vmatprep.mubr.f32.mxu0 0.0
  %3076 = vmatmul.mubr.f32.gmra.mxu0 %v2203
  %v3077 = vpop.f32.mrf.mxu0
  %v3078 = vadd.f32 0.0, %v3077
  %v3079 = vpop.f32.mrf.mxu0
  %3080 = vmatprep.mubr.f32.mxu0 0.0
  %3081 = vmatmul.mubr.f32.gmra.mxu0 %v2206
  %v3082 = vpop.f32.mrf.mxu0
  %v3083 = vadd.f32 0.0, %v3082
  %v3084 = vpop.f32.mrf.mxu0
  %3085 = vmatprep.mubr.f32.mxu0 0.0
  %3086 = vmatmul.mubr.f32.gmra.mxu0 %v2209
  %v3087 = vpop.f32.mrf.mxu0
  %v3088 = vadd.f32 0.0, %v3087
  %v3089 = vpop.f32.mrf.mxu0
  %3090 = vmatprep.mubr.f32.mxu0 0.0
  %3091 = vmatmul.mubr.f32.gmra.mxu0 %v2212
  %v3092 = vpop.f32.mrf.mxu0
  %v3093 = vadd.f32 0.0, %v3092
  %v3094 = vpop.f32.mrf.mxu0
  %3095 = vmatprep.mubr.f32.mxu0 0.0
  %3096 = vmatmul.mubr.f32.gmra.mxu0 %v2215
  %v3097 = vpop.f32.mrf.mxu0
  %v3098 = vadd.f32 0.0, %v3097
  %v3099 = vpop.f32.mrf.mxu0
  %3100 = vmatprep.mubr.f32.mxu0 0.0
  %3101 = vmatmul.mubr.f32.gmra.mxu0 %v2218
  %v3102 = vpop.f32.mrf.mxu0
  %v3103 = vadd.f32 0.0, %v3102
  %v3104 = vpop.f32.mrf.mxu0
  %3105 = vmatprep.mubr.f32.mxu0 0.0
  %3106 = vmatmul.mubr.f32.gmra.mxu0 %v2221
  %v3107 = vpop.f32.mrf.mxu0
  %v3108 = vadd.f32 0.0, %v3107
  %v3109 = vpop.f32.mrf.mxu0
  %3110 = vmatprep.mubr.f32.mxu0 0.0
  %3111 = vmatmul.mubr.f32.gmra.mxu0 %v2224
  %v3112 = vpop.f32.mrf.mxu0
  %v3113 = vadd.f32 0.0, %v3112
  %v3114 = vpop.f32.mrf.mxu0
  %3115 = vmatprep.mubr.f32.mxu0 0.0
  %3116 = vmatmul.mubr.f32.gmra.mxu0 %v2227
  %v3117 = vpop.f32.mrf.mxu0
  %v3118 = vadd.f32 0.0, %v3117
  %v3119 = vpop.f32.mrf.mxu0
  %3120 = vdwg.mxu0
  %v3121 = vadd.f32 %v2960, %v3043
  %v3122 = vadd.f32 %v2961, %v3048
  %v3123 = vadd.f32 %v2962, %v3053
  %v3124 = vadd.f32 %v2963, %v3058
  %v3125 = vadd.f32 %v2964, %v3063
  %v3126 = vadd.f32 %v2965, %v3068
  %v3127 = vadd.f32 %v2966, %v3073
  %v3128 = vadd.f32 %v2967, %v3078
  %v3129 = vadd.f32 %v2968, %v3083
  %v3130 = vadd.f32 %v2969, %v3088
  %v3131 = vadd.f32 %v2970, %v3093
  %v3132 = vadd.f32 %v2971, %v3098
  %v3133 = vadd.f32 %v2972, %v3103
  %v3134 = vadd.f32 %v2973, %v3108
  %v3135 = vadd.f32 %v2974, %v3113
  %v3136 = vadd.f32 %v2975, %v3118
  %v3137 = vmul.f32 %v3121, 0.5
  %v3138 = vmul.f32 %v3122, 0.5
  %v3139 = vmul.f32 %v3123, 0.5
  %v3140 = vmul.f32 %v3124, 0.5
  %v3141 = vtanh.pop %v3137
  %v3142 = vtanh.pop %v3138
  %v3143 = vtanh.pop %v3139
  %v3144 = vtanh.pop %v3140
  %v3145 = vmul.f32 %v3141, 0.5
  %v3146 = vmul.f32 %v3142, 0.5
  %v3147 = vmul.f32 %v3143, 0.5
  %v3148 = vmul.f32 %v3144, 0.5
  %v3149 = vadd.f32 %v3145, 0.5
  %v3150 = vadd.f32 %v3146, 0.5
  %v3151 = vadd.f32 %v3147, 0.5
  %v3152 = vadd.f32 %v3148, 0.5
  %v3153 = vmul.f32 %v3125, 0.5
  %v3154 = vmul.f32 %v3126, 0.5
  %v3155 = vmul.f32 %v3127, 0.5
  %v3156 = vmul.f32 %v3128, 0.5
  %v3157 = vtanh.pop %v3153
  %v3158 = vtanh.pop %v3154
  %v3159 = vtanh.pop %v3155
  %v3160 = vtanh.pop %v3156
  %v3161 = vmul.f32 %v3157, 0.5
  %v3162 = vmul.f32 %v3158, 0.5
  %v3163 = vmul.f32 %v3159, 0.5
  %v3164 = vmul.f32 %v3160, 0.5
  %v3165 = vadd.f32 %v3161, 0.5
  %v3166 = vadd.f32 %v3162, 0.5
  %v3167 = vadd.f32 %v3163, 0.5
  %v3168 = vadd.f32 %v3164, 0.5
  %v3169 = vtanh.pop %v3129
  %v3170 = vtanh.pop %v3130
  %v3171 = vtanh.pop %v3131
  %v3172 = vtanh.pop %v3132
  %v3173 = vmul.f32 %v3133, 0.5
  %v3174 = vmul.f32 %v3134, 0.5
  %v3175 = vmul.f32 %v3135, 0.5
  %v3176 = vmul.f32 %v3136, 0.5
  %v3177 = vtanh.pop %v3173
  %v3178 = vtanh.pop %v3174
  %v3179 = vtanh.pop %v3175
  %v3180 = vtanh.pop %v3176
  %v3181 = vmul.f32 %v3177, 0.5
  %v3182 = vmul.f32 %v3178, 0.5
  %v3183 = vmul.f32 %v3179, 0.5
  %v3184 = vmul.f32 %v3180, 0.5
  %v3185 = vadd.f32 %v3181, 0.5
  %v3186 = vadd.f32 %v3182, 0.5
  %v3187 = vadd.f32 %v3183, 0.5
  %v3188 = vadd.f32 %v3184, 0.5
  %v3189 = vmul.f32 %v3165, %v2948
  %v3190 = vmul.f32 %v3166, %v2949
  %v3191 = vmul.f32 %v3167, %v2950
  %v3192 = vmul.f32 %v3168, %v2951
  %v3193 = vmul.f32 %v3149, %v3169
  %v3194 = vmul.f32 %v3150, %v3170
  %v3195 = vmul.f32 %v3151, %v3171
  %v3196 = vmul.f32 %v3152, %v3172
  %v3197 = vadd.f32 %v3189, %v3193
  %v3198 = vadd.f32 %v3190, %v3194
  %v3199 = vadd.f32 %v3191, %v3195
  %v3200 = vadd.f32 %v3192, %v3196
  %v3201 = vtanh.pop %v3197
  %v3202 = vtanh.pop %v3198
  %v3203 = vtanh.pop %v3199
  %v3204 = vtanh.pop %v3200
  %v3205 = vmul.f32 %v3185, %v3201
  %v3206 = vmul.f32 %v3186, %v3202
  %v3207 = vmul.f32 %v3187, %v3203
  %v3208 = vmul.f32 %v3188, %v3204
  %v3209 = vld [vmem:[#allocation2 + $0x200] sm:$0xff]
  %v3210 = vld [vmem:[#allocation2 + $0x208] sm:$0xff]
  %v3211 = vld [vmem:[#allocation2 + $0x210] sm:$0xff]
  %v3212 = vld [vmem:[#allocation2 + $0x218] sm:$0xff]
  %v3213 = vld [vmem:[#allocation2 + $0x220] sm:$0xff]
  %v3214 = vld [vmem:[#allocation2 + $0x228] sm:$0xff]
  %v3215 = vld [vmem:[#allocation2 + $0x230] sm:$0xff]
  %v3216 = vld [vmem:[#allocation2 + $0x238] sm:$0xff]
  %v3217 = vld [vmem:[#allocation2 + $0x240] sm:$0xff]
  %v3218 = vld [vmem:[#allocation2 + $0x248] sm:$0xff]
  %v3219 = vld [vmem:[#allocation2 + $0x250] sm:$0xff]
  %v3220 = vld [vmem:[#allocation2 + $0x258] sm:$0xff]
  %v3221 = vld [vmem:[#allocation2 + $0x260] sm:$0xff]
  %v3222 = vld [vmem:[#allocation2 + $0x268] sm:$0xff]
  %v3223 = vld [vmem:[#allocation2 + $0x270] sm:$0xff]
  %v3224 = vld [vmem:[#allocation2 + $0x278] sm:$0xff]
  %3225 = vmatprep.subr.mxu0 0.0
  %3226 = vmatpush1.msra.mxu0 0.0
  %3227 = vmatprep.subr.mxu0 0.0
  %3228 = vmatpush1.msra.mxu0 0.0
  %3229 = vmatprep.subr.mxu0 0.0
  %3230 = vmatpush1.msra.mxu0 0.0
  %3231 = vmatprep.subr.mxu0 0.0
  %3232 = vmatpush1.msra.mxu0 0.0
  %3233 = vmatprep.subr.mxu0 0.0
  %3234 = vmatpush1.msra.mxu0 0.0
  %3235 = vmatprep.subr.mxu0 0.0
  %3236 = vmatpush1.msra.mxu0 0.0
  %3237 = vmatprep.subr.mxu0 0.0
  %3238 = vmatpush1.msra.mxu0 0.0
  %3239 = vmatprep.subr.mxu0 0.0
  %3240 = vmatpush1.msra.mxu0 0.0
  %3241 = vmatprep.subr.mxu0 0.0
  %3242 = vmatpush1.msra.mxu0 0.0
  %3243 = vmatprep.subr.mxu0 0.0
  %3244 = vmatpush1.msra.mxu0 0.0
  %3245 = vmatprep.subr.mxu0 0.0
  %3246 = vmatpush1.msra.mxu0 0.0
  %3247 = vmatprep.subr.mxu0 0.0
  %3248 = vmatpush1.msra.mxu0 0.0
  %3249 = vmatprep.subr.mxu0 0.0
  %3250 = vmatpush1.msra.mxu0 %v3208
  %3251 = vmatprep.subr.mxu0 0.0
  %3252 = vmatpush1.msra.mxu0 %v3207
  %3253 = vmatprep.subr.mxu0 0.0
  %3254 = vmatpush1.msra.mxu0 %v3206
  %3255 = vmatprep.subr.mxu0 0.0
  %3256 = vmatpush1.msra.mxu0 %v3205
  %3257 = vmatprep.subr.mxu0 0.0
  %3258 = vmatpush2.msra.mxu0 0.0
  %3259 = vmatprep.subr.mxu0 0.0
  %3260 = vmatpush2.msra.mxu0 0.0
  %3261 = vmatprep.subr.mxu0 0.0
  %3262 = vmatpush2.msra.mxu0 0.0
  %3263 = vmatprep.subr.mxu0 0.0
  %3264 = vmatpush2.msra.mxu0 0.0
  %3265 = vmatprep.subr.mxu0 0.0
  %3266 = vmatpush2.msra.mxu0 0.0
  %3267 = vmatprep.subr.mxu0 0.0
  %3268 = vmatpush2.msra.mxu0 0.0
  %3269 = vmatprep.subr.mxu0 0.0
  %3270 = vmatpush2.msra.mxu0 0.0
  %3271 = vmatprep.subr.mxu0 0.0
  %3272 = vmatpush2.msra.mxu0 0.0
  %3273 = vmatprep.subr.mxu0 0.0
  %3274 = vmatpush2.msra.mxu0 0.0
  %3275 = vmatprep.subr.mxu0 0.0
  %3276 = vmatpush2.msra.mxu0 0.0
  %3277 = vmatprep.subr.mxu0 0.0
  %3278 = vmatpush2.msra.mxu0 0.0
  %3279 = vmatprep.subr.mxu0 0.0
  %3280 = vmatpush2.msra.mxu0 0.0
  %3281 = vmatprep.subr.mxu0 0.0
  %3282 = vmatpush2.msra.mxu0 0.0
  %3283 = vmatprep.subr.mxu0 0.0
  %3284 = vmatpush2.msra.mxu0 0.0
  %3285 = vmatprep.subr.mxu0 0.0
  %3286 = vmatpush2.msra.mxu0 0.0
  %3287 = vmatprep.subr.mxu0 0.0
  %3288 = vmatpush2.msra.mxu0 0.0
  %3289 = vmatprep.mubr.f32.mxu0 0.0
  %3290 = vmatmul.mubr.f32.gmra.mxu0 %v2182
  %v3291 = vpop.f32.mrf.mxu0
  %v3292 = vadd.f32 0.0, %v3291
  %v3293 = vpop.f32.mrf.mxu0
  %3294 = vmatprep.mubr.f32.mxu0 0.0
  %3295 = vmatmul.mubr.f32.gmra.mxu0 %v2185
  %v3296 = vpop.f32.mrf.mxu0
  %v3297 = vadd.f32 0.0, %v3296
  %v3298 = vpop.f32.mrf.mxu0
  %3299 = vmatprep.mubr.f32.mxu0 0.0
  %3300 = vmatmul.mubr.f32.gmra.mxu0 %v2188
  %v3301 = vpop.f32.mrf.mxu0
  %v3302 = vadd.f32 0.0, %v3301
  %v3303 = vpop.f32.mrf.mxu0
  %3304 = vmatprep.mubr.f32.mxu0 0.0
  %3305 = vmatmul.mubr.f32.gmra.mxu0 %v2191
  %v3306 = vpop.f32.mrf.mxu0
  %v3307 = vadd.f32 0.0, %v3306
  %v3308 = vpop.f32.mrf.mxu0
  %3309 = vmatprep.mubr.f32.mxu0 0.0
  %3310 = vmatmul.mubr.f32.gmra.mxu0 %v2194
  %v3311 = vpop.f32.mrf.mxu0
  %v3312 = vadd.f32 0.0, %v3311
  %v3313 = vpop.f32.mrf.mxu0
  %3314 = vmatprep.mubr.f32.mxu0 0.0
  %3315 = vmatmul.mubr.f32.gmra.mxu0 %v2197
  %v3316 = vpop.f32.mrf.mxu0
  %v3317 = vadd.f32 0.0, %v3316
  %v3318 = vpop.f32.mrf.mxu0
  %3319 = vmatprep.mubr.f32.mxu0 0.0
  %3320 = vmatmul.mubr.f32.gmra.mxu0 %v2200
  %v3321 = vpop.f32.mrf.mxu0
  %v3322 = vadd.f32 0.0, %v3321
  %v3323 = vpop.f32.mrf.mxu0
  %3324 = vmatprep.mubr.f32.mxu0 0.0
  %3325 = vmatmul.mubr.f32.gmra.mxu0 %v2203
  %v3326 = vpop.f32.mrf.mxu0
  %v3327 = vadd.f32 0.0, %v3326
  %v3328 = vpop.f32.mrf.mxu0
  %3329 = vmatprep.mubr.f32.mxu0 0.0
  %3330 = vmatmul.mubr.f32.gmra.mxu0 %v2206
  %v3331 = vpop.f32.mrf.mxu0
  %v3332 = vadd.f32 0.0, %v3331
  %v3333 = vpop.f32.mrf.mxu0
  %3334 = vmatprep.mubr.f32.mxu0 0.0
  %3335 = vmatmul.mubr.f32.gmra.mxu0 %v2209
  %v3336 = vpop.f32.mrf.mxu0
  %v3337 = vadd.f32 0.0, %v3336
  %v3338 = vpop.f32.mrf.mxu0
  %3339 = vmatprep.mubr.f32.mxu0 0.0
  %3340 = vmatmul.mubr.f32.gmra.mxu0 %v2212
  %v3341 = vpop.f32.mrf.mxu0
  %v3342 = vadd.f32 0.0, %v3341
  %v3343 = vpop.f32.mrf.mxu0
  %3344 = vmatprep.mubr.f32.mxu0 0.0
  %3345 = vmatmul.mubr.f32.gmra.mxu0 %v2215
  %v3346 = vpop.f32.mrf.mxu0
  %v3347 = vadd.f32 0.0, %v3346
  %v3348 = vpop.f32.mrf.mxu0
  %3349 = vmatprep.mubr.f32.mxu0 0.0
  %3350 = vmatmul.mubr.f32.gmra.mxu0 %v2218
  %v3351 = vpop.f32.mrf.mxu0
  %v3352 = vadd.f32 0.0, %v3351
  %v3353 = vpop.f32.mrf.mxu0
  %3354 = vmatprep.mubr.f32.mxu0 0.0
  %3355 = vmatmul.mubr.f32.gmra.mxu0 %v2221
  %v3356 = vpop.f32.mrf.mxu0
  %v3357 = vadd.f32 0.0, %v3356
  %v3358 = vpop.f32.mrf.mxu0
  %3359 = vmatprep.mubr.f32.mxu0 0.0
  %3360 = vmatmul.mubr.f32.gmra.mxu0 %v2224
  %v3361 = vpop.f32.mrf.mxu0
  %v3362 = vadd.f32 0.0, %v3361
  %v3363 = vpop.f32.mrf.mxu0
  %3364 = vmatprep.mubr.f32.mxu0 0.0
  %3365 = vmatmul.mubr.f32.gmra.mxu0 %v2227
  %v3366 = vpop.f32.mrf.mxu0
  %v3367 = vadd.f32 0.0, %v3366
  %v3368 = vpop.f32.mrf.mxu0
  %3369 = vdwg.mxu0
  %v3370 = vadd.f32 %v3209, %v3292
  %v3371 = vadd.f32 %v3210, %v3297
  %v3372 = vadd.f32 %v3211, %v3302
  %v3373 = vadd.f32 %v3212, %v3307
  %v3374 = vadd.f32 %v3213, %v3312
  %v3375 = vadd.f32 %v3214, %v3317
  %v3376 = vadd.f32 %v3215, %v3322
  %v3377 = vadd.f32 %v3216, %v3327
  %v3378 = vadd.f32 %v3217, %v3332
  %v3379 = vadd.f32 %v3218, %v3337
  %v3380 = vadd.f32 %v3219, %v3342
  %v3381 = vadd.f32 %v3220, %v3347
  %v3382 = vadd.f32 %v3221, %v3352
  %v3383 = vadd.f32 %v3222, %v3357
  %v3384 = vadd.f32 %v3223, %v3362
  %v3385 = vadd.f32 %v3224, %v3367
  %v3386 = vmul.f32 %v3370, 0.5
  %v3387 = vmul.f32 %v3371, 0.5
  %v3388 = vmul.f32 %v3372, 0.5
  %v3389 = vmul.f32 %v3373, 0.5
  %v3390 = vtanh.pop %v3386
  %v3391 = vtanh.pop %v3387
  %v3392 = vtanh.pop %v3388
  %v3393 = vtanh.pop %v3389
  %v3394 = vmul.f32 %v3390, 0.5
  %v3395 = vmul.f32 %v3391, 0.5
  %v3396 = vmul.f32 %v3392, 0.5
  %v3397 = vmul.f32 %v3393, 0.5
  %v3398 = vadd.f32 %v3394, 0.5
  %v3399 = vadd.f32 %v3395, 0.5
  %v3400 = vadd.f32 %v3396, 0.5
  %v3401 = vadd.f32 %v3397, 0.5
  %v3402 = vmul.f32 %v3374, 0.5
  %v3403 = vmul.f32 %v3375, 0.5
  %v3404 = vmul.f32 %v3376, 0.5
  %v3405 = vmul.f32 %v3377, 0.5
  %v3406 = vtanh.pop %v3402
  %v3407 = vtanh.pop %v3403
  %v3408 = vtanh.pop %v3404
  %v3409 = vtanh.pop %v3405
  %v3410 = vmul.f32 %v3406, 0.5
  %v3411 = vmul.f32 %v3407, 0.5
  %v3412 = vmul.f32 %v3408, 0.5
  %v3413 = vmul.f32 %v3409, 0.5
  %v3414 = vadd.f32 %v3410, 0.5
  %v3415 = vadd.f32 %v3411, 0.5
  %v3416 = vadd.f32 %v3412, 0.5
  %v3417 = vadd.f32 %v3413, 0.5
  %v3418 = vtanh.pop %v3378
  %v3419 = vtanh.pop %v3379
  %v3420 = vtanh.pop %v3380
  %v3421 = vtanh.pop %v3381
  %v3422 = vmul.f32 %v3382, 0.5
  %v3423 = vmul.f32 %v3383, 0.5
  %v3424 = vmul.f32 %v3384, 0.5
  %v3425 = vmul.f32 %v3385, 0.5
  %v3426 = vtanh.pop %v3422
  %v3427 = vtanh.pop %v3423
  %v3428 = vtanh.pop %v3424
  %v3429 = vtanh.pop %v3425
  %v3430 = vmul.f32 %v3426, 0.5
  %v3431 = vmul.f32 %v3427, 0.5
  %v3432 = vmul.f32 %v3428, 0.5
  %v3433 = vmul.f32 %v3429, 0.5
  %v3434 = vadd.f32 %v3430, 0.5
  %v3435 = vadd.f32 %v3431, 0.5
  %v3436 = vadd.f32 %v3432, 0.5
  %v3437 = vadd.f32 %v3433, 0.5
  %v3438 = vmul.f32 %v3414, %v3197
  %v3439 = vmul.f32 %v3415, %v3198
  %v3440 = vmul.f32 %v3416, %v3199
  %v3441 = vmul.f32 %v3417, %v3200
  %v3442 = vmul.f32 %v3398, %v3418
  %v3443 = vmul.f32 %v3399, %v3419
  %v3444 = vmul.f32 %v3400, %v3420
  %v3445 = vmul.f32 %v3401, %v3421
  %v3446 = vadd.f32 %v3438, %v3442
  %v3447 = vadd.f32 %v3439, %v3443
  %v3448 = vadd.f32 %v3440, %v3444
  %v3449 = vadd.f32 %v3441, %v3445
  %v3450 = vtanh.pop %v3446
  %v3451 = vtanh.pop %v3447
  %v3452 = vtanh.pop %v3448
  %v3453 = vtanh.pop %v3449
  %v3454 = vmul.f32 %v3434, %v3450
  %v3455 = vmul.f32 %v3435, %v3451
  %v3456 = vmul.f32 %v3436, %v3452
  %v3457 = vmul.f32 %v3437, %v3453
  %v3458 = vld [vmem:[#allocation2 + $0x280] sm:$0xff]
  %v3459 = vld [vmem:[#allocation2 + $0x288] sm:$0xff]
  %v3460 = vld [vmem:[#allocation2 + $0x290] sm:$0xff]
  %v3461 = vld [vmem:[#allocation2 + $0x298] sm:$0xff]
  %v3462 = vld [vmem:[#allocation2 + $0x2a0] sm:$0xff]
  %v3463 = vld [vmem:[#allocation2 + $0x2a8] sm:$0xff]
  %v3464 = vld [vmem:[#allocation2 + $0x2b0] sm:$0xff]
  %v3465 = vld [vmem:[#allocation2 + $0x2b8] sm:$0xff]
  %v3466 = vld [vmem:[#allocation2 + $0x2c0] sm:$0xff]
  %v3467 = vld [vmem:[#allocation2 + $0x2c8] sm:$0xff]
  %v3468 = vld [vmem:[#allocation2 + $0x2d0] sm:$0xff]
  %v3469 = vld [vmem:[#allocation2 + $0x2d8] sm:$0xff]
  %v3470 = vld [vmem:[#allocation2 + $0x2e0] sm:$0xff]
  %v3471 = vld [vmem:[#allocation2 + $0x2e8] sm:$0xff]
  %v3472 = vld [vmem:[#allocation2 + $0x2f0] sm:$0xff]
  %v3473 = vld [vmem:[#allocation2 + $0x2f8] sm:$0xff]
  %3474 = vmatprep.subr.mxu0 0.0
  %3475 = vmatpush1.msra.mxu0 0.0
  %3476 = vmatprep.subr.mxu0 0.0
  %3477 = vmatpush1.msra.mxu0 0.0
  %3478 = vmatprep.subr.mxu0 0.0
  %3479 = vmatpush1.msra.mxu0 0.0
  %3480 = vmatprep.subr.mxu0 0.0
  %3481 = vmatpush1.msra.mxu0 0.0
  %3482 = vmatprep.subr.mxu0 0.0
  %3483 = vmatpush1.msra.mxu0 0.0
  %3484 = vmatprep.subr.mxu0 0.0
  %3485 = vmatpush1.msra.mxu0 0.0
  %3486 = vmatprep.subr.mxu0 0.0
  %3487 = vmatpush1.msra.mxu0 0.0
  %3488 = vmatprep.subr.mxu0 0.0
  %3489 = vmatpush1.msra.mxu0 0.0
  %3490 = vmatprep.subr.mxu0 0.0
  %3491 = vmatpush1.msra.mxu0 0.0
  %3492 = vmatprep.subr.mxu0 0.0
  %3493 = vmatpush1.msra.mxu0 0.0
  %3494 = vmatprep.subr.mxu0 0.0
  %3495 = vmatpush1.msra.mxu0 0.0
  %3496 = vmatprep.subr.mxu0 0.0
  %3497 = vmatpush1.msra.mxu0 0.0
  %3498 = vmatprep.subr.mxu0 0.0
  %3499 = vmatpush1.msra.mxu0 %v3457
  %3500 = vmatprep.subr.mxu0 0.0
  %3501 = vmatpush1.msra.mxu0 %v3456
  %3502 = vmatprep.subr.mxu0 0.0
  %3503 = vmatpush1.msra.mxu0 %v3455
  %3504 = vmatprep.subr.mxu0 0.0
  %3505 = vmatpush1.msra.mxu0 %v3454
  %3506 = vmatprep.subr.mxu0 0.0
  %3507 = vmatpush2.msra.mxu0 0.0
  %3508 = vmatprep.subr.mxu0 0.0
  %3509 = vmatpush2.msra.mxu0 0.0
  %3510 = vmatprep.subr.mxu0 0.0
  %3511 = vmatpush2.msra.mxu0 0.0
  %3512 = vmatprep.subr.mxu0 0.0
  %3513 = vmatpush2.msra.mxu0 0.0
  %3514 = vmatprep.subr.mxu0 0.0
  %3515 = vmatpush2.msra.mxu0 0.0
  %3516 = vmatprep.subr.mxu0 0.0
  %3517 = vmatpush2.msra.mxu0 0.0
  %3518 = vmatprep.subr.mxu0 0.0
  %3519 = vmatpush2.msra.mxu0 0.0
  %3520 = vmatprep.subr.mxu0 0.0
  %3521 = vmatpush2.msra.mxu0 0.0
  %3522 = vmatprep.subr.mxu0 0.0
  %3523 = vmatpush2.msra.mxu0 0.0
  %3524 = vmatprep.subr.mxu0 0.0
  %3525 = vmatpush2.msra.mxu0 0.0
  %3526 = vmatprep.subr.mxu0 0.0
  %3527 = vmatpush2.msra.mxu0 0.0
  %3528 = vmatprep.subr.mxu0 0.0
  %3529 = vmatpush2.msra.mxu0 0.0
  %3530 = vmatprep.subr.mxu0 0.0
  %3531 = vmatpush2.msra.mxu0 0.0
  %3532 = vmatprep.subr.mxu0 0.0
  %3533 = vmatpush2.msra.mxu0 0.0
  %3534 = vmatprep.subr.mxu0 0.0
  %3535 = vmatpush2.msra.mxu0 0.0
  %3536 = vmatprep.subr.mxu0 0.0
  %3537 = vmatpush2.msra.mxu0 0.0
  %3538 = vmatprep.mubr.f32.mxu0 0.0
  %3539 = vmatmul.mubr.f32.gmra.mxu0 %v2182
  %v3540 = vpop.f32.mrf.mxu0
  %v3541 = vadd.f32 0.0, %v3540
  %v3542 = vpop.f32.mrf.mxu0
  %3543 = vmatprep.mubr.f32.mxu0 0.0
  %3544 = vmatmul.mubr.f32.gmra.mxu0 %v2185
  %v3545 = vpop.f32.mrf.mxu0
  %v3546 = vadd.f32 0.0, %v3545
  %v3547 = vpop.f32.mrf.mxu0
  %3548 = vmatprep.mubr.f32.mxu0 0.0
  %3549 = vmatmul.mubr.f32.gmra.mxu0 %v2188
  %v3550 = vpop.f32.mrf.mxu0
  %v3551 = vadd.f32 0.0, %v3550
  %v3552 = vpop.f32.mrf.mxu0
  %3553 = vmatprep.mubr.f32.mxu0 0.0
  %3554 = vmatmul.mubr.f32.gmra.mxu0 %v2191
  %v3555 = vpop.f32.mrf.mxu0
  %v3556 = vadd.f32 0.0, %v3555
  %v3557 = vpop.f32.mrf.mxu0
  %3558 = vmatprep.mubr.f32.mxu0 0.0
  %3559 = vmatmul.mubr.f32.gmra.mxu0 %v2194
  %v3560 = vpop.f32.mrf.mxu0
  %v3561 = vadd.f32 0.0, %v3560
  %v3562 = vpop.f32.mrf.mxu0
  %3563 = vmatprep.mubr.f32.mxu0 0.0
  %3564 = vmatmul.mubr.f32.gmra.mxu0 %v2197
  %v3565 = vpop.f32.mrf.mxu0
  %v3566 = vadd.f32 0.0, %v3565
  %v3567 = vpop.f32.mrf.mxu0
  %3568 = vmatprep.mubr.f32.mxu0 0.0
  %3569 = vmatmul.mubr.f32.gmra.mxu0 %v2200
  %v3570 = vpop.f32.mrf.mxu0
  %v3571 = vadd.f32 0.0, %v3570
  %v3572 = vpop.f32.mrf.mxu0
  %3573 = vmatprep.mubr.f32.mxu0 0.0
  %3574 = vmatmul.mubr.f32.gmra.mxu0 %v2203
  %v3575 = vpop.f32.mrf.mxu0
  %v3576 = vadd.f32 0.0, %v3575
  %v3577 = vpop.f32.mrf.mxu0
  %3578 = vmatprep.mubr.f32.mxu0 0.0
  %3579 = vmatmul.mubr.f32.gmra.mxu0 %v2206
  %v3580 = vpop.f32.mrf.mxu0
  %v3581 = vadd.f32 0.0, %v3580
  %v3582 = vpop.f32.mrf.mxu0
  %3583 = vmatprep.mubr.f32.mxu0 0.0
  %3584 = vmatmul.mubr.f32.gmra.mxu0 %v2209
  %v3585 = vpop.f32.mrf.mxu0
  %v3586 = vadd.f32 0.0, %v3585
  %v3587 = vpop.f32.mrf.mxu0
  %3588 = vmatprep.mubr.f32.mxu0 0.0
  %3589 = vmatmul.mubr.f32.gmra.mxu0 %v2212
  %v3590 = vpop.f32.mrf.mxu0
  %v3591 = vadd.f32 0.0, %v3590
  %v3592 = vpop.f32.mrf.mxu0
  %3593 = vmatprep.mubr.f32.mxu0 0.0
  %3594 = vmatmul.mubr.f32.gmra.mxu0 %v2215
  %v3595 = vpop.f32.mrf.mxu0
  %v3596 = vadd.f32 0.0, %v3595
  %v3597 = vpop.f32.mrf.mxu0
  %3598 = vmatprep.mubr.f32.mxu0 0.0
  %3599 = vmatmul.mubr.f32.gmra.mxu0 %v2218
  %v3600 = vpop.f32.mrf.mxu0
  %v3601 = vadd.f32 0.0, %v3600
  %v3602 = vpop.f32.mrf.mxu0
  %3603 = vmatprep.mubr.f32.mxu0 0.0
  %3604 = vmatmul.mubr.f32.gmra.mxu0 %v2221
  %v3605 = vpop.f32.mrf.mxu0
  %v3606 = vadd.f32 0.0, %v3605
  %v3607 = vpop.f32.mrf.mxu0
  %3608 = vmatprep.mubr.f32.mxu0 0.0
  %3609 = vmatmul.mubr.f32.gmra.mxu0 %v2224
  %v3610 = vpop.f32.mrf.mxu0
  %v3611 = vadd.f32 0.0, %v3610
  %v3612 = vpop.f32.mrf.mxu0
  %3613 = vmatprep.mubr.f32.mxu0 0.0
  %3614 = vmatmul.mubr.f32.gmra.mxu0 %v2227
  %v3615 = vpop.f32.mrf.mxu0
  %v3616 = vadd.f32 0.0, %v3615
  %v3617 = vpop.f32.mrf.mxu0
  %3618 = vdwg.mxu0
  %v3619 = vadd.f32 %v3458, %v3541
  %v3620 = vadd.f32 %v3459, %v3546
  %v3621 = vadd.f32 %v3460, %v3551
  %v3622 = vadd.f32 %v3461, %v3556
  %v3623 = vadd.f32 %v3462, %v3561
  %v3624 = vadd.f32 %v3463, %v3566
  %v3625 = vadd.f32 %v3464, %v3571
  %v3626 = vadd.f32 %v3465, %v3576
  %v3627 = vadd.f32 %v3466, %v3581
  %v3628 = vadd.f32 %v3467, %v3586
  %v3629 = vadd.f32 %v3468, %v3591
  %v3630 = vadd.f32 %v3469, %v3596
  %v3631 = vadd.f32 %v3470, %v3601
  %v3632 = vadd.f32 %v3471, %v3606
  %v3633 = vadd.f32 %v3472, %v3611
  %v3634 = vadd.f32 %v3473, %v3616
  %v3635 = vmul.f32 %v3619, 0.5
  %v3636 = vmul.f32 %v3620, 0.5
  %v3637 = vmul.f32 %v3621, 0.5
  %v3638 = vmul.f32 %v3622, 0.5
  %v3639 = vtanh.pop %v3635
  %v3640 = vtanh.pop %v3636
  %v3641 = vtanh.pop %v3637
  %v3642 = vtanh.pop %v3638
  %v3643 = vmul.f32 %v3639, 0.5
  %v3644 = vmul.f32 %v3640, 0.5
  %v3645 = vmul.f32 %v3641, 0.5
  %v3646 = vmul.f32 %v3642, 0.5
  %v3647 = vadd.f32 %v3643, 0.5
  %v3648 = vadd.f32 %v3644, 0.5
  %v3649 = vadd.f32 %v3645, 0.5
  %v3650 = vadd.f32 %v3646, 0.5
  %v3651 = vmul.f32 %v3623, 0.5
  %v3652 = vmul.f32 %v3624, 0.5
  %v3653 = vmul.f32 %v3625, 0.5
  %v3654 = vmul.f32 %v3626, 0.5
  %v3655 = vtanh.pop %v3651
  %v3656 = vtanh.pop %v3652
  %v3657 = vtanh.pop %v3653
  %v3658 = vtanh.pop %v3654
  %v3659 = vmul.f32 %v3655, 0.5
  %v3660 = vmul.f32 %v3656, 0.5
  %v3661 = vmul.f32 %v3657, 0.5
  %v3662 = vmul.f32 %v3658, 0.5
  %v3663 = vadd.f32 %v3659, 0.5
  %v3664 = vadd.f32 %v3660, 0.5
  %v3665 = vadd.f32 %v3661, 0.5
  %v3666 = vadd.f32 %v3662, 0.5
  %v3667 = vtanh.pop %v3627
  %v3668 = vtanh.pop %v3628
  %v3669 = vtanh.pop %v3629
  %v3670 = vtanh.pop %v3630
  %v3671 = vmul.f32 %v3631, 0.5
  %v3672 = vmul.f32 %v3632, 0.5
  %v3673 = vmul.f32 %v3633, 0.5
  %v3674 = vmul.f32 %v3634, 0.5
  %v3675 = vtanh.pop %v3671
  %v3676 = vtanh.pop %v3672
  %v3677 = vtanh.pop %v3673
  %v3678 = vtanh.pop %v3674
  %v3679 = vmul.f32 %v3675, 0.5
  %v3680 = vmul.f32 %v3676, 0.5
  %v3681 = vmul.f32 %v3677, 0.5
  %v3682 = vmul.f32 %v3678, 0.5
  %v3683 = vadd.f32 %v3679, 0.5
  %v3684 = vadd.f32 %v3680, 0.5
  %v3685 = vadd.f32 %v3681, 0.5
  %v3686 = vadd.f32 %v3682, 0.5
  %v3687 = vmul.f32 %v3663, %v3446
  %v3688 = vmul.f32 %v3664, %v3447
  %v3689 = vmul.f32 %v3665, %v3448
  %v3690 = vmul.f32 %v3666, %v3449
  %v3691 = vmul.f32 %v3647, %v3667
  %v3692 = vmul.f32 %v3648, %v3668
  %v3693 = vmul.f32 %v3649, %v3669
  %v3694 = vmul.f32 %v3650, %v3670
  %v3695 = vadd.f32 %v3687, %v3691
  %v3696 = vadd.f32 %v3688, %v3692
  %v3697 = vadd.f32 %v3689, %v3693
  %v3698 = vadd.f32 %v3690, %v3694
  %v3699 = vtanh.pop %v3695
  %v3700 = vtanh.pop %v3696
  %v3701 = vtanh.pop %v3697
  %v3702 = vtanh.pop %v3698
  %v3703 = vmul.f32 %v3683, %v3699
  %v3704 = vmul.f32 %v3684, %v3700
  %v3705 = vmul.f32 %v3685, %v3701
  %v3706 = vmul.f32 %v3686, %v3702
  %v3707 = vld [vmem:[#allocation2 + $0x300] sm:$0xff]
  %v3708 = vld [vmem:[#allocation2 + $0x308] sm:$0xff]
  %v3709 = vld [vmem:[#allocation2 + $0x310] sm:$0xff]
  %v3710 = vld [vmem:[#allocation2 + $0x318] sm:$0xff]
  %v3711 = vld [vmem:[#allocation2 + $0x320] sm:$0xff]
  %v3712 = vld [vmem:[#allocation2 + $0x328] sm:$0xff]
  %v3713 = vld [vmem:[#allocation2 + $0x330] sm:$0xff]
  %v3714 = vld [vmem:[#allocation2 + $0x338] sm:$0xff]
  %v3715 = vld [vmem:[#allocation2 + $0x340] sm:$0xff]
  %v3716 = vld [vmem:[#allocation2 + $0x348] sm:$0xff]
  %v3717 = vld [vmem:[#allocation2 + $0x350] sm:$0xff]
  %v3718 = vld [vmem:[#allocation2 + $0x358] sm:$0xff]
  %v3719 = vld [vmem:[#allocation2 + $0x360] sm:$0xff]
  %v3720 = vld [vmem:[#allocation2 + $0x368] sm:$0xff]
  %v3721 = vld [vmem:[#allocation2 + $0x370] sm:$0xff]
  %v3722 = vld [vmem:[#allocation2 + $0x378] sm:$0xff]
  %3723 = vmatprep.subr.mxu0 0.0
  %3724 = vmatpush1.msra.mxu0 0.0
  %3725 = vmatprep.subr.mxu0 0.0
  %3726 = vmatpush1.msra.mxu0 0.0
  %3727 = vmatprep.subr.mxu0 0.0
  %3728 = vmatpush1.msra.mxu0 0.0
  %3729 = vmatprep.subr.mxu0 0.0
  %3730 = vmatpush1.msra.mxu0 0.0
  %3731 = vmatprep.subr.mxu0 0.0
  %3732 = vmatpush1.msra.mxu0 0.0
  %3733 = vmatprep.subr.mxu0 0.0
  %3734 = vmatpush1.msra.mxu0 0.0
  %3735 = vmatprep.subr.mxu0 0.0
  %3736 = vmatpush1.msra.mxu0 0.0
  %3737 = vmatprep.subr.mxu0 0.0
  %3738 = vmatpush1.msra.mxu0 0.0
  %3739 = vmatprep.subr.mxu0 0.0
  %3740 = vmatpush1.msra.mxu0 0.0
  %3741 = vmatprep.subr.mxu0 0.0
  %3742 = vmatpush1.msra.mxu0 0.0
  %3743 = vmatprep.subr.mxu0 0.0
  %3744 = vmatpush1.msra.mxu0 0.0
  %3745 = vmatprep.subr.mxu0 0.0
  %3746 = vmatpush1.msra.mxu0 0.0
  %3747 = vmatprep.subr.mxu0 0.0
  %3748 = vmatpush1.msra.mxu0 %v3706
  %3749 = vmatprep.subr.mxu0 0.0
  %3750 = vmatpush1.msra.mxu0 %v3705
  %3751 = vmatprep.subr.mxu0 0.0
  %3752 = vmatpush1.msra.mxu0 %v3704
  %3753 = vmatprep.subr.mxu0 0.0
  %3754 = vmatpush1.msra.mxu0 %v3703
  %3755 = vmatprep.subr.mxu0 0.0
  %3756 = vmatpush2.msra.mxu0 0.0
  %3757 = vmatprep.subr.mxu0 0.0
  %3758 = vmatpush2.msra.mxu0 0.0
  %3759 = vmatprep.subr.mxu0 0.0
  %3760 = vmatpush2.msra.mxu0 0.0
  %3761 = vmatprep.subr.mxu0 0.0
  %3762 = vmatpush2.msra.mxu0 0.0
  %3763 = vmatprep.subr.mxu0 0.0
  %3764 = vmatpush2.msra.mxu0 0.0
  %3765 = vmatprep.subr.mxu0 0.0
  %3766 = vmatpush2.msra.mxu0 0.0
  %3767 = vmatprep.subr.mxu0 0.0
  %3768 = vmatpush2.msra.mxu0 0.0
  %3769 = vmatprep.subr.mxu0 0.0
  %3770 = vmatpush2.msra.mxu0 0.0
  %3771 = vmatprep.subr.mxu0 0.0
  %3772 = vmatpush2.msra.mxu0 0.0
  %3773 = vmatprep.subr.mxu0 0.0
  %3774 = vmatpush2.msra.mxu0 0.0
  %3775 = vmatprep.subr.mxu0 0.0
  %3776 = vmatpush2.msra.mxu0 0.0
  %3777 = vmatprep.subr.mxu0 0.0
  %3778 = vmatpush2.msra.mxu0 0.0
  %3779 = vmatprep.subr.mxu0 0.0
  %3780 = vmatpush2.msra.mxu0 0.0
  %3781 = vmatprep.subr.mxu0 0.0
  %3782 = vmatpush2.msra.mxu0 0.0
  %3783 = vmatprep.subr.mxu0 0.0
  %3784 = vmatpush2.msra.mxu0 0.0
  %3785 = vmatprep.subr.mxu0 0.0
  %3786 = vmatpush2.msra.mxu0 0.0
  %3787 = vmatprep.mubr.f32.mxu0 0.0
  %3788 = vmatmul.mubr.f32.gmra.mxu0 %v2182
  %v3789 = vpop.f32.mrf.mxu0
  %v3790 = vadd.f32 0.0, %v3789
  %v3791 = vpop.f32.mrf.mxu0
  %3792 = vmatprep.mubr.f32.mxu0 0.0
  %3793 = vmatmul.mubr.f32.gmra.mxu0 %v2185
  %v3794 = vpop.f32.mrf.mxu0
  %v3795 = vadd.f32 0.0, %v3794
  %v3796 = vpop.f32.mrf.mxu0
  %3797 = vmatprep.mubr.f32.mxu0 0.0
  %3798 = vmatmul.mubr.f32.gmra.mxu0 %v2188
  %v3799 = vpop.f32.mrf.mxu0
  %v3800 = vadd.f32 0.0, %v3799
  %v3801 = vpop.f32.mrf.mxu0
  %3802 = vmatprep.mubr.f32.mxu0 0.0
  %3803 = vmatmul.mubr.f32.gmra.mxu0 %v2191
  %v3804 = vpop.f32.mrf.mxu0
  %v3805 = vadd.f32 0.0, %v3804
  %v3806 = vpop.f32.mrf.mxu0
  %3807 = vmatprep.mubr.f32.mxu0 0.0
  %3808 = vmatmul.mubr.f32.gmra.mxu0 %v2194
  %v3809 = vpop.f32.mrf.mxu0
  %v3810 = vadd.f32 0.0, %v3809
  %v3811 = vpop.f32.mrf.mxu0
  %3812 = vmatprep.mubr.f32.mxu0 0.0
  %3813 = vmatmul.mubr.f32.gmra.mxu0 %v2197
  %v3814 = vpop.f32.mrf.mxu0
  %v3815 = vadd.f32 0.0, %v3814
  %v3816 = vpop.f32.mrf.mxu0
  %3817 = vmatprep.mubr.f32.mxu0 0.0
  %3818 = vmatmul.mubr.f32.gmra.mxu0 %v2200
  %v3819 = vpop.f32.mrf.mxu0
  %v3820 = vadd.f32 0.0, %v3819
  %v3821 = vpop.f32.mrf.mxu0
  %3822 = vmatprep.mubr.f32.mxu0 0.0
  %3823 = vmatmul.mubr.f32.gmra.mxu0 %v2203
  %v3824 = vpop.f32.mrf.mxu0
  %v3825 = vadd.f32 0.0, %v3824
  %v3826 = vpop.f32.mrf.mxu0
  %3827 = vmatprep.mubr.f32.mxu0 0.0
  %3828 = vmatmul.mubr.f32.gmra.mxu0 %v2206
  %v3829 = vpop.f32.mrf.mxu0
  %v3830 = vadd.f32 0.0, %v3829
  %v3831 = vpop.f32.mrf.mxu0
  %3832 = vmatprep.mubr.f32.mxu0 0.0
  %3833 = vmatmul.mubr.f32.gmra.mxu0 %v2209
  %v3834 = vpop.f32.mrf.mxu0
  %v3835 = vadd.f32 0.0, %v3834
  %v3836 = vpop.f32.mrf.mxu0
  %3837 = vmatprep.mubr.f32.mxu0 0.0
  %3838 = vmatmul.mubr.f32.gmra.mxu0 %v2212
  %v3839 = vpop.f32.mrf.mxu0
  %v3840 = vadd.f32 0.0, %v3839
  %v3841 = vpop.f32.mrf.mxu0
  %3842 = vmatprep.mubr.f32.mxu0 0.0
  %3843 = vmatmul.mubr.f32.gmra.mxu0 %v2215
  %v3844 = vpop.f32.mrf.mxu0
  %v3845 = vadd.f32 0.0, %v3844
  %v3846 = vpop.f32.mrf.mxu0
  %3847 = vmatprep.mubr.f32.mxu0 0.0
  %3848 = vmatmul.mubr.f32.gmra.mxu0 %v2218
  %v3849 = vpop.f32.mrf.mxu0
  %v3850 = vadd.f32 0.0, %v3849
  %v3851 = vpop.f32.mrf.mxu0
  %3852 = vmatprep.mubr.f32.mxu0 0.0
  %3853 = vmatmul.mubr.f32.gmra.mxu0 %v2221
  %v3854 = vpop.f32.mrf.mxu0
  %v3855 = vadd.f32 0.0, %v3854
  %v3856 = vpop.f32.mrf.mxu0
  %3857 = vmatprep.mubr.f32.mxu0 0.0
  %3858 = vmatmul.mubr.f32.gmra.mxu0 %v2224
  %v3859 = vpop.f32.mrf.mxu0
  %v3860 = vadd.f32 0.0, %v3859
  %v3861 = vpop.f32.mrf.mxu0
  %3862 = vmatprep.mubr.f32.mxu0 0.0
  %3863 = vmatmul.mubr.f32.gmra.mxu0 %v2227
  %v3864 = vpop.f32.mrf.mxu0
  %v3865 = vadd.f32 0.0, %v3864
  %v3866 = vpop.f32.mrf.mxu0
  %3867 = vdwg.mxu0
  %v3868 = vadd.f32 %v3707, %v3790
  %v3869 = vadd.f32 %v3708, %v3795
  %v3870 = vadd.f32 %v3709, %v3800
  %v3871 = vadd.f32 %v3710, %v3805
  %v3872 = vadd.f32 %v3711, %v3810
  %v3873 = vadd.f32 %v3712, %v3815
  %v3874 = vadd.f32 %v3713, %v3820
  %v3875 = vadd.f32 %v3714, %v3825
  %v3876 = vadd.f32 %v3715, %v3830
  %v3877 = vadd.f32 %v3716, %v3835
  %v3878 = vadd.f32 %v3717, %v3840
  %v3879 = vadd.f32 %v3718, %v3845
  %v3880 = vadd.f32 %v3719, %v3850
  %v3881 = vadd.f32 %v3720, %v3855
  %v3882 = vadd.f32 %v3721, %v3860
  %v3883 = vadd.f32 %v3722, %v3865
  %v3884 = vmul.f32 %v3868, 0.5
  %v3885 = vmul.f32 %v3869, 0.5
  %v3886 = vmul.f32 %v3870, 0.5
  %v3887 = vmul.f32 %v3871, 0.5
  %v3888 = vtanh.pop %v3884
  %v3889 = vtanh.pop %v3885
  %v3890 = vtanh.pop %v3886
  %v3891 = vtanh.pop %v3887
  %v3892 = vmul.f32 %v3888, 0.5
  %v3893 = vmul.f32 %v3889, 0.5
  %v3894 = vmul.f32 %v3890, 0.5
  %v3895 = vmul.f32 %v3891, 0.5
  %v3896 = vadd.f32 %v3892, 0.5
  %v3897 = vadd.f32 %v3893, 0.5
  %v3898 = vadd.f32 %v3894, 0.5
  %v3899 = vadd.f32 %v3895, 0.5
  %v3900 = vmul.f32 %v3872, 0.5
  %v3901 = vmul.f32 %v3873, 0.5
  %v3902 = vmul.f32 %v3874, 0.5
  %v3903 = vmul.f32 %v3875, 0.5
  %v3904 = vtanh.pop %v3900
  %v3905 = vtanh.pop %v3901
  %v3906 = vtanh.pop %v3902
  %v3907 = vtanh.pop %v3903
  %v3908 = vmul.f32 %v3904, 0.5
  %v3909 = vmul.f32 %v3905, 0.5
  %v3910 = vmul.f32 %v3906, 0.5
  %v3911 = vmul.f32 %v3907, 0.5
  %v3912 = vadd.f32 %v3908, 0.5
  %v3913 = vadd.f32 %v3909, 0.5
  %v3914 = vadd.f32 %v3910, 0.5
  %v3915 = vadd.f32 %v3911, 0.5
  %v3916 = vtanh.pop %v3876
  %v3917 = vtanh.pop %v3877
  %v3918 = vtanh.pop %v3878
  %v3919 = vtanh.pop %v3879
  %v3920 = vmul.f32 %v3880, 0.5
  %v3921 = vmul.f32 %v3881, 0.5
  %v3922 = vmul.f32 %v3882, 0.5
  %v3923 = vmul.f32 %v3883, 0.5
  %v3924 = vtanh.pop %v3920
  %v3925 = vtanh.pop %v3921
  %v3926 = vtanh.pop %v3922
  %v3927 = vtanh.pop %v3923
  %v3928 = vmul.f32 %v3924, 0.5
  %v3929 = vmul.f32 %v3925, 0.5
  %v3930 = vmul.f32 %v3926, 0.5
  %v3931 = vmul.f32 %v3927, 0.5
  %v3932 = vadd.f32 %v3928, 0.5
  %v3933 = vadd.f32 %v3929, 0.5
  %v3934 = vadd.f32 %v3930, 0.5
  %v3935 = vadd.f32 %v3931, 0.5
  %v3936 = vmul.f32 %v3912, %v3695
  %v3937 = vmul.f32 %v3913, %v3696
  %v3938 = vmul.f32 %v3914, %v3697
  %v3939 = vmul.f32 %v3915, %v3698
  %v3940 = vmul.f32 %v3896, %v3916
  %v3941 = vmul.f32 %v3897, %v3917
  %v3942 = vmul.f32 %v3898, %v3918
  %v3943 = vmul.f32 %v3899, %v3919
  %v3944 = vadd.f32 %v3936, %v3940
  %v3945 = vadd.f32 %v3937, %v3941
  %v3946 = vadd.f32 %v3938, %v3942
  %v3947 = vadd.f32 %v3939, %v3943
  %v3948 = vtanh.pop %v3944
  %v3949 = vtanh.pop %v3945
  %v3950 = vtanh.pop %v3946
  %v3951 = vtanh.pop %v3947
  %v3952 = vmul.f32 %v3932, %v3948
  %v3953 = vmul.f32 %v3933, %v3949
  %v3954 = vmul.f32 %v3934, %v3950
  %v3955 = vmul.f32 %v3935, %v3951
  %v3956 = vld [vmem:[#allocation2 + $0x380] sm:$0xff]
  %v3957 = vld [vmem:[#allocation2 + $0x388] sm:$0xff]
  %v3958 = vld [vmem:[#allocation2 + $0x390] sm:$0xff]
  %v3959 = vld [vmem:[#allocation2 + $0x398] sm:$0xff]
  %v3960 = vld [vmem:[#allocation2 + $0x3a0] sm:$0xff]
  %v3961 = vld [vmem:[#allocation2 + $0x3a8] sm:$0xff]
  %v3962 = vld [vmem:[#allocation2 + $0x3b0] sm:$0xff]
  %v3963 = vld [vmem:[#allocation2 + $0x3b8] sm:$0xff]
  %v3964 = vld [vmem:[#allocation2 + $0x3c0] sm:$0xff]
  %v3965 = vld [vmem:[#allocation2 + $0x3c8] sm:$0xff]
  %v3966 = vld [vmem:[#allocation2 + $0x3d0] sm:$0xff]
  %v3967 = vld [vmem:[#allocation2 + $0x3d8] sm:$0xff]
  %v3968 = vld [vmem:[#allocation2 + $0x3e0] sm:$0xff]
  %v3969 = vld [vmem:[#allocation2 + $0x3e8] sm:$0xff]
  %v3970 = vld [vmem:[#allocation2 + $0x3f0] sm:$0xff]
  %v3971 = vld [vmem:[#allocation2 + $0x3f8] sm:$0xff]
  %3972 = vmatprep.subr.mxu0 0.0
  %3973 = vmatpush1.msra.mxu0 0.0
  %3974 = vmatprep.subr.mxu0 0.0
  %3975 = vmatpush1.msra.mxu0 0.0
  %3976 = vmatprep.subr.mxu0 0.0
  %3977 = vmatpush1.msra.mxu0 0.0
  %3978 = vmatprep.subr.mxu0 0.0
  %3979 = vmatpush1.msra.mxu0 0.0
  %3980 = vmatprep.subr.mxu0 0.0
  %3981 = vmatpush1.msra.mxu0 0.0
  %3982 = vmatprep.subr.mxu0 0.0
  %3983 = vmatpush1.msra.mxu0 0.0
  %3984 = vmatprep.subr.mxu0 0.0
  %3985 = vmatpush1.msra.mxu0 0.0
  %3986 = vmatprep.subr.mxu0 0.0
  %3987 = vmatpush1.msra.mxu0 0.0
  %3988 = vmatprep.subr.mxu0 0.0
  %3989 = vmatpush1.msra.mxu0 0.0
  %3990 = vmatprep.subr.mxu0 0.0
  %3991 = vmatpush1.msra.mxu0 0.0
  %3992 = vmatprep.subr.mxu0 0.0
  %3993 = vmatpush1.msra.mxu0 0.0
  %3994 = vmatprep.subr.mxu0 0.0
  %3995 = vmatpush1.msra.mxu0 0.0
  %3996 = vmatprep.subr.mxu0 0.0
  %3997 = vmatpush1.msra.mxu0 %v3955
  %3998 = vmatprep.subr.mxu0 0.0
  %3999 = vmatpush1.msra.mxu0 %v3954
  %4000 = vmatprep.subr.mxu0 0.0
  %4001 = vmatpush1.msra.mxu0 %v3953
  %4002 = vmatprep.subr.mxu0 0.0
  %4003 = vmatpush1.msra.mxu0 %v3952
  %4004 = vmatprep.subr.mxu0 0.0
  %4005 = vmatpush2.msra.mxu0 0.0
  %4006 = vmatprep.subr.mxu0 0.0
  %4007 = vmatpush2.msra.mxu0 0.0
  %4008 = vmatprep.subr.mxu0 0.0
  %4009 = vmatpush2.msra.mxu0 0.0
  %4010 = vmatprep.subr.mxu0 0.0
  %4011 = vmatpush2.msra.mxu0 0.0
  %4012 = vmatprep.subr.mxu0 0.0
  %4013 = vmatpush2.msra.mxu0 0.0
  %4014 = vmatprep.subr.mxu0 0.0
  %4015 = vmatpush2.msra.mxu0 0.0
  %4016 = vmatprep.subr.mxu0 0.0
  %4017 = vmatpush2.msra.mxu0 0.0
  %4018 = vmatprep.subr.mxu0 0.0
  %4019 = vmatpush2.msra.mxu0 0.0
  %4020 = vmatprep.subr.mxu0 0.0
  %4021 = vmatpush2.msra.mxu0 0.0
  %4022 = vmatprep.subr.mxu0 0.0
  %4023 = vmatpush2.msra.mxu0 0.0
  %4024 = vmatprep.subr.mxu0 0.0
  %4025 = vmatpush2.msra.mxu0 0.0
  %4026 = vmatprep.subr.mxu0 0.0
  %4027 = vmatpush2.msra.mxu0 0.0
  %4028 = vmatprep.subr.mxu0 0.0
  %4029 = vmatpush2.msra.mxu0 0.0
  %4030 = vmatprep.subr.mxu0 0.0
  %4031 = vmatpush2.msra.mxu0 0.0
  %4032 = vmatprep.subr.mxu0 0.0
  %4033 = vmatpush2.msra.mxu0 0.0
  %4034 = vmatprep.subr.mxu0 0.0
  %4035 = vmatpush2.msra.mxu0 0.0
  %4036 = vmatprep.mubr.f32.mxu0 0.0
  %4037 = vmatmul.mubr.f32.gmra.mxu0 %v2182
  %v4038 = vpop.f32.mrf.mxu0
  %v4039 = vadd.f32 0.0, %v4038
  %v4040 = vpop.f32.mrf.mxu0
  %4041 = vmatprep.mubr.f32.mxu0 0.0
  %4042 = vmatmul.mubr.f32.gmra.mxu0 %v2185
  %v4043 = vpop.f32.mrf.mxu0
  %v4044 = vadd.f32 0.0, %v4043
  %v4045 = vpop.f32.mrf.mxu0
  %4046 = vmatprep.mubr.f32.mxu0 0.0
  %4047 = vmatmul.mubr.f32.gmra.mxu0 %v2188
  %v4048 = vpop.f32.mrf.mxu0
  %v4049 = vadd.f32 0.0, %v4048
  %v4050 = vpop.f32.mrf.mxu0
  %4051 = vmatprep.mubr.f32.mxu0 0.0
  %4052 = vmatmul.mubr.f32.gmra.mxu0 %v2191
  %v4053 = vpop.f32.mrf.mxu0
  %v4054 = vadd.f32 0.0, %v4053
  %v4055 = vpop.f32.mrf.mxu0
  %4056 = vmatprep.mubr.f32.mxu0 0.0
  %4057 = vmatmul.mubr.f32.gmra.mxu0 %v2194
  %v4058 = vpop.f32.mrf.mxu0
  %v4059 = vadd.f32 0.0, %v4058
  %v4060 = vpop.f32.mrf.mxu0
  %4061 = vmatprep.mubr.f32.mxu0 0.0
  %4062 = vmatmul.mubr.f32.gmra.mxu0 %v2197
  %v4063 = vpop.f32.mrf.mxu0
  %v4064 = vadd.f32 0.0, %v4063
  %v4065 = vpop.f32.mrf.mxu0
  %4066 = vmatprep.mubr.f32.mxu0 0.0
  %4067 = vmatmul.mubr.f32.gmra.mxu0 %v2200
  %v4068 = vpop.f32.mrf.mxu0
  %v4069 = vadd.f32 0.0, %v4068
  %v4070 = vpop.f32.mrf.mxu0
  %4071 = vmatprep.mubr.f32.mxu0 0.0
  %4072 = vmatmul.mubr.f32.gmra.mxu0 %v2203
  %v4073 = vpop.f32.mrf.mxu0
  %v4074 = vadd.f32 0.0, %v4073
  %v4075 = vpop.f32.mrf.mxu0
  %4076 = vmatprep.mubr.f32.mxu0 0.0
  %4077 = vmatmul.mubr.f32.gmra.mxu0 %v2206
  %v4078 = vpop.f32.mrf.mxu0
  %v4079 = vadd.f32 0.0, %v4078
  %v4080 = vpop.f32.mrf.mxu0
  %4081 = vmatprep.mubr.f32.mxu0 0.0
  %4082 = vmatmul.mubr.f32.gmra.mxu0 %v2209
  %v4083 = vpop.f32.mrf.mxu0
  %v4084 = vadd.f32 0.0, %v4083
  %v4085 = vpop.f32.mrf.mxu0
  %4086 = vmatprep.mubr.f32.mxu0 0.0
  %4087 = vmatmul.mubr.f32.gmra.mxu0 %v2212
  %v4088 = vpop.f32.mrf.mxu0
  %v4089 = vadd.f32 0.0, %v4088
  %v4090 = vpop.f32.mrf.mxu0
  %4091 = vmatprep.mubr.f32.mxu0 0.0
  %4092 = vmatmul.mubr.f32.gmra.mxu0 %v2215
  %v4093 = vpop.f32.mrf.mxu0
  %v4094 = vadd.f32 0.0, %v4093
  %v4095 = vpop.f32.mrf.mxu0
  %4096 = vmatprep.mubr.f32.mxu0 0.0
  %4097 = vmatmul.mubr.f32.gmra.mxu0 %v2218
  %v4098 = vpop.f32.mrf.mxu0
  %v4099 = vadd.f32 0.0, %v4098
  %v4100 = vpop.f32.mrf.mxu0
  %4101 = vmatprep.mubr.f32.mxu0 0.0
  %4102 = vmatmul.mubr.f32.gmra.mxu0 %v2221
  %v4103 = vpop.f32.mrf.mxu0
  %v4104 = vadd.f32 0.0, %v4103
  %v4105 = vpop.f32.mrf.mxu0
  %4106 = vmatprep.mubr.f32.mxu0 0.0
  %4107 = vmatmul.mubr.f32.gmra.mxu0 %v2224
  %v4108 = vpop.f32.mrf.mxu0
  %v4109 = vadd.f32 0.0, %v4108
  %v4110 = vpop.f32.mrf.mxu0
  %4111 = vmatprep.mubr.f32.mxu0 0.0
  %4112 = vmatmul.mubr.f32.gmra.mxu0 %v2227
  %v4113 = vpop.f32.mrf.mxu0
  %v4114 = vadd.f32 0.0, %v4113
  %v4115 = vpop.f32.mrf.mxu0
  %4116 = vdwg.mxu0
  %v4117 = vadd.f32 %v3956, %v4039
  %v4118 = vadd.f32 %v3957, %v4044
  %v4119 = vadd.f32 %v3958, %v4049
  %v4120 = vadd.f32 %v3959, %v4054
  %v4121 = vadd.f32 %v3960, %v4059
  %v4122 = vadd.f32 %v3961, %v4064
  %v4123 = vadd.f32 %v3962, %v4069
  %v4124 = vadd.f32 %v3963, %v4074
  %v4125 = vadd.f32 %v3964, %v4079
  %v4126 = vadd.f32 %v3965, %v4084
  %v4127 = vadd.f32 %v3966, %v4089
  %v4128 = vadd.f32 %v3967, %v4094
  %v4129 = vadd.f32 %v3968, %v4099
  %v4130 = vadd.f32 %v3969, %v4104
  %v4131 = vadd.f32 %v3970, %v4109
  %v4132 = vadd.f32 %v3971, %v4114
  %v4133 = vmul.f32 %v4117, 0.5
  %v4134 = vmul.f32 %v4118, 0.5
  %v4135 = vmul.f32 %v4119, 0.5
  %v4136 = vmul.f32 %v4120, 0.5
  %v4137 = vtanh.pop %v4133
  %v4138 = vtanh.pop %v4134
  %v4139 = vtanh.pop %v4135
  %v4140 = vtanh.pop %v4136
  %v4141 = vmul.f32 %v4137, 0.5
  %v4142 = vmul.f32 %v4138, 0.5
  %v4143 = vmul.f32 %v4139, 0.5
  %v4144 = vmul.f32 %v4140, 0.5
  %v4145 = vadd.f32 %v4141, 0.5
  %v4146 = vadd.f32 %v4142, 0.5
  %v4147 = vadd.f32 %v4143, 0.5
  %v4148 = vadd.f32 %v4144, 0.5
  %v4149 = vmul.f32 %v4121, 0.5
  %v4150 = vmul.f32 %v4122, 0.5
  %v4151 = vmul.f32 %v4123, 0.5
  %v4152 = vmul.f32 %v4124, 0.5
  %v4153 = vtanh.pop %v4149
  %v4154 = vtanh.pop %v4150
  %v4155 = vtanh.pop %v4151
  %v4156 = vtanh.pop %v4152
  %v4157 = vmul.f32 %v4153, 0.5
  %v4158 = vmul.f32 %v4154, 0.5
  %v4159 = vmul.f32 %v4155, 0.5
  %v4160 = vmul.f32 %v4156, 0.5
  %v4161 = vadd.f32 %v4157, 0.5
  %v4162 = vadd.f32 %v4158, 0.5
  %v4163 = vadd.f32 %v4159, 0.5
  %v4164 = vadd.f32 %v4160, 0.5
  %v4165 = vtanh.pop %v4125
  %v4166 = vtanh.pop %v4126
  %v4167 = vtanh.pop %v4127
  %v4168 = vtanh.pop %v4128
  %v4169 = vmul.f32 %v4129, 0.5
  %v4170 = vmul.f32 %v4130, 0.5
  %v4171 = vmul.f32 %v4131, 0.5
  %v4172 = vmul.f32 %v4132, 0.5
  %v4173 = vtanh.pop %v4169
  %v4174 = vtanh.pop %v4170
  %v4175 = vtanh.pop %v4171
  %v4176 = vtanh.pop %v4172
  %v4177 = vmul.f32 %v4173, 0.5
  %v4178 = vmul.f32 %v4174, 0.5
  %v4179 = vmul.f32 %v4175, 0.5
  %v4180 = vmul.f32 %v4176, 0.5
  %v4181 = vadd.f32 %v4177, 0.5
  %v4182 = vadd.f32 %v4178, 0.5
  %v4183 = vadd.f32 %v4179, 0.5
  %v4184 = vadd.f32 %v4180, 0.5
  %v4185 = vmul.f32 %v4161, %v3944
  %v4186 = vmul.f32 %v4162, %v3945
  %v4187 = vmul.f32 %v4163, %v3946
  %v4188 = vmul.f32 %v4164, %v3947
  %v4189 = vmul.f32 %v4145, %v4165
  %v4190 = vmul.f32 %v4146, %v4166
  %v4191 = vmul.f32 %v4147, %v4167
  %v4192 = vmul.f32 %v4148, %v4168
  %v4193 = vadd.f32 %v4185, %v4189
  %v4194 = vadd.f32 %v4186, %v4190
  %v4195 = vadd.f32 %v4187, %v4191
  %v4196 = vadd.f32 %v4188, %v4192
  %v4197 = vtanh.pop %v4193
  %v4198 = vtanh.pop %v4194
  %v4199 = vtanh.pop %v4195
  %v4200 = vtanh.pop %v4196
  %v4201 = vmul.f32 %v4181, %v4197
  %v4202 = vmul.f32 %v4182, %v4198
  %v4203 = vmul.f32 %v4183, %v4199
  %v4204 = vmul.f32 %v4184, %v4200
  %v4205 = vld [vmem:[%s4] sm:$0xff]
  %v4206 = vld [vmem:[%s4 + $0x8] sm:$0xff]
  %v4207 = vld [vmem:[%s4 + $0x10] sm:$0xff]
  %v4208 = vld [vmem:[%s4 + $0x18] sm:$0xff]
  %v4209 = vld [vmem:[%s5] sm:$0xff]
  %v4210 = vld [vmem:[%s5 + $0x8] sm:$0xff]
  %v4211 = vld [vmem:[%s5 + $0x10] sm:$0xff]
  %v4212 = vld [vmem:[%s5 + $0x18] sm:$0xff]
  %4214 = vset.pattern.permute.xlu0 0
  %4215 = vperm.xlu0 %4214, %v4209
  %v4216 = vpop.permute.xlu0 %4215
  %4219 = vset.pattern.permute.xlu0 0
  %4220 = vperm.xlu0 %4219, %v4210
  %v4221 = vpop.permute.xlu0 %4220
  %4224 = vset.pattern.permute.xlu0 0
  %4225 = vperm.xlu0 %4224, %v4211
  %v4226 = vpop.permute.xlu0 %4225
  %4229 = vset.pattern.permute.xlu0 0
  %4230 = vperm.xlu0 %4229, %v4212
  %v4231 = vpop.permute.xlu0 %4230
  %v4234 = vsel %vm931, %v4205, 0
  %v4237 = vsel %vm931, %v4206, 0
  %v4240 = vsel %vm931, %v4207, 0
  %v4243 = vsel %vm931, %v4208, 0
  %4245 = vmatprep.subr.mxu0 0.0
  %4246 = vmatpush1.msra.mxu0 0.0
  %4247 = vmatprep.subr.mxu0 0.0
  %4248 = vmatpush1.msra.mxu0 0.0
  %4249 = vmatprep.subr.mxu0 0.0
  %4250 = vmatpush1.msra.mxu0 0.0
  %4251 = vmatprep.subr.mxu0 0.0
  %4252 = vmatpush1.msra.mxu0 0.0
  %4253 = vmatprep.subr.mxu0 0.0
  %4254 = vmatpush1.msra.mxu0 0.0
  %4255 = vmatprep.subr.mxu0 0.0
  %4256 = vmatpush1.msra.mxu0 0.0
  %4257 = vmatprep.subr.mxu0 0.0
  %4258 = vmatpush1.msra.mxu0 0.0
  %4259 = vmatprep.subr.mxu0 0.0
  %4260 = vmatpush1.msra.mxu0 0.0
  %4261 = vmatprep.subr.mxu0 0.0
  %4262 = vmatpush1.msra.mxu0 0.0
  %4263 = vmatprep.subr.mxu0 0.0
  %4264 = vmatpush1.msra.mxu0 0.0
  %4265 = vmatprep.subr.mxu0 0.0
  %4266 = vmatpush1.msra.mxu0 0.0
  %4267 = vmatprep.subr.mxu0 0.0
  %4268 = vmatpush1.msra.mxu0 0.0
  %4269 = vmatprep.subr.mxu0 0.0
  %4270 = vmatpush1.msra.mxu0 %v4204
  %4271 = vmatprep.subr.mxu0 0.0
  %4272 = vmatpush1.msra.mxu0 %v4203
  %4273 = vmatprep.subr.mxu0 0.0
  %4274 = vmatpush1.msra.mxu0 %v4202
  %4275 = vmatprep.subr.mxu0 0.0
  %4276 = vmatpush1.msra.mxu0 %v4201
  %4277 = vmatprep.subr.mxu0 0.0
  %4278 = vmatpush2.msra.mxu0 0.0
  %4279 = vmatprep.subr.mxu0 0.0
  %4280 = vmatpush2.msra.mxu0 0.0
  %4281 = vmatprep.subr.mxu0 0.0
  %4282 = vmatpush2.msra.mxu0 0.0
  %4283 = vmatprep.subr.mxu0 0.0
  %4284 = vmatpush2.msra.mxu0 0.0
  %4285 = vmatprep.subr.mxu0 0.0
  %4286 = vmatpush2.msra.mxu0 0.0
  %4287 = vmatprep.subr.mxu0 0.0
  %4288 = vmatpush2.msra.mxu0 0.0
  %4289 = vmatprep.subr.mxu0 0.0
  %4290 = vmatpush2.msra.mxu0 0.0
  %4291 = vmatprep.subr.mxu0 0.0
  %4292 = vmatpush2.msra.mxu0 0.0
  %4293 = vmatprep.subr.mxu0 0.0
  %4294 = vmatpush2.msra.mxu0 0.0
  %4295 = vmatprep.subr.mxu0 0.0
  %4296 = vmatpush2.msra.mxu0 0.0
  %4297 = vmatprep.subr.mxu0 0.0
  %4298 = vmatpush2.msra.mxu0 0.0
  %4299 = vmatprep.subr.mxu0 0.0
  %4300 = vmatpush2.msra.mxu0 0.0
  %4301 = vmatprep.subr.mxu0 0.0
  %4302 = vmatpush2.msra.mxu0 0.0
  %4303 = vmatprep.subr.mxu0 0.0
  %4304 = vmatpush2.msra.mxu0 0.0
  %4305 = vmatprep.subr.mxu0 0.0
  %4306 = vmatpush2.msra.mxu0 0.0
  %4307 = vmatprep.subr.mxu0 0.0
  %4308 = vmatpush2.msra.mxu0 0.0
  %4309 = vmatprep.mubr.f32.mxu0 0.0
  %4310 = vmatmul.mubr.f32.gmra.mxu0 %v4234
  %v4311 = vpop.f32.mrf.mxu0
  %v4312 = vadd.f32 %v4216, %v4311
  %v4313 = vpop.f32.mrf.mxu0
  %4314 = vmatprep.mubr.f32.mxu0 0.0
  %4315 = vmatmul.mubr.f32.gmra.mxu0 %v4237
  %v4316 = vpop.f32.mrf.mxu0
  %v4317 = vadd.f32 %v4221, %v4316
  %v4318 = vpop.f32.mrf.mxu0
  %4319 = vmatprep.mubr.f32.mxu0 0.0
  %4320 = vmatmul.mubr.f32.gmra.mxu0 %v4240
  %v4321 = vpop.f32.mrf.mxu0
  %v4322 = vadd.f32 %v4226, %v4321
  %v4323 = vpop.f32.mrf.mxu0
  %4324 = vmatprep.mubr.f32.mxu0 0.0
  %4325 = vmatmul.mubr.f32.gmra.mxu0 %v4243
  %v4326 = vpop.f32.mrf.mxu0
  %v4327 = vadd.f32 %v4231, %v4326
  %v4328 = vpop.f32.mrf.mxu0
  %4329 = vdwg.mxu0
  %vm4330 = vcmp.ge.f32.partialorder %v4312, 0.0
  %vm4331 = vcmp.ge.f32.partialorder %v4317, 0.0
  %vm4332 = vcmp.ge.f32.partialorder %v4322, 0.0
  %vm4333 = vcmp.ge.f32.partialorder %v4327, 0.0
  %v4334 = vmul.f32 %v4312, 0.2
  %v4335 = vmul.f32 %v4317, 0.2
  %v4336 = vmul.f32 %v4322, 0.2
  %v4337 = vmul.f32 %v4327, 0.2
  %v4338 = vsel %vm4330, %v4312, %v4334
  %v4339 = vsel %vm4331, %v4317, %v4335
  %v4340 = vsel %vm4332, %v4322, %v4336
  %v4341 = vsel %vm4333, %v4327, %v4337
  %v4342 = vld [vmem:[%s6] sm:$0x1]
  %v4343 = vld [vmem:[#allocation3] sm:$0x1]
  %4345 = vset.pattern.permute.xlu0 0
  %4346 = vperm.xlu0 %4345, %v4343
  %v4347 = vpop.permute.xlu0 %4346
  %v4349 = vlaneseq
  %v4350 = vshrl.u32 %v4349, 7
  %v4351 = vsub.s32 0, %v4350
  %v4352 = vrot.slane %v4347, %v4351
  %v4354 = vsel %vm931, %v4342, 0
  %4356 = vmatprep.subr.mxu0 0.0
  %4357 = vmatpush1.msra.mxu0 0.0
  %4358 = vmatprep.subr.mxu0 0.0
  %4359 = vmatpush1.msra.mxu0 0.0
  %4360 = vmatprep.subr.mxu0 0.0
  %4361 = vmatpush1.msra.mxu0 0.0
  %4362 = vmatprep.subr.mxu0 0.0
  %4363 = vmatpush1.msra.mxu0 0.0
  %4364 = vmatprep.subr.mxu0 0.0
  %4365 = vmatpush1.msra.mxu0 0.0
  %4366 = vmatprep.subr.mxu0 0.0
  %4367 = vmatpush1.msra.mxu0 0.0
  %4368 = vmatprep.subr.mxu0 0.0
  %4369 = vmatpush1.msra.mxu0 0.0
  %4370 = vmatprep.subr.mxu0 0.0
  %4371 = vmatpush1.msra.mxu0 0.0
  %4372 = vmatprep.subr.mxu0 0.0
  %4373 = vmatpush1.msra.mxu0 0.0
  %4374 = vmatprep.subr.mxu0 0.0
  %4375 = vmatpush1.msra.mxu0 0.0
  %4376 = vmatprep.subr.mxu0 0.0
  %4377 = vmatpush1.msra.mxu0 0.0
  %4378 = vmatprep.subr.mxu0 0.0
  %4379 = vmatpush1.msra.mxu0 0.0
  %4380 = vmatprep.subr.mxu0 0.0
  %4381 = vmatpush1.msra.mxu0 %v4341
  %4382 = vmatprep.subr.mxu0 0.0
  %4383 = vmatpush1.msra.mxu0 %v4340
  %4384 = vmatprep.subr.mxu0 0.0
  %4385 = vmatpush1.msra.mxu0 %v4339
  %4386 = vmatprep.subr.mxu0 0.0
  %4387 = vmatpush1.msra.mxu0 %v4338
  %4388 = vmatprep.subr.mxu0 0.0
  %4389 = vmatpush2.msra.mxu0 0.0
  %4390 = vmatprep.subr.mxu0 0.0
  %4391 = vmatpush2.msra.mxu0 0.0
  %4392 = vmatprep.subr.mxu0 0.0
  %4393 = vmatpush2.msra.mxu0 0.0
  %4394 = vmatprep.subr.mxu0 0.0
  %4395 = vmatpush2.msra.mxu0 0.0
  %4396 = vmatprep.subr.mxu0 0.0
  %4397 = vmatpush2.msra.mxu0 0.0
  %4398 = vmatprep.subr.mxu0 0.0
  %4399 = vmatpush2.msra.mxu0 0.0
  %4400 = vmatprep.subr.mxu0 0.0
  %4401 = vmatpush2.msra.mxu0 0.0
  %4402 = vmatprep.subr.mxu0 0.0
  %4403 = vmatpush2.msra.mxu0 0.0
  %4404 = vmatprep.subr.mxu0 0.0
  %4405 = vmatpush2.msra.mxu0 0.0
  %4406 = vmatprep.subr.mxu0 0.0
  %4407 = vmatpush2.msra.mxu0 0.0
  %4408 = vmatprep.subr.mxu0 0.0
  %4409 = vmatpush2.msra.mxu0 0.0
  %4410 = vmatprep.subr.mxu0 0.0
  %4411 = vmatpush2.msra.mxu0 0.0
  %4412 = vmatprep.subr.mxu0 0.0
  %4413 = vmatpush2.msra.mxu0 0.0
  %4414 = vmatprep.subr.mxu0 0.0
  %4415 = vmatpush2.msra.mxu0 0.0
  %4416 = vmatprep.subr.mxu0 0.0
  %4417 = vmatpush2.msra.mxu0 0.0
  %4418 = vmatprep.subr.mxu0 0.0
  %4419 = vmatpush2.msra.mxu0 0.0
  %4420 = vmatprep.mubr.f32.mxu0 0.0
  %4421 = vmatmul.mubr.f32.gmra.mxu0 %v4354
  %v4422 = vpop.f32.mrf.mxu0
  %v4423 = vadd.f32 %v4352, %v4422
  %v4424 = vpop.f32.mrf.mxu0
  %4425 = vdwg.mxu0
  %vm4426 = vcmp.ge.f32.partialorder %v4423, 0.0
  %v4427 = vmul.f32 %v4423, 0.2
  %v4428 = vsel %vm4426, %v4423, %v4427
  %4429 = vst [vmem:[%s8] sm:$0x1] %v4428
  // Predicated region
  $region34: #{lm_forward.1} parent=0 // pred_check
    _
  $region35: #{lm_forward.1} parent=0 // pred_check_branch
    %4431 = sbr.rel (0) target = $region37
  $region36: #{lm_forward.1} parent=0 // pred_region
    _
  $region37: #{lm_forward.1} parent=0 // pred_fallthru
    _
  // Predicated region
  $region38: #{lm_forward.1} parent=0 // pred_check
    _
  $region39: #{lm_forward.1} parent=0 // pred_check_branch
    %4433 = sbr.rel (0) target = $region41
  $region40: #{lm_forward.1} parent=0 // pred_region
    _
  $region41: #{lm_forward.1} parent=0 // pred_fallthru
    _

</llo_original>
